<compile_context>
chip_gen: v7x
topology: tpu7x:2x2x1
jax: 0.10.0
libtpu: 0.0.40
codegen_flags: <defaults>
</compile_context>

<pallas_src>
import jax
import jax.numpy as jnp
from jax import lax
from jax.experimental import pallas as pl
from jax.experimental.pallas import tpu as pltpu

_TARGET_BLOCK_ELEMS = 256 * 1024   # ~1 MiB per f32 ref per block


def _cmodrelu_kernel(thr_ref, re_ref, im_ref, ore_ref, oim_ref):
    """Elementwise complex-modulus ReLU on one (TILE_ROWS, LANE) tile."""
    re = re_ref[...]
    im = im_ref[...]
    t = thr_ref[0]                                    # scalar threshold (SMEM, f32)
    # relu(|z| - t) * z / |z|  ==  max(1 - t / |z|, 0) * z
    # Single EUP rsqrt instead of sqrt + divide.
    # Semantics note: at z == 0 this produces 0 (PyTorch produces NaN via 0/0).
    inv_mag = lax.rsqrt(re * re + im * im)
    scale = jnp.maximum(1.0 - t * inv_mag, 0.0)
    ore_ref[...] = (scale * re).astype(ore_ref.dtype)
    oim_ref[...] = (scale * im).astype(oim_ref.dtype)


def _pick_lane(n):
    """Largest lane-dense last dim (multiple of 128) that divides n exactly."""
    for lane in (1024, 512, 256, 128):
        if n % lane == 0:
            return lane
    return None


def _cmodrelu_2d(re2, im2, thr, lane, *, inplace=False):
    """Run the Pallas kernel on (rows, lane) float arrays."""
    rows = re2.shape[0]
    n = rows * lane

    # ~1 MiB f32 block per ref; sublane tile is always a multiple of 8.
    tile_rows = max(8, (_TARGET_BLOCK_ELEMS // lane) // 8 * 8)
    grid = (pl.cdiv(rows, tile_rows),)                # ragged last block is masked
    data_spec = pl.BlockSpec((tile_rows, lane), lambda i: (i, 0))

    kwargs = {}
    if inplace:
        # re -> out_re, im -> out_im (inputs are thr=0, re=1, im=2)
        kwargs["input_output_aliases"] = {1: 0, 2: 1}

    out_re, out_im = pl.pallas_call(
        _cmodrelu_kernel,
        out_shape=(
            jax.ShapeDtypeStruct((rows, lane), re2.dtype),
            jax.ShapeDtypeStruct((rows, lane), im2.dtype),
        ),
        grid=grid,
        in_specs=[
            pl.BlockSpec(memory_space=pltpu.MemorySpace.SMEM),  # threshold scalar
            data_spec,                                          # real part
            data_spec,                                          # imag part
        ],
        out_specs=(data_spec, data_spec),
        compiler_params=pltpu.CompilerParams(
            dimension_semantics=("parallel",),
        ),
        cost_estimate=pl.CostEstimate(
            flops=8 * n,
            transcendentals=n,
            bytes_accessed=4 * n * re2.dtype.itemsize,
        ),
        **kwargs,
    )(thr, re2, im2)
    return out_re, out_im


def cmodrelu_pallas(x_re, x_im, threshold, *, inplace=False):
    """Apply CmodReLU to a complex tensor given as (real, imag) arrays."""
    assert x_re.shape == x_im.shape and x_re.dtype == x_im.dtype
    orig_shape = x_re.shape
    n = x_re.size
    thr = jnp.asarray(threshold, jnp.float32).reshape(1)

    lane = _pick_lane(n)
    if lane is not None:
        # Common case (e.g. NCHW with W a multiple of a power of two): the flat
        # reshape is a free metadata op -- no padding, no slice-back copies.
        rows = n // lane
        re2 = x_re.reshape(rows, lane)
        im2 = x_im.reshape(rows, lane)
        out_re, out_im = _cmodrelu_2d(re2, im2, thr, lane, inplace=inplace)
        return out_re.reshape(orig_shape), out_im.reshape(orig_shape)

    # Rare fallback: n not a multiple of 128 -> minimal pad to one lane width.
    lane = 128
    n_pad = pl.cdiv(n, lane) * lane
    pad = n_pad - n
    fr = jnp.pad(x_re.reshape(-1), (0, pad))
    fi = jnp.pad(x_im.reshape(-1), (0, pad))
    rows = n_pad // lane
    out_re, out_im = _cmodrelu_2d(fr.reshape(rows, lane), fi.reshape(rows, lane),
                                  thr, lane, inplace=False)
    out_re = out_re.reshape(-1)[:n].reshape(orig_shape)
    out_im = out_im.reshape(-1)[:n].reshape(orig_shape)
    return out_re, out_im


def cmodrelu_ref(x_re, x_im, threshold):
    """Pure-JAX reference (mirrors torchcomplex cmodrelu: sqrt + divide)."""
    mag = jnp.sqrt(x_re * x_re + x_im * x_im)
    scale = jnp.maximum(mag - threshold, 0.0) / mag
    return scale * x_re, scale * x_im


class CmodReLUPallas:
    """Mirror of torchcomplex CmodReLU.__init__ parameter handling."""

    def __init__(self, threshold, inplace=False, *, key=None):
        self.inplace = inplace  # maps to input_output_aliases in the kernel
        if not isinstance(threshold, float):
            # learnable Parameter(torch.rand(1) * 0.25), init deterministically
            key = jax.random.PRNGKey(0) if key is None else key
            threshold = jax.random.uniform(key, (1,), jnp.float32) * 0.25
        else:
            threshold = jnp.asarray([threshold], jnp.float32)
        self.threshold = threshold

    def __call__(self, x_re, x_im):
        return cmodrelu_pallas(x_re, x_im, self.threshold, inplace=self.inplace)


if __name__ == "__main__":
    key = jax.random.PRNGKey(0)
    k_thr, k_re, k_im = jax.random.split(key, 3)

    # Small NCHW complex input: (N=2, C=4, H=16, W=16), re/im pair.
    shape = (2, 4, 16, 16)
    x_re = jax.random.normal(k_re, shape, jnp.float32)
    x_im = jax.random.normal(k_im, shape, jnp.float32)

    mod = CmodReLUPallas(threshold=1, key=k_thr)  # int -> learnable param init

    out_re, out_im = mod(x_re, x_im)
    out_re, out_im = jax.block_until_ready((out_re, out_im))

    ref_re, ref_im = cmodrelu_ref(x_re, x_im, mod.threshold[0])
    assert out_re.shape == shape and out_im.shape == shape
    assert jnp.allclose(out_re, ref_re, atol=1e-5, rtol=1e-5)
    assert jnp.allclose(out_im, ref_im, atol=1e-5, rtol=1e-5)

    # Secondary check: ragged size (not a multiple of 128) exercises fallback.
    shape2 = (2, 3, 5, 7)
    y_re = jax.random.normal(jax.random.PRNGKey(1), shape2, jnp.float32)
    y_im = jax.random.normal(jax.random.PRNGKey(2), shape2, jnp.float32)
    o2_re, o2_im = cmodrelu_pallas(y_re, y_im, mod.threshold)
    o2_re, o2_im = jax.block_until_ready((o2_re, o2_im))
    r2_re, r2_im = cmodrelu_ref(y_re, y_im, mod.threshold[0])
    assert jnp.allclose(o2_re, r2_re, atol=1e-5, rtol=1e-5)
    assert jnp.allclose(o2_im, r2_im, atol=1e-5, rtol=1e-5)

    print("KERNEL_OK")
</pallas_src>

<mosaic_0001>
module attributes {stable_mosaic.version = 11 : i64} {
  func.func @_cmodrelu_kernel(%arg0: i32, %arg1: memref<1xf32, #tpu.memory_space<smem>>, %arg2: memref<256x1024xf32, #tpu.memory_space<vmem>>, %arg3: memref<256x1024xf32, #tpu.memory_space<vmem>>, %arg4: memref<256x1024xf32, #tpu.memory_space<vmem>>, %arg5: memref<256x1024xf32, #tpu.memory_space<vmem>>) attributes {dimension_semantics = [#tpu.dimension_semantics<parallel>], iteration_bounds = array<i64: 1>, scalar_prefetch = 0 : i64, scratch_operands = 0 : i64, tpu.core_type = #tpu.core_type<tc>, window_params = [{transform_indices = @transform_0, window_bounds = array<i64: 1>}, {transform_indices = @transform_1, window_bounds = array<i64: 256, 1024>}, {transform_indices = @transform_2, window_bounds = array<i64: 256, 1024>}, {transform_indices = @transform_3, window_bounds = array<i64: 256, 1024>}, {transform_indices = @transform_4, window_bounds = array<i64: 256, 1024>}]} {
    %c0 = arith.constant 0 : index
    %c0_0 = arith.constant 0 : index
    %0 = vector.load %arg2[%c0, %c0_0] : memref<256x1024xf32, #tpu.memory_space<vmem>>, vector<256x1024xf32>
    %c0_1 = arith.constant 0 : index
    %c0_2 = arith.constant 0 : index
    %1 = vector.load %arg3[%c0_1, %c0_2] : memref<256x1024xf32, #tpu.memory_space<vmem>>, vector<256x1024xf32>
    %c0_3 = arith.constant 0 : index
    %2 = memref.load %arg1[%c0_3] : memref<1xf32, #tpu.memory_space<smem>>
    %3 = arith.mulf %0, %0 : vector<256x1024xf32>
    %4 = arith.mulf %1, %1 : vector<256x1024xf32>
    %5 = arith.addf %3, %4 : vector<256x1024xf32>
    %6 = math.rsqrt %5 : vector<256x1024xf32>
    %7 = vector.broadcast %2 : f32 to vector<256x1024xf32>
    %8 = arith.mulf %7, %6 : vector<256x1024xf32>
    %cst = arith.constant 1.000000e+00 : f32
    %9 = vector.broadcast %cst : f32 to vector<256x1024xf32>
    %10 = arith.subf %9, %8 : vector<256x1024xf32>
    %cst_4 = arith.constant 0.000000e+00 : f32
    %11 = vector.broadcast %cst_4 : f32 to vector<256x1024xf32>
    %12 = arith.maximumf %10, %11 : vector<256x1024xf32>
    %13 = arith.mulf %12, %0 : vector<256x1024xf32>
    %c0_5 = arith.constant 0 : index
    %c0_6 = arith.constant 0 : index
    %14 = vector.load %arg4[%c0_5, %c0_6] : memref<256x1024xf32, #tpu.memory_space<vmem>>, vector<256x1024xf32>
    tpu.vector_store %arg4[%c0_5, %c0_6], %13 {strides = array<i32>} : memref<256x1024xf32, #tpu.memory_space<vmem>>, vector<256x1024xf32>,
    %15 = arith.mulf %12, %1 : vector<256x1024xf32>
    %c0_7 = arith.constant 0 : index
    %c0_8 = arith.constant 0 : index
    %16 = vector.load %arg5[%c0_7, %c0_8] : memref<256x1024xf32, #tpu.memory_space<vmem>>, vector<256x1024xf32>
    tpu.vector_store %arg5[%c0_7, %c0_8], %15 {strides = array<i32>} : memref<256x1024xf32, #tpu.memory_space<vmem>>, vector<256x1024xf32>,
    return
  }
  func.func @transform_0(%arg0: i32) -> i32 {
    %c0_i32 = arith.constant 0 : i32
    %c0_i32_0 = arith.constant 0 : i32
    return %c0_i32 : i32
  }
  func.func @transform_1(%arg0: i32) -> (i32, i32) {
    %c0_i32 = arith.constant 0 : i32
    %c0_i32_0 = arith.constant 0 : i32
    return %arg0, %c0_i32 : i32, i32
  }
  func.func @transform_2(%arg0: i32) -> (i32, i32) {
    %c0_i32 = arith.constant 0 : i32
    %c0_i32_0 = arith.constant 0 : i32
    return %arg0, %c0_i32 : i32, i32
  }
  func.func @transform_3(%arg0: i32) -> (i32, i32) {
    %c0_i32 = arith.constant 0 : i32
    %c0_i32_0 = arith.constant 0 : i32
    return %arg0, %c0_i32 : i32, i32
  }
  func.func @transform_4(%arg0: i32) -> (i32, i32) {
    %c0_i32 = arith.constant 0 : i32
    %c0_i32_0 = arith.constant 0 : i32
    return %arg0, %c0_i32 : i32, i32
  }
}

</mosaic_0001>

<llo_original>
// kernel: tpu_custom_call.1
$region0: #{tpu_custom_call.1}
  #allocation0 [shape = 'u32[]', space=smem, size = 0x4, offset = 0x4, fixed_abs, tag = 'smem constant byte address 0x4 - core index']
  #allocation1 [shape = 'u32[144,128]{1,0:T(1,128)}', space=vmem, size = 0x12000, scoped, tag = 'internal scratch']
  #allocation2 [shape = 'f32[1]{0:T(128)S(6)}', space=smem, size = 0x200, scoped, tag = 'scoped memory for tpu_custom_call.1']
  %s0 = inlined_call_operand.<no memory space> [shape: f32[1], index: 0, kind: input, shape index: {}]
  %s1 = inlined_call_operand.hbm [shape: f32[2,1024], index: 1, kind: input, shape index: {}]
  %s2 = inlined_call_operand.hbm [shape: f32[2,1024], index: 2, kind: input, shape index: {}]
  %s3 = inlined_call_operand.hbm [shape: f32[2,1024], index: 3, kind: output, shape index: {0}]
  %s4 = inlined_call_operand.hbm [shape: f32[2,1024], index: 4, kind: output, shape index: {1}]
  %5 = xla_tuple %s3, %s4
  %s6 = sld [smem:[#allocation0]]
  $region38: #{tpu_custom_call.1} parent=0
    _
  %s8 = ssub.s32 1, %s6
  %s9 = scalar_select 0, %s8, %s6
  %10 = sst [smem:[#allocation2]] %s0
  $region1: #{tpu_custom_call.1} parent=0
    #allocation3 [shape = 'u8[1048576]{0}', space=vmem, size = 0x100000, scoped, tag = 'input window, operand 1, single buffered']
    #allocation4 [shape = 's32[1]{0}', space=sflag, size = 0x4, scoped, tag = 'scoped memory for tpu_custom_call.1']
    #allocation5 [shape = 's32[1]{0}', space=sflag, size = 0x4, scoped, tag = 'scoped memory for tpu_custom_call.1']
    #allocation6 [shape = 'u8[1048576]{0}', space=vmem, size = 0x100000, scoped, tag = 'input window, operand 2, single buffered']
    #allocation7 [shape = 's32[1]{0}', space=sflag, size = 0x4, scoped, tag = 'scoped memory for tpu_custom_call.1']
    #allocation8 [shape = 'u8[1048576]{0}', space=vmem, size = 0x100000, scoped, tag = 'output window, operand 0, single buffered']
    #allocation9 [shape = 'u8[1048576]{0}', space=vmem, size = 0x100000, scoped, tag = 'output window, operand 1, single buffered']
    #allocation10 [shape = 's32[1]{0}', space=sflag, size = 0x4, scoped, tag = 'scoped memory for tpu_custom_call.1']
    %11 = vsyncpa [#allocation4], 0
    %12 = vsyncpa [#allocation7], 0
    %13 = vsyncpa [#allocation5], 0
    %14 = vsyncpa [#allocation10], 0
    // Predicated region
    $region2: #{tpu_custom_call.1} parent=1 // pred_check
      _
    $region3: #{tpu_custom_call.1} parent=1 // pred_check_branch
      %16 = sbr.rel (0) target = $region5
    $region4: #{tpu_custom_call.1} parent=1 // pred_region
      _
    $region5: #{tpu_custom_call.1} parent=1 // pred_fallthru
      _
    // Predicated region
    $region6: #{tpu_custom_call.1} parent=1 // pred_check
      _
    $region7: #{tpu_custom_call.1} parent=1 // pred_check_branch
      %18 = sbr.rel (0) target = $region9
    $region8: #{tpu_custom_call.1} parent=1 // pred_region
      %s20 = ssub.s32 32768, 256
      %21 = vsyncadd [#allocation4], %s20
      %s22 = sshll.u32 [#allocation3], 4
      %s23 = int_to_ptr.vmem [resolvable:$true] %s22
      %28 = dma.hbm_to_vmem [thread:$0]  %s1, 256, %s23, [#allocation4], 256, 256, 16
    $region9: #{tpu_custom_call.1} parent=1 // pred_fallthru
      _
    // Predicated region
    $region10: #{tpu_custom_call.1} parent=1 // pred_check
      _
    $region11: #{tpu_custom_call.1} parent=1 // pred_check_branch
      %30 = sbr.rel (0) target = $region13
    $region12: #{tpu_custom_call.1} parent=1 // pred_region
      %s32 = ssub.s32 32768, 256
      %33 = vsyncadd [#allocation7], %s32
      %s34 = sshll.u32 [#allocation6], 4
      %s35 = int_to_ptr.vmem [resolvable:$true] %s34
      %40 = dma.hbm_to_vmem [thread:$0]  %s2, 256, %s35, [#allocation7], 256, 256, 16
    $region13: #{tpu_custom_call.1} parent=1 // pred_fallthru
      _
    // Predicated region
    $region14: #{tpu_custom_call.1} parent=1 // pred_check
      _
    $region15: #{tpu_custom_call.1} parent=1 // pred_check_branch
      %42 = sbr.rel (0) target = $region17
    $region16: #{tpu_custom_call.1} parent=1 // pred_region
      %43 = dma.done [#allocation4], 32768
    $region17: #{tpu_custom_call.1} parent=1 // pred_fallthru
      _
    // Predicated region
    $region18: #{tpu_custom_call.1} parent=1 // pred_check
      _
    $region19: #{tpu_custom_call.1} parent=1 // pred_check_branch
      %45 = sbr.rel (0) target = $region21
    $region20: #{tpu_custom_call.1} parent=1 // pred_region
      %46 = dma.done [#allocation7], 32768
    $region21: #{tpu_custom_call.1} parent=1 // pred_fallthru
      _
    %v47 = vld [vmem:[#allocation3] sm:$0xff]
    %v48 = vld [vmem:[#allocation3 + $0x8] sm:$0xff]
    %v49 = vld [vmem:[#allocation3 + $0x10] sm:$0xff]
    %v50 = vld [vmem:[#allocation3 + $0x18] sm:$0xff]
    %v51 = vld [vmem:[#allocation3 + $0x20] sm:$0xff]
    %v52 = vld [vmem:[#allocation3 + $0x28] sm:$0xff]
    %v53 = vld [vmem:[#allocation3 + $0x30] sm:$0xff]
    %v54 = vld [vmem:[#allocation3 + $0x38] sm:$0xff]
    %v55 = vld [vmem:[#allocation3 + $0x40] sm:$0xff]
    %v56 = vld [vmem:[#allocation3 + $0x48] sm:$0xff]
    %v57 = vld [vmem:[#allocation3 + $0x50] sm:$0xff]
    %v58 = vld [vmem:[#allocation3 + $0x58] sm:$0xff]
    %v59 = vld [vmem:[#allocation3 + $0x60] sm:$0xff]
    %v60 = vld [vmem:[#allocation3 + $0x68] sm:$0xff]
    %v61 = vld [vmem:[#allocation3 + $0x70] sm:$0xff]
    %v62 = vld [vmem:[#allocation3 + $0x78] sm:$0xff]
    %v63 = vld [vmem:[#allocation3 + $0x80] sm:$0xff]
    %v64 = vld [vmem:[#allocation3 + $0x88] sm:$0xff]
    %v65 = vld [vmem:[#allocation3 + $0x90] sm:$0xff]
    %v66 = vld [vmem:[#allocation3 + $0x98] sm:$0xff]
    %v67 = vld [vmem:[#allocation3 + $0xa0] sm:$0xff]
    %v68 = vld [vmem:[#allocation3 + $0xa8] sm:$0xff]
    %v69 = vld [vmem:[#allocation3 + $0xb0] sm:$0xff]
    %v70 = vld [vmem:[#allocation3 + $0xb8] sm:$0xff]
    %v71 = vld [vmem:[#allocation3 + $0xc0] sm:$0xff]
    %v72 = vld [vmem:[#allocation3 + $0xc8] sm:$0xff]
    %v73 = vld [vmem:[#allocation3 + $0xd0] sm:$0xff]
    %v74 = vld [vmem:[#allocation3 + $0xd8] sm:$0xff]
    %v75 = vld [vmem:[#allocation3 + $0xe0] sm:$0xff]
    %v76 = vld [vmem:[#allocation3 + $0xe8] sm:$0xff]
    %v77 = vld [vmem:[#allocation3 + $0xf0] sm:$0xff]
    %v78 = vld [vmem:[#allocation3 + $0xf8] sm:$0xff]
    %v79 = vld [vmem:[#allocation3 + $0x100] sm:$0xff]
    %v80 = vld [vmem:[#allocation3 + $0x108] sm:$0xff]
    %v81 = vld [vmem:[#allocation3 + $0x110] sm:$0xff]
    %v82 = vld [vmem:[#allocation3 + $0x118] sm:$0xff]
    %v83 = vld [vmem:[#allocation3 + $0x120] sm:$0xff]
    %v84 = vld [vmem:[#allocation3 + $0x128] sm:$0xff]
    %v85 = vld [vmem:[#allocation3 + $0x130] sm:$0xff]
    %v86 = vld [vmem:[#allocation3 + $0x138] sm:$0xff]
    %v87 = vld [vmem:[#allocation3 + $0x140] sm:$0xff]
    %v88 = vld [vmem:[#allocation3 + $0x148] sm:$0xff]
    %v89 = vld [vmem:[#allocation3 + $0x150] sm:$0xff]
    %v90 = vld [vmem:[#allocation3 + $0x158] sm:$0xff]
    %v91 = vld [vmem:[#allocation3 + $0x160] sm:$0xff]
    %v92 = vld [vmem:[#allocation3 + $0x168] sm:$0xff]
    %v93 = vld [vmem:[#allocation3 + $0x170] sm:$0xff]
    %v94 = vld [vmem:[#allocation3 + $0x178] sm:$0xff]
    %v95 = vld [vmem:[#allocation3 + $0x180] sm:$0xff]
    %v96 = vld [vmem:[#allocation3 + $0x188] sm:$0xff]
    %v97 = vld [vmem:[#allocation3 + $0x190] sm:$0xff]
    %v98 = vld [vmem:[#allocation3 + $0x198] sm:$0xff]
    %v99 = vld [vmem:[#allocation3 + $0x1a0] sm:$0xff]
    %v100 = vld [vmem:[#allocation3 + $0x1a8] sm:$0xff]
    %v101 = vld [vmem:[#allocation3 + $0x1b0] sm:$0xff]
    %v102 = vld [vmem:[#allocation3 + $0x1b8] sm:$0xff]
    %v103 = vld [vmem:[#allocation3 + $0x1c0] sm:$0xff]
    %v104 = vld [vmem:[#allocation3 + $0x1c8] sm:$0xff]
    %v105 = vld [vmem:[#allocation3 + $0x1d0] sm:$0xff]
    %v106 = vld [vmem:[#allocation3 + $0x1d8] sm:$0xff]
    %v107 = vld [vmem:[#allocation3 + $0x1e0] sm:$0xff]
    %v108 = vld [vmem:[#allocation3 + $0x1e8] sm:$0xff]
    %v109 = vld [vmem:[#allocation3 + $0x1f0] sm:$0xff]
    %v110 = vld [vmem:[#allocation3 + $0x1f8] sm:$0xff]
    %v111 = vld [vmem:[#allocation3 + $0x200] sm:$0xff]
    %v112 = vld [vmem:[#allocation3 + $0x208] sm:$0xff]
    %v113 = vld [vmem:[#allocation3 + $0x210] sm:$0xff]
    %v114 = vld [vmem:[#allocation3 + $0x218] sm:$0xff]
    %v115 = vld [vmem:[#allocation3 + $0x220] sm:$0xff]
    %v116 = vld [vmem:[#allocation3 + $0x228] sm:$0xff]
    %v117 = vld [vmem:[#allocation3 + $0x230] sm:$0xff]
    %v118 = vld [vmem:[#allocation3 + $0x238] sm:$0xff]
    %v119 = vld [vmem:[#allocation3 + $0x240] sm:$0xff]
    %v120 = vld [vmem:[#allocation3 + $0x248] sm:$0xff]
    %v121 = vld [vmem:[#allocation3 + $0x250] sm:$0xff]
    %v122 = vld [vmem:[#allocation3 + $0x258] sm:$0xff]
    %v123 = vld [vmem:[#allocation3 + $0x260] sm:$0xff]
    %v124 = vld [vmem:[#allocation3 + $0x268] sm:$0xff]
    %v125 = vld [vmem:[#allocation3 + $0x270] sm:$0xff]
    %v126 = vld [vmem:[#allocation3 + $0x278] sm:$0xff]
    %v127 = vld [vmem:[#allocation3 + $0x280] sm:$0xff]
    %v128 = vld [vmem:[#allocation3 + $0x288] sm:$0xff]
    %v129 = vld [vmem:[#allocation3 + $0x290] sm:$0xff]
    %v130 = vld [vmem:[#allocation3 + $0x298] sm:$0xff]
    %v131 = vld [vmem:[#allocation3 + $0x2a0] sm:$0xff]
    %v132 = vld [vmem:[#allocation3 + $0x2a8] sm:$0xff]
    %v133 = vld [vmem:[#allocation3 + $0x2b0] sm:$0xff]
    %v134 = vld [vmem:[#allocation3 + $0x2b8] sm:$0xff]
    %v135 = vld [vmem:[#allocation3 + $0x2c0] sm:$0xff]
    %v136 = vld [vmem:[#allocation3 + $0x2c8] sm:$0xff]
    %v137 = vld [vmem:[#allocation3 + $0x2d0] sm:$0xff]
    %v138 = vld [vmem:[#allocation3 + $0x2d8] sm:$0xff]
    %v139 = vld [vmem:[#allocation3 + $0x2e0] sm:$0xff]
    %v140 = vld [vmem:[#allocation3 + $0x2e8] sm:$0xff]
    %v141 = vld [vmem:[#allocation3 + $0x2f0] sm:$0xff]
    %v142 = vld [vmem:[#allocation3 + $0x2f8] sm:$0xff]
    %v143 = vld [vmem:[#allocation3 + $0x300] sm:$0xff]
    %v144 = vld [vmem:[#allocation3 + $0x308] sm:$0xff]
    %v145 = vld [vmem:[#allocation3 + $0x310] sm:$0xff]
    %v146 = vld [vmem:[#allocation3 + $0x318] sm:$0xff]
    %v147 = vld [vmem:[#allocation3 + $0x320] sm:$0xff]
    %v148 = vld [vmem:[#allocation3 + $0x328] sm:$0xff]
    %v149 = vld [vmem:[#allocation3 + $0x330] sm:$0xff]
    %v150 = vld [vmem:[#allocation3 + $0x338] sm:$0xff]
    %v151 = vld [vmem:[#allocation3 + $0x340] sm:$0xff]
    %v152 = vld [vmem:[#allocation3 + $0x348] sm:$0xff]
    %v153 = vld [vmem:[#allocation3 + $0x350] sm:$0xff]
    %v154 = vld [vmem:[#allocation3 + $0x358] sm:$0xff]
    %v155 = vld [vmem:[#allocation3 + $0x360] sm:$0xff]
    %v156 = vld [vmem:[#allocation3 + $0x368] sm:$0xff]
    %v157 = vld [vmem:[#allocation3 + $0x370] sm:$0xff]
    %v158 = vld [vmem:[#allocation3 + $0x378] sm:$0xff]
    %v159 = vld [vmem:[#allocation3 + $0x380] sm:$0xff]
    %v160 = vld [vmem:[#allocation3 + $0x388] sm:$0xff]
    %v161 = vld [vmem:[#allocation3 + $0x390] sm:$0xff]
    %v162 = vld [vmem:[#allocation3 + $0x398] sm:$0xff]
    %v163 = vld [vmem:[#allocation3 + $0x3a0] sm:$0xff]
    %v164 = vld [vmem:[#allocation3 + $0x3a8] sm:$0xff]
    %v165 = vld [vmem:[#allocation3 + $0x3b0] sm:$0xff]
    %v166 = vld [vmem:[#allocation3 + $0x3b8] sm:$0xff]
    %v167 = vld [vmem:[#allocation3 + $0x3c0] sm:$0xff]
    %v168 = vld [vmem:[#allocation3 + $0x3c8] sm:$0xff]
    %v169 = vld [vmem:[#allocation3 + $0x3d0] sm:$0xff]
    %v170 = vld [vmem:[#allocation3 + $0x3d8] sm:$0xff]
    %v171 = vld [vmem:[#allocation3 + $0x3e0] sm:$0xff]
    %v172 = vld [vmem:[#allocation3 + $0x3e8] sm:$0xff]
    %v173 = vld [vmem:[#allocation3 + $0x3f0] sm:$0xff]
    %v174 = vld [vmem:[#allocation3 + $0x3f8] sm:$0xff]
    %v175 = vld [vmem:[#allocation3 + $0x400] sm:$0xff]
    %v176 = vld [vmem:[#allocation3 + $0x408] sm:$0xff]
    %v177 = vld [vmem:[#allocation3 + $0x410] sm:$0xff]
    %v178 = vld [vmem:[#allocation3 + $0x418] sm:$0xff]
    %v179 = vld [vmem:[#allocation3 + $0x420] sm:$0xff]
    %v180 = vld [vmem:[#allocation3 + $0x428] sm:$0xff]
    %v181 = vld [vmem:[#allocation3 + $0x430] sm:$0xff]
    %v182 = vld [vmem:[#allocation3 + $0x438] sm:$0xff]
    %v183 = vld [vmem:[#allocation3 + $0x440] sm:$0xff]
    %v184 = vld [vmem:[#allocation3 + $0x448] sm:$0xff]
    %v185 = vld [vmem:[#allocation3 + $0x450] sm:$0xff]
    %v186 = vld [vmem:[#allocation3 + $0x458] sm:$0xff]
    %v187 = vld [vmem:[#allocation3 + $0x460] sm:$0xff]
    %v188 = vld [vmem:[#allocation3 + $0x468] sm:$0xff]
    %v189 = vld [vmem:[#allocation3 + $0x470] sm:$0xff]
    %v190 = vld [vmem:[#allocation3 + $0x478] sm:$0xff]
    %v191 = vld [vmem:[#allocation3 + $0x480] sm:$0xff]
    %v192 = vld [vmem:[#allocation3 + $0x488] sm:$0xff]
    %v193 = vld [vmem:[#allocation3 + $0x490] sm:$0xff]
    %v194 = vld [vmem:[#allocation3 + $0x498] sm:$0xff]
    %v195 = vld [vmem:[#allocation3 + $0x4a0] sm:$0xff]
    %v196 = vld [vmem:[#allocation3 + $0x4a8] sm:$0xff]
    %v197 = vld [vmem:[#allocation3 + $0x4b0] sm:$0xff]
    %v198 = vld [vmem:[#allocation3 + $0x4b8] sm:$0xff]
    %v199 = vld [vmem:[#allocation3 + $0x4c0] sm:$0xff]
    %v200 = vld [vmem:[#allocation3 + $0x4c8] sm:$0xff]
    %v201 = vld [vmem:[#allocation3 + $0x4d0] sm:$0xff]
    %v202 = vld [vmem:[#allocation3 + $0x4d8] sm:$0xff]
    %v203 = vld [vmem:[#allocation3 + $0x4e0] sm:$0xff]
    %v204 = vld [vmem:[#allocation3 + $0x4e8] sm:$0xff]
    %v205 = vld [vmem:[#allocation3 + $0x4f0] sm:$0xff]
    %v206 = vld [vmem:[#allocation3 + $0x4f8] sm:$0xff]
    %v207 = vld [vmem:[#allocation3 + $0x500] sm:$0xff]
    %v208 = vld [vmem:[#allocation3 + $0x508] sm:$0xff]
    %v209 = vld [vmem:[#allocation3 + $0x510] sm:$0xff]
    %v210 = vld [vmem:[#allocation3 + $0x518] sm:$0xff]
    %v211 = vld [vmem:[#allocation3 + $0x520] sm:$0xff]
    %v212 = vld [vmem:[#allocation3 + $0x528] sm:$0xff]
    %v213 = vld [vmem:[#allocation3 + $0x530] sm:$0xff]
    %v214 = vld [vmem:[#allocation3 + $0x538] sm:$0xff]
    %v215 = vld [vmem:[#allocation3 + $0x540] sm:$0xff]
    %v216 = vld [vmem:[#allocation3 + $0x548] sm:$0xff]
    %v217 = vld [vmem:[#allocation3 + $0x550] sm:$0xff]
    %v218 = vld [vmem:[#allocation3 + $0x558] sm:$0xff]
    %v219 = vld [vmem:[#allocation3 + $0x560] sm:$0xff]
    %v220 = vld [vmem:[#allocation3 + $0x568] sm:$0xff]
    %v221 = vld [vmem:[#allocation3 + $0x570] sm:$0xff]
    %v222 = vld [vmem:[#allocation3 + $0x578] sm:$0xff]
    %v223 = vld [vmem:[#allocation3 + $0x580] sm:$0xff]
    %v224 = vld [vmem:[#allocation3 + $0x588] sm:$0xff]
    %v225 = vld [vmem:[#allocation3 + $0x590] sm:$0xff]
    %v226 = vld [vmem:[#allocation3 + $0x598] sm:$0xff]
    %v227 = vld [vmem:[#allocation3 + $0x5a0] sm:$0xff]
    %v228 = vld [vmem:[#allocation3 + $0x5a8] sm:$0xff]
    %v229 = vld [vmem:[#allocation3 + $0x5b0] sm:$0xff]
    %v230 = vld [vmem:[#allocation3 + $0x5b8] sm:$0xff]
    %v231 = vld [vmem:[#allocation3 + $0x5c0] sm:$0xff]
    %v232 = vld [vmem:[#allocation3 + $0x5c8] sm:$0xff]
    %v233 = vld [vmem:[#allocation3 + $0x5d0] sm:$0xff]
    %v234 = vld [vmem:[#allocation3 + $0x5d8] sm:$0xff]
    %v235 = vld [vmem:[#allocation3 + $0x5e0] sm:$0xff]
    %v236 = vld [vmem:[#allocation3 + $0x5e8] sm:$0xff]
    %v237 = vld [vmem:[#allocation3 + $0x5f0] sm:$0xff]
    %v238 = vld [vmem:[#allocation3 + $0x5f8] sm:$0xff]
    %v239 = vld [vmem:[#allocation3 + $0x600] sm:$0xff]
    %v240 = vld [vmem:[#allocation3 + $0x608] sm:$0xff]
    %v241 = vld [vmem:[#allocation3 + $0x610] sm:$0xff]
    %v242 = vld [vmem:[#allocation3 + $0x618] sm:$0xff]
    %v243 = vld [vmem:[#allocation3 + $0x620] sm:$0xff]
    %v244 = vld [vmem:[#allocation3 + $0x628] sm:$0xff]
    %v245 = vld [vmem:[#allocation3 + $0x630] sm:$0xff]
    %v246 = vld [vmem:[#allocation3 + $0x638] sm:$0xff]
    %v247 = vld [vmem:[#allocation3 + $0x640] sm:$0xff]
    %v248 = vld [vmem:[#allocation3 + $0x648] sm:$0xff]
    %v249 = vld [vmem:[#allocation3 + $0x650] sm:$0xff]
    %v250 = vld [vmem:[#allocation3 + $0x658] sm:$0xff]
    %v251 = vld [vmem:[#allocation3 + $0x660] sm:$0xff]
    %v252 = vld [vmem:[#allocation3 + $0x668] sm:$0xff]
    %v253 = vld [vmem:[#allocation3 + $0x670] sm:$0xff]
    %v254 = vld [vmem:[#allocation3 + $0x678] sm:$0xff]
    %v255 = vld [vmem:[#allocation3 + $0x680] sm:$0xff]
    %v256 = vld [vmem:[#allocation3 + $0x688] sm:$0xff]
    %v257 = vld [vmem:[#allocation3 + $0x690] sm:$0xff]
    %v258 = vld [vmem:[#allocation3 + $0x698] sm:$0xff]
    %v259 = vld [vmem:[#allocation3 + $0x6a0] sm:$0xff]
    %v260 = vld [vmem:[#allocation3 + $0x6a8] sm:$0xff]
    %v261 = vld [vmem:[#allocation3 + $0x6b0] sm:$0xff]
    %v262 = vld [vmem:[#allocation3 + $0x6b8] sm:$0xff]
    %v263 = vld [vmem:[#allocation3 + $0x6c0] sm:$0xff]
    %v264 = vld [vmem:[#allocation3 + $0x6c8] sm:$0xff]
    %v265 = vld [vmem:[#allocation3 + $0x6d0] sm:$0xff]
    %v266 = vld [vmem:[#allocation3 + $0x6d8] sm:$0xff]
    %v267 = vld [vmem:[#allocation3 + $0x6e0] sm:$0xff]
    %v268 = vld [vmem:[#allocation3 + $0x6e8] sm:$0xff]
    %v269 = vld [vmem:[#allocation3 + $0x6f0] sm:$0xff]
    %v270 = vld [vmem:[#allocation3 + $0x6f8] sm:$0xff]
    %v271 = vld [vmem:[#allocation3 + $0x700] sm:$0xff]
    %v272 = vld [vmem:[#allocation3 + $0x708] sm:$0xff]
    %v273 = vld [vmem:[#allocation3 + $0x710] sm:$0xff]
    %v274 = vld [vmem:[#allocation3 + $0x718] sm:$0xff]
    %v275 = vld [vmem:[#allocation3 + $0x720] sm:$0xff]
    %v276 = vld [vmem:[#allocation3 + $0x728] sm:$0xff]
    %v277 = vld [vmem:[#allocation3 + $0x730] sm:$0xff]
    %v278 = vld [vmem:[#allocation3 + $0x738] sm:$0xff]
    %v279 = vld [vmem:[#allocation3 + $0x740] sm:$0xff]
    %v280 = vld [vmem:[#allocation3 + $0x748] sm:$0xff]
    %v281 = vld [vmem:[#allocation3 + $0x750] sm:$0xff]
    %v282 = vld [vmem:[#allocation3 + $0x758] sm:$0xff]
    %v283 = vld [vmem:[#allocation3 + $0x760] sm:$0xff]
    %v284 = vld [vmem:[#allocation3 + $0x768] sm:$0xff]
    %v285 = vld [vmem:[#allocation3 + $0x770] sm:$0xff]
    %v286 = vld [vmem:[#allocation3 + $0x778] sm:$0xff]
    %v287 = vld [vmem:[#allocation3 + $0x780] sm:$0xff]
    %v288 = vld [vmem:[#allocation3 + $0x788] sm:$0xff]
    %v289 = vld [vmem:[#allocation3 + $0x790] sm:$0xff]
    %v290 = vld [vmem:[#allocation3 + $0x798] sm:$0xff]
    %v291 = vld [vmem:[#allocation3 + $0x7a0] sm:$0xff]
    %v292 = vld [vmem:[#allocation3 + $0x7a8] sm:$0xff]
    %v293 = vld [vmem:[#allocation3 + $0x7b0] sm:$0xff]
    %v294 = vld [vmem:[#allocation3 + $0x7b8] sm:$0xff]
    %v295 = vld [vmem:[#allocation3 + $0x7c0] sm:$0xff]
    %v296 = vld [vmem:[#allocation3 + $0x7c8] sm:$0xff]
    %v297 = vld [vmem:[#allocation3 + $0x7d0] sm:$0xff]
    %v298 = vld [vmem:[#allocation3 + $0x7d8] sm:$0xff]
    %v299 = vld [vmem:[#allocation3 + $0x7e0] sm:$0xff]
    %v300 = vld [vmem:[#allocation3 + $0x7e8] sm:$0xff]
    %v301 = vld [vmem:[#allocation3 + $0x7f0] sm:$0xff]
    %v302 = vld [vmem:[#allocation3 + $0x7f8] sm:$0xff]
    %v303 = vld [vmem:[#allocation6] sm:$0xff]
    %v304 = vld [vmem:[#allocation6 + $0x8] sm:$0xff]
    %v305 = vld [vmem:[#allocation6 + $0x10] sm:$0xff]
    %v306 = vld [vmem:[#allocation6 + $0x18] sm:$0xff]
    %v307 = vld [vmem:[#allocation6 + $0x20] sm:$0xff]
    %v308 = vld [vmem:[#allocation6 + $0x28] sm:$0xff]
    %v309 = vld [vmem:[#allocation6 + $0x30] sm:$0xff]
    %v310 = vld [vmem:[#allocation6 + $0x38] sm:$0xff]
    %v311 = vld [vmem:[#allocation6 + $0x40] sm:$0xff]
    %v312 = vld [vmem:[#allocation6 + $0x48] sm:$0xff]
    %v313 = vld [vmem:[#allocation6 + $0x50] sm:$0xff]
    %v314 = vld [vmem:[#allocation6 + $0x58] sm:$0xff]
    %v315 = vld [vmem:[#allocation6 + $0x60] sm:$0xff]
    %v316 = vld [vmem:[#allocation6 + $0x68] sm:$0xff]
    %v317 = vld [vmem:[#allocation6 + $0x70] sm:$0xff]
    %v318 = vld [vmem:[#allocation6 + $0x78] sm:$0xff]
    %v319 = vld [vmem:[#allocation6 + $0x80] sm:$0xff]
    %v320 = vld [vmem:[#allocation6 + $0x88] sm:$0xff]
    %v321 = vld [vmem:[#allocation6 + $0x90] sm:$0xff]
    %v322 = vld [vmem:[#allocation6 + $0x98] sm:$0xff]
    %v323 = vld [vmem:[#allocation6 + $0xa0] sm:$0xff]
    %v324 = vld [vmem:[#allocation6 + $0xa8] sm:$0xff]
    %v325 = vld [vmem:[#allocation6 + $0xb0] sm:$0xff]
    %v326 = vld [vmem:[#allocation6 + $0xb8] sm:$0xff]
    %v327 = vld [vmem:[#allocation6 + $0xc0] sm:$0xff]
    %v328 = vld [vmem:[#allocation6 + $0xc8] sm:$0xff]
    %v329 = vld [vmem:[#allocation6 + $0xd0] sm:$0xff]
    %v330 = vld [vmem:[#allocation6 + $0xd8] sm:$0xff]
    %v331 = vld [vmem:[#allocation6 + $0xe0] sm:$0xff]
    %v332 = vld [vmem:[#allocation6 + $0xe8] sm:$0xff]
    %v333 = vld [vmem:[#allocation6 + $0xf0] sm:$0xff]
    %v334 = vld [vmem:[#allocation6 + $0xf8] sm:$0xff]
    %v335 = vld [vmem:[#allocation6 + $0x100] sm:$0xff]
    %v336 = vld [vmem:[#allocation6 + $0x108] sm:$0xff]
    %v337 = vld [vmem:[#allocation6 + $0x110] sm:$0xff]
    %v338 = vld [vmem:[#allocation6 + $0x118] sm:$0xff]
    %v339 = vld [vmem:[#allocation6 + $0x120] sm:$0xff]
    %v340 = vld [vmem:[#allocation6 + $0x128] sm:$0xff]
    %v341 = vld [vmem:[#allocation6 + $0x130] sm:$0xff]
    %v342 = vld [vmem:[#allocation6 + $0x138] sm:$0xff]
    %v343 = vld [vmem:[#allocation6 + $0x140] sm:$0xff]
    %v344 = vld [vmem:[#allocation6 + $0x148] sm:$0xff]
    %v345 = vld [vmem:[#allocation6 + $0x150] sm:$0xff]
    %v346 = vld [vmem:[#allocation6 + $0x158] sm:$0xff]
    %v347 = vld [vmem:[#allocation6 + $0x160] sm:$0xff]
    %v348 = vld [vmem:[#allocation6 + $0x168] sm:$0xff]
    %v349 = vld [vmem:[#allocation6 + $0x170] sm:$0xff]
    %v350 = vld [vmem:[#allocation6 + $0x178] sm:$0xff]
    %v351 = vld [vmem:[#allocation6 + $0x180] sm:$0xff]
    %v352 = vld [vmem:[#allocation6 + $0x188] sm:$0xff]
    %v353 = vld [vmem:[#allocation6 + $0x190] sm:$0xff]
    %v354 = vld [vmem:[#allocation6 + $0x198] sm:$0xff]
    %v355 = vld [vmem:[#allocation6 + $0x1a0] sm:$0xff]
    %v356 = vld [vmem:[#allocation6 + $0x1a8] sm:$0xff]
    %v357 = vld [vmem:[#allocation6 + $0x1b0] sm:$0xff]
    %v358 = vld [vmem:[#allocation6 + $0x1b8] sm:$0xff]
    %v359 = vld [vmem:[#allocation6 + $0x1c0] sm:$0xff]
    %v360 = vld [vmem:[#allocation6 + $0x1c8] sm:$0xff]
    %v361 = vld [vmem:[#allocation6 + $0x1d0] sm:$0xff]
    %v362 = vld [vmem:[#allocation6 + $0x1d8] sm:$0xff]
    %v363 = vld [vmem:[#allocation6 + $0x1e0] sm:$0xff]
    %v364 = vld [vmem:[#allocation6 + $0x1e8] sm:$0xff]
    %v365 = vld [vmem:[#allocation6 + $0x1f0] sm:$0xff]
    %v366 = vld [vmem:[#allocation6 + $0x1f8] sm:$0xff]
    %v367 = vld [vmem:[#allocation6 + $0x200] sm:$0xff]
    %v368 = vld [vmem:[#allocation6 + $0x208] sm:$0xff]
    %v369 = vld [vmem:[#allocation6 + $0x210] sm:$0xff]
    %v370 = vld [vmem:[#allocation6 + $0x218] sm:$0xff]
    %v371 = vld [vmem:[#allocation6 + $0x220] sm:$0xff]
    %v372 = vld [vmem:[#allocation6 + $0x228] sm:$0xff]
    %v373 = vld [vmem:[#allocation6 + $0x230] sm:$0xff]
    %v374 = vld [vmem:[#allocation6 + $0x238] sm:$0xff]
    %v375 = vld [vmem:[#allocation6 + $0x240] sm:$0xff]
    %v376 = vld [vmem:[#allocation6 + $0x248] sm:$0xff]
    %v377 = vld [vmem:[#allocation6 + $0x250] sm:$0xff]
    %v378 = vld [vmem:[#allocation6 + $0x258] sm:$0xff]
    %v379 = vld [vmem:[#allocation6 + $0x260] sm:$0xff]
    %v380 = vld [vmem:[#allocation6 + $0x268] sm:$0xff]
    %v381 = vld [vmem:[#allocation6 + $0x270] sm:$0xff]
    %v382 = vld [vmem:[#allocation6 + $0x278] sm:$0xff]
    %v383 = vld [vmem:[#allocation6 + $0x280] sm:$0xff]
    %v384 = vld [vmem:[#allocation6 + $0x288] sm:$0xff]
    %v385 = vld [vmem:[#allocation6 + $0x290] sm:$0xff]
    %v386 = vld [vmem:[#allocation6 + $0x298] sm:$0xff]
    %v387 = vld [vmem:[#allocation6 + $0x2a0] sm:$0xff]
    %v388 = vld [vmem:[#allocation6 + $0x2a8] sm:$0xff]
    %v389 = vld [vmem:[#allocation6 + $0x2b0] sm:$0xff]
    %v390 = vld [vmem:[#allocation6 + $0x2b8] sm:$0xff]
    %v391 = vld [vmem:[#allocation6 + $0x2c0] sm:$0xff]
    %v392 = vld [vmem:[#allocation6 + $0x2c8] sm:$0xff]
    %v393 = vld [vmem:[#allocation6 + $0x2d0] sm:$0xff]
    %v394 = vld [vmem:[#allocation6 + $0x2d8] sm:$0xff]
    %v395 = vld [vmem:[#allocation6 + $0x2e0] sm:$0xff]
    %v396 = vld [vmem:[#allocation6 + $0x2e8] sm:$0xff]
    %v397 = vld [vmem:[#allocation6 + $0x2f0] sm:$0xff]
    %v398 = vld [vmem:[#allocation6 + $0x2f8] sm:$0xff]
    %v399 = vld [vmem:[#allocation6 + $0x300] sm:$0xff]
    %v400 = vld [vmem:[#allocation6 + $0x308] sm:$0xff]
    %v401 = vld [vmem:[#allocation6 + $0x310] sm:$0xff]
    %v402 = vld [vmem:[#allocation6 + $0x318] sm:$0xff]
    %v403 = vld [vmem:[#allocation6 + $0x320] sm:$0xff]
    %v404 = vld [vmem:[#allocation6 + $0x328] sm:$0xff]
    %v405 = vld [vmem:[#allocation6 + $0x330] sm:$0xff]
    %v406 = vld [vmem:[#allocation6 + $0x338] sm:$0xff]
    %v407 = vld [vmem:[#allocation6 + $0x340] sm:$0xff]
    %v408 = vld [vmem:[#allocation6 + $0x348] sm:$0xff]
    %v409 = vld [vmem:[#allocation6 + $0x350] sm:$0xff]
    %v410 = vld [vmem:[#allocation6 + $0x358] sm:$0xff]
    %v411 = vld [vmem:[#allocation6 + $0x360] sm:$0xff]
    %v412 = vld [vmem:[#allocation6 + $0x368] sm:$0xff]
    %v413 = vld [vmem:[#allocation6 + $0x370] sm:$0xff]
    %v414 = vld [vmem:[#allocation6 + $0x378] sm:$0xff]
    %v415 = vld [vmem:[#allocation6 + $0x380] sm:$0xff]
    %v416 = vld [vmem:[#allocation6 + $0x388] sm:$0xff]
    %v417 = vld [vmem:[#allocation6 + $0x390] sm:$0xff]
    %v418 = vld [vmem:[#allocation6 + $0x398] sm:$0xff]
    %v419 = vld [vmem:[#allocation6 + $0x3a0] sm:$0xff]
    %v420 = vld [vmem:[#allocation6 + $0x3a8] sm:$0xff]
    %v421 = vld [vmem:[#allocation6 + $0x3b0] sm:$0xff]
    %v422 = vld [vmem:[#allocation6 + $0x3b8] sm:$0xff]
    %v423 = vld [vmem:[#allocation6 + $0x3c0] sm:$0xff]
    %v424 = vld [vmem:[#allocation6 + $0x3c8] sm:$0xff]
    %v425 = vld [vmem:[#allocation6 + $0x3d0] sm:$0xff]
    %v426 = vld [vmem:[#allocation6 + $0x3d8] sm:$0xff]
    %v427 = vld [vmem:[#allocation6 + $0x3e0] sm:$0xff]
    %v428 = vld [vmem:[#allocation6 + $0x3e8] sm:$0xff]
    %v429 = vld [vmem:[#allocation6 + $0x3f0] sm:$0xff]
    %v430 = vld [vmem:[#allocation6 + $0x3f8] sm:$0xff]
    %v431 = vld [vmem:[#allocation6 + $0x400] sm:$0xff]
    %v432 = vld [vmem:[#allocation6 + $0x408] sm:$0xff]
    %v433 = vld [vmem:[#allocation6 + $0x410] sm:$0xff]
    %v434 = vld [vmem:[#allocation6 + $0x418] sm:$0xff]
    %v435 = vld [vmem:[#allocation6 + $0x420] sm:$0xff]
    %v436 = vld [vmem:[#allocation6 + $0x428] sm:$0xff]
    %v437 = vld [vmem:[#allocation6 + $0x430] sm:$0xff]
    %v438 = vld [vmem:[#allocation6 + $0x438] sm:$0xff]
    %v439 = vld [vmem:[#allocation6 + $0x440] sm:$0xff]
    %v440 = vld [vmem:[#allocation6 + $0x448] sm:$0xff]
    %v441 = vld [vmem:[#allocation6 + $0x450] sm:$0xff]
    %v442 = vld [vmem:[#allocation6 + $0x458] sm:$0xff]
    %v443 = vld [vmem:[#allocation6 + $0x460] sm:$0xff]
    %v444 = vld [vmem:[#allocation6 + $0x468] sm:$0xff]
    %v445 = vld [vmem:[#allocation6 + $0x470] sm:$0xff]
    %v446 = vld [vmem:[#allocation6 + $0x478] sm:$0xff]
    %v447 = vld [vmem:[#allocation6 + $0x480] sm:$0xff]
    %v448 = vld [vmem:[#allocation6 + $0x488] sm:$0xff]
    %v449 = vld [vmem:[#allocation6 + $0x490] sm:$0xff]
    %v450 = vld [vmem:[#allocation6 + $0x498] sm:$0xff]
    %v451 = vld [vmem:[#allocation6 + $0x4a0] sm:$0xff]
    %v452 = vld [vmem:[#allocation6 + $0x4a8] sm:$0xff]
    %v453 = vld [vmem:[#allocation6 + $0x4b0] sm:$0xff]
    %v454 = vld [vmem:[#allocation6 + $0x4b8] sm:$0xff]
    %v455 = vld [vmem:[#allocation6 + $0x4c0] sm:$0xff]
    %v456 = vld [vmem:[#allocation6 + $0x4c8] sm:$0xff]
    %v457 = vld [vmem:[#allocation6 + $0x4d0] sm:$0xff]
    %v458 = vld [vmem:[#allocation6 + $0x4d8] sm:$0xff]
    %v459 = vld [vmem:[#allocation6 + $0x4e0] sm:$0xff]
    %v460 = vld [vmem:[#allocation6 + $0x4e8] sm:$0xff]
    %v461 = vld [vmem:[#allocation6 + $0x4f0] sm:$0xff]
    %v462 = vld [vmem:[#allocation6 + $0x4f8] sm:$0xff]
    %v463 = vld [vmem:[#allocation6 + $0x500] sm:$0xff]
    %v464 = vld [vmem:[#allocation6 + $0x508] sm:$0xff]
    %v465 = vld [vmem:[#allocation6 + $0x510] sm:$0xff]
    %v466 = vld [vmem:[#allocation6 + $0x518] sm:$0xff]
    %v467 = vld [vmem:[#allocation6 + $0x520] sm:$0xff]
    %v468 = vld [vmem:[#allocation6 + $0x528] sm:$0xff]
    %v469 = vld [vmem:[#allocation6 + $0x530] sm:$0xff]
    %v470 = vld [vmem:[#allocation6 + $0x538] sm:$0xff]
    %v471 = vld [vmem:[#allocation6 + $0x540] sm:$0xff]
    %v472 = vld [vmem:[#allocation6 + $0x548] sm:$0xff]
    %v473 = vld [vmem:[#allocation6 + $0x550] sm:$0xff]
    %v474 = vld [vmem:[#allocation6 + $0x558] sm:$0xff]
    %v475 = vld [vmem:[#allocation6 + $0x560] sm:$0xff]
    %v476 = vld [vmem:[#allocation6 + $0x568] sm:$0xff]
    %v477 = vld [vmem:[#allocation6 + $0x570] sm:$0xff]
    %v478 = vld [vmem:[#allocation6 + $0x578] sm:$0xff]
    %v479 = vld [vmem:[#allocation6 + $0x580] sm:$0xff]
    %v480 = vld [vmem:[#allocation6 + $0x588] sm:$0xff]
    %v481 = vld [vmem:[#allocation6 + $0x590] sm:$0xff]
    %v482 = vld [vmem:[#allocation6 + $0x598] sm:$0xff]
    %v483 = vld [vmem:[#allocation6 + $0x5a0] sm:$0xff]
    %v484 = vld [vmem:[#allocation6 + $0x5a8] sm:$0xff]
    %v485 = vld [vmem:[#allocation6 + $0x5b0] sm:$0xff]
    %v486 = vld [vmem:[#allocation6 + $0x5b8] sm:$0xff]
    %v487 = vld [vmem:[#allocation6 + $0x5c0] sm:$0xff]
    %v488 = vld [vmem:[#allocation6 + $0x5c8] sm:$0xff]
    %v489 = vld [vmem:[#allocation6 + $0x5d0] sm:$0xff]
    %v490 = vld [vmem:[#allocation6 + $0x5d8] sm:$0xff]
    %v491 = vld [vmem:[#allocation6 + $0x5e0] sm:$0xff]
    %v492 = vld [vmem:[#allocation6 + $0x5e8] sm:$0xff]
    %v493 = vld [vmem:[#allocation6 + $0x5f0] sm:$0xff]
    %v494 = vld [vmem:[#allocation6 + $0x5f8] sm:$0xff]
    %v495 = vld [vmem:[#allocation6 + $0x600] sm:$0xff]
    %v496 = vld [vmem:[#allocation6 + $0x608] sm:$0xff]
    %v497 = vld [vmem:[#allocation6 + $0x610] sm:$0xff]
    %v498 = vld [vmem:[#allocation6 + $0x618] sm:$0xff]
    %v499 = vld [vmem:[#allocation6 + $0x620] sm:$0xff]
    %v500 = vld [vmem:[#allocation6 + $0x628] sm:$0xff]
    %v501 = vld [vmem:[#allocation6 + $0x630] sm:$0xff]
    %v502 = vld [vmem:[#allocation6 + $0x638] sm:$0xff]
    %v503 = vld [vmem:[#allocation6 + $0x640] sm:$0xff]
    %v504 = vld [vmem:[#allocation6 + $0x648] sm:$0xff]
    %v505 = vld [vmem:[#allocation6 + $0x650] sm:$0xff]
    %v506 = vld [vmem:[#allocation6 + $0x658] sm:$0xff]
    %v507 = vld [vmem:[#allocation6 + $0x660] sm:$0xff]
    %v508 = vld [vmem:[#allocation6 + $0x668] sm:$0xff]
    %v509 = vld [vmem:[#allocation6 + $0x670] sm:$0xff]
    %v510 = vld [vmem:[#allocation6 + $0x678] sm:$0xff]
    %v511 = vld [vmem:[#allocation6 + $0x680] sm:$0xff]
    %v512 = vld [vmem:[#allocation6 + $0x688] sm:$0xff]
    %v513 = vld [vmem:[#allocation6 + $0x690] sm:$0xff]
    %v514 = vld [vmem:[#allocation6 + $0x698] sm:$0xff]
    %v515 = vld [vmem:[#allocation6 + $0x6a0] sm:$0xff]
    %v516 = vld [vmem:[#allocation6 + $0x6a8] sm:$0xff]
    %v517 = vld [vmem:[#allocation6 + $0x6b0] sm:$0xff]
    %v518 = vld [vmem:[#allocation6 + $0x6b8] sm:$0xff]
    %v519 = vld [vmem:[#allocation6 + $0x6c0] sm:$0xff]
    %v520 = vld [vmem:[#allocation6 + $0x6c8] sm:$0xff]
    %v521 = vld [vmem:[#allocation6 + $0x6d0] sm:$0xff]
    %v522 = vld [vmem:[#allocation6 + $0x6d8] sm:$0xff]
    %v523 = vld [vmem:[#allocation6 + $0x6e0] sm:$0xff]
    %v524 = vld [vmem:[#allocation6 + $0x6e8] sm:$0xff]
    %v525 = vld [vmem:[#allocation6 + $0x6f0] sm:$0xff]
    %v526 = vld [vmem:[#allocation6 + $0x6f8] sm:$0xff]
    %v527 = vld [vmem:[#allocation6 + $0x700] sm:$0xff]
    %v528 = vld [vmem:[#allocation6 + $0x708] sm:$0xff]
    %v529 = vld [vmem:[#allocation6 + $0x710] sm:$0xff]
    %v530 = vld [vmem:[#allocation6 + $0x718] sm:$0xff]
    %v531 = vld [vmem:[#allocation6 + $0x720] sm:$0xff]
    %v532 = vld [vmem:[#allocation6 + $0x728] sm:$0xff]
    %v533 = vld [vmem:[#allocation6 + $0x730] sm:$0xff]
    %v534 = vld [vmem:[#allocation6 + $0x738] sm:$0xff]
    %v535 = vld [vmem:[#allocation6 + $0x740] sm:$0xff]
    %v536 = vld [vmem:[#allocation6 + $0x748] sm:$0xff]
    %v537 = vld [vmem:[#allocation6 + $0x750] sm:$0xff]
    %v538 = vld [vmem:[#allocation6 + $0x758] sm:$0xff]
    %v539 = vld [vmem:[#allocation6 + $0x760] sm:$0xff]
    %v540 = vld [vmem:[#allocation6 + $0x768] sm:$0xff]
    %v541 = vld [vmem:[#allocation6 + $0x770] sm:$0xff]
    %v542 = vld [vmem:[#allocation6 + $0x778] sm:$0xff]
    %v543 = vld [vmem:[#allocation6 + $0x780] sm:$0xff]
    %v544 = vld [vmem:[#allocation6 + $0x788] sm:$0xff]
    %v545 = vld [vmem:[#allocation6 + $0x790] sm:$0xff]
    %v546 = vld [vmem:[#allocation6 + $0x798] sm:$0xff]
    %v547 = vld [vmem:[#allocation6 + $0x7a0] sm:$0xff]
    %v548 = vld [vmem:[#allocation6 + $0x7a8] sm:$0xff]
    %v549 = vld [vmem:[#allocation6 + $0x7b0] sm:$0xff]
    %v550 = vld [vmem:[#allocation6 + $0x7b8] sm:$0xff]
    %v551 = vld [vmem:[#allocation6 + $0x7c0] sm:$0xff]
    %v552 = vld [vmem:[#allocation6 + $0x7c8] sm:$0xff]
    %v553 = vld [vmem:[#allocation6 + $0x7d0] sm:$0xff]
    %v554 = vld [vmem:[#allocation6 + $0x7d8] sm:$0xff]
    %v555 = vld [vmem:[#allocation6 + $0x7e0] sm:$0xff]
    %v556 = vld [vmem:[#allocation6 + $0x7e8] sm:$0xff]
    %v557 = vld [vmem:[#allocation6 + $0x7f0] sm:$0xff]
    %v558 = vld [vmem:[#allocation6 + $0x7f8] sm:$0xff]
    %s559 = sld [smem:[#allocation2]]
    %v560 = vmul.f32 %v47, %v47
    %v561 = vmul.f32 %v48, %v48
    %v562 = vmul.f32 %v49, %v49
    %v563 = vmul.f32 %v50, %v50
    %v564 = vmul.f32 %v51, %v51
    %v565 = vmul.f32 %v52, %v52
    %v566 = vmul.f32 %v53, %v53
    %v567 = vmul.f32 %v54, %v54
    %v568 = vmul.f32 %v55, %v55
    %v569 = vmul.f32 %v56, %v56
    %v570 = vmul.f32 %v57, %v57
    %v571 = vmul.f32 %v58, %v58
    %v572 = vmul.f32 %v59, %v59
    %v573 = vmul.f32 %v60, %v60
    %v574 = vmul.f32 %v61, %v61
    %v575 = vmul.f32 %v62, %v62
    %v576 = vmul.f32 %v63, %v63
    %v577 = vmul.f32 %v64, %v64
    %v578 = vmul.f32 %v65, %v65
    %v579 = vmul.f32 %v66, %v66
    %v580 = vmul.f32 %v67, %v67
    %v581 = vmul.f32 %v68, %v68
    %v582 = vmul.f32 %v69, %v69
    %v583 = vmul.f32 %v70, %v70
    %v584 = vmul.f32 %v71, %v71
    %v585 = vmul.f32 %v72, %v72
    %v586 = vmul.f32 %v73, %v73
    %v587 = vmul.f32 %v74, %v74
    %v588 = vmul.f32 %v75, %v75
    %v589 = vmul.f32 %v76, %v76
    %v590 = vmul.f32 %v77, %v77
    %v591 = vmul.f32 %v78, %v78
    %v592 = vmul.f32 %v79, %v79
    %v593 = vmul.f32 %v80, %v80
    %v594 = vmul.f32 %v81, %v81
    %v595 = vmul.f32 %v82, %v82
    %v596 = vmul.f32 %v83, %v83
    %v597 = vmul.f32 %v84, %v84
    %v598 = vmul.f32 %v85, %v85
    %v599 = vmul.f32 %v86, %v86
    %v600 = vmul.f32 %v87, %v87
    %v601 = vmul.f32 %v88, %v88
    %v602 = vmul.f32 %v89, %v89
    %v603 = vmul.f32 %v90, %v90
    %v604 = vmul.f32 %v91, %v91
    %v605 = vmul.f32 %v92, %v92
    %v606 = vmul.f32 %v93, %v93
    %v607 = vmul.f32 %v94, %v94
    %v608 = vmul.f32 %v95, %v95
    %v609 = vmul.f32 %v96, %v96
    %v610 = vmul.f32 %v97, %v97
    %v611 = vmul.f32 %v98, %v98
    %v612 = vmul.f32 %v99, %v99
    %v613 = vmul.f32 %v100, %v100
    %v614 = vmul.f32 %v101, %v101
    %v615 = vmul.f32 %v102, %v102
    %v616 = vmul.f32 %v103, %v103
    %v617 = vmul.f32 %v104, %v104
    %v618 = vmul.f32 %v105, %v105
    %v619 = vmul.f32 %v106, %v106
    %v620 = vmul.f32 %v107, %v107
    %v621 = vmul.f32 %v108, %v108
    %v622 = vmul.f32 %v109, %v109
    %v623 = vmul.f32 %v110, %v110
    %v624 = vmul.f32 %v111, %v111
    %v625 = vmul.f32 %v112, %v112
    %v626 = vmul.f32 %v113, %v113
    %v627 = vmul.f32 %v114, %v114
    %v628 = vmul.f32 %v115, %v115
    %v629 = vmul.f32 %v116, %v116
    %v630 = vmul.f32 %v117, %v117
    %v631 = vmul.f32 %v118, %v118
    %v632 = vmul.f32 %v119, %v119
    %v633 = vmul.f32 %v120, %v120
    %v634 = vmul.f32 %v121, %v121
    %v635 = vmul.f32 %v122, %v122
    %v636 = vmul.f32 %v123, %v123
    %v637 = vmul.f32 %v124, %v124
    %v638 = vmul.f32 %v125, %v125
    %v639 = vmul.f32 %v126, %v126
    %v640 = vmul.f32 %v127, %v127
    %v641 = vmul.f32 %v128, %v128
    %v642 = vmul.f32 %v129, %v129
    %v643 = vmul.f32 %v130, %v130
    %v644 = vmul.f32 %v131, %v131
    %v645 = vmul.f32 %v132, %v132
    %v646 = vmul.f32 %v133, %v133
    %v647 = vmul.f32 %v134, %v134
    %v648 = vmul.f32 %v135, %v135
    %v649 = vmul.f32 %v136, %v136
    %v650 = vmul.f32 %v137, %v137
    %v651 = vmul.f32 %v138, %v138
    %v652 = vmul.f32 %v139, %v139
    %v653 = vmul.f32 %v140, %v140
    %v654 = vmul.f32 %v141, %v141
    %v655 = vmul.f32 %v142, %v142
    %v656 = vmul.f32 %v143, %v143
    %v657 = vmul.f32 %v144, %v144
    %v658 = vmul.f32 %v145, %v145
    %v659 = vmul.f32 %v146, %v146
    %v660 = vmul.f32 %v147, %v147
    %v661 = vmul.f32 %v148, %v148
    %v662 = vmul.f32 %v149, %v149
    %v663 = vmul.f32 %v150, %v150
    %v664 = vmul.f32 %v151, %v151
    %v665 = vmul.f32 %v152, %v152
    %v666 = vmul.f32 %v153, %v153
    %v667 = vmul.f32 %v154, %v154
    %v668 = vmul.f32 %v155, %v155
    %v669 = vmul.f32 %v156, %v156
    %v670 = vmul.f32 %v157, %v157
    %v671 = vmul.f32 %v158, %v158
    %v672 = vmul.f32 %v159, %v159
    %v673 = vmul.f32 %v160, %v160
    %v674 = vmul.f32 %v161, %v161
    %v675 = vmul.f32 %v162, %v162
    %v676 = vmul.f32 %v163, %v163
    %v677 = vmul.f32 %v164, %v164
    %v678 = vmul.f32 %v165, %v165
    %v679 = vmul.f32 %v166, %v166
    %v680 = vmul.f32 %v167, %v167
    %v681 = vmul.f32 %v168, %v168
    %v682 = vmul.f32 %v169, %v169
    %v683 = vmul.f32 %v170, %v170
    %v684 = vmul.f32 %v171, %v171
    %v685 = vmul.f32 %v172, %v172
    %v686 = vmul.f32 %v173, %v173
    %v687 = vmul.f32 %v174, %v174
    %v688 = vmul.f32 %v175, %v175
    %v689 = vmul.f32 %v176, %v176
    %v690 = vmul.f32 %v177, %v177
    %v691 = vmul.f32 %v178, %v178
    %v692 = vmul.f32 %v179, %v179
    %v693 = vmul.f32 %v180, %v180
    %v694 = vmul.f32 %v181, %v181
    %v695 = vmul.f32 %v182, %v182
    %v696 = vmul.f32 %v183, %v183
    %v697 = vmul.f32 %v184, %v184
    %v698 = vmul.f32 %v185, %v185
    %v699 = vmul.f32 %v186, %v186
    %v700 = vmul.f32 %v187, %v187
    %v701 = vmul.f32 %v188, %v188
    %v702 = vmul.f32 %v189, %v189
    %v703 = vmul.f32 %v190, %v190
    %v704 = vmul.f32 %v191, %v191
    %v705 = vmul.f32 %v192, %v192
    %v706 = vmul.f32 %v193, %v193
    %v707 = vmul.f32 %v194, %v194
    %v708 = vmul.f32 %v195, %v195
    %v709 = vmul.f32 %v196, %v196
    %v710 = vmul.f32 %v197, %v197
    %v711 = vmul.f32 %v198, %v198
    %v712 = vmul.f32 %v199, %v199
    %v713 = vmul.f32 %v200, %v200
    %v714 = vmul.f32 %v201, %v201
    %v715 = vmul.f32 %v202, %v202
    %v716 = vmul.f32 %v203, %v203
    %v717 = vmul.f32 %v204, %v204
    %v718 = vmul.f32 %v205, %v205
    %v719 = vmul.f32 %v206, %v206
    %v720 = vmul.f32 %v207, %v207
    %v721 = vmul.f32 %v208, %v208
    %v722 = vmul.f32 %v209, %v209
    %v723 = vmul.f32 %v210, %v210
    %v724 = vmul.f32 %v211, %v211
    %v725 = vmul.f32 %v212, %v212
    %v726 = vmul.f32 %v213, %v213
    %v727 = vmul.f32 %v214, %v214
    %v728 = vmul.f32 %v215, %v215
    %v729 = vmul.f32 %v216, %v216
    %v730 = vmul.f32 %v217, %v217
    %v731 = vmul.f32 %v218, %v218
    %v732 = vmul.f32 %v219, %v219
    %v733 = vmul.f32 %v220, %v220
    %v734 = vmul.f32 %v221, %v221
    %v735 = vmul.f32 %v222, %v222
    %v736 = vmul.f32 %v223, %v223
    %v737 = vmul.f32 %v224, %v224
    %v738 = vmul.f32 %v225, %v225
    %v739 = vmul.f32 %v226, %v226
    %v740 = vmul.f32 %v227, %v227
    %v741 = vmul.f32 %v228, %v228
    %v742 = vmul.f32 %v229, %v229
    %v743 = vmul.f32 %v230, %v230
    %v744 = vmul.f32 %v231, %v231
    %v745 = vmul.f32 %v232, %v232
    %v746 = vmul.f32 %v233, %v233
    %v747 = vmul.f32 %v234, %v234
    %v748 = vmul.f32 %v235, %v235
    %v749 = vmul.f32 %v236, %v236
    %v750 = vmul.f32 %v237, %v237
    %v751 = vmul.f32 %v238, %v238
    %v752 = vmul.f32 %v239, %v239
    %v753 = vmul.f32 %v240, %v240
    %v754 = vmul.f32 %v241, %v241
    %v755 = vmul.f32 %v242, %v242
    %v756 = vmul.f32 %v243, %v243
    %v757 = vmul.f32 %v244, %v244
    %v758 = vmul.f32 %v245, %v245
    %v759 = vmul.f32 %v246, %v246
    %v760 = vmul.f32 %v247, %v247
    %v761 = vmul.f32 %v248, %v248
    %v762 = vmul.f32 %v249, %v249
    %v763 = vmul.f32 %v250, %v250
    %v764 = vmul.f32 %v251, %v251
    %v765 = vmul.f32 %v252, %v252
    %v766 = vmul.f32 %v253, %v253
    %v767 = vmul.f32 %v254, %v254
    %v768 = vmul.f32 %v255, %v255
    %v769 = vmul.f32 %v256, %v256
    %v770 = vmul.f32 %v257, %v257
    %v771 = vmul.f32 %v258, %v258
    %v772 = vmul.f32 %v259, %v259
    %v773 = vmul.f32 %v260, %v260
    %v774 = vmul.f32 %v261, %v261
    %v775 = vmul.f32 %v262, %v262
    %v776 = vmul.f32 %v263, %v263
    %v777 = vmul.f32 %v264, %v264
    %v778 = vmul.f32 %v265, %v265
    %v779 = vmul.f32 %v266, %v266
    %v780 = vmul.f32 %v267, %v267
    %v781 = vmul.f32 %v268, %v268
    %v782 = vmul.f32 %v269, %v269
    %v783 = vmul.f32 %v270, %v270
    %v784 = vmul.f32 %v271, %v271
    %v785 = vmul.f32 %v272, %v272
    %v786 = vmul.f32 %v273, %v273
    %v787 = vmul.f32 %v274, %v274
    %v788 = vmul.f32 %v275, %v275
    %v789 = vmul.f32 %v276, %v276
    %v790 = vmul.f32 %v277, %v277
    %v791 = vmul.f32 %v278, %v278
    %v792 = vmul.f32 %v279, %v279
    %v793 = vmul.f32 %v280, %v280
    %v794 = vmul.f32 %v281, %v281
    %v795 = vmul.f32 %v282, %v282
    %v796 = vmul.f32 %v283, %v283
    %v797 = vmul.f32 %v284, %v284
    %v798 = vmul.f32 %v285, %v285
    %v799 = vmul.f32 %v286, %v286
    %v800 = vmul.f32 %v287, %v287
    %v801 = vmul.f32 %v288, %v288
    %v802 = vmul.f32 %v289, %v289
    %v803 = vmul.f32 %v290, %v290
    %v804 = vmul.f32 %v291, %v291
    %v805 = vmul.f32 %v292, %v292
    %v806 = vmul.f32 %v293, %v293
    %v807 = vmul.f32 %v294, %v294
    %v808 = vmul.f32 %v295, %v295
    %v809 = vmul.f32 %v296, %v296
    %v810 = vmul.f32 %v297, %v297
    %v811 = vmul.f32 %v298, %v298
    %v812 = vmul.f32 %v299, %v299
    %v813 = vmul.f32 %v300, %v300
    %v814 = vmul.f32 %v301, %v301
    %v815 = vmul.f32 %v302, %v302
    %v816 = vmul.f32 %v303, %v303
    %v817 = vmul.f32 %v304, %v304
    %v818 = vmul.f32 %v305, %v305
    %v819 = vmul.f32 %v306, %v306
    %v820 = vmul.f32 %v307, %v307
    %v821 = vmul.f32 %v308, %v308
    %v822 = vmul.f32 %v309, %v309
    %v823 = vmul.f32 %v310, %v310
    %v824 = vmul.f32 %v311, %v311
    %v825 = vmul.f32 %v312, %v312
    %v826 = vmul.f32 %v313, %v313
    %v827 = vmul.f32 %v314, %v314
    %v828 = vmul.f32 %v315, %v315
    %v829 = vmul.f32 %v316, %v316
    %v830 = vmul.f32 %v317, %v317
    %v831 = vmul.f32 %v318, %v318
    %v832 = vmul.f32 %v319, %v319
    %v833 = vmul.f32 %v320, %v320
    %v834 = vmul.f32 %v321, %v321
    %v835 = vmul.f32 %v322, %v322
    %v836 = vmul.f32 %v323, %v323
    %v837 = vmul.f32 %v324, %v324
    %v838 = vmul.f32 %v325, %v325
    %v839 = vmul.f32 %v326, %v326
    %v840 = vmul.f32 %v327, %v327
    %v841 = vmul.f32 %v328, %v328
    %v842 = vmul.f32 %v329, %v329
    %v843 = vmul.f32 %v330, %v330
    %v844 = vmul.f32 %v331, %v331
    %v845 = vmul.f32 %v332, %v332
    %v846 = vmul.f32 %v333, %v333
    %v847 = vmul.f32 %v334, %v334
    %v848 = vmul.f32 %v335, %v335
    %v849 = vmul.f32 %v336, %v336
    %v850 = vmul.f32 %v337, %v337
    %v851 = vmul.f32 %v338, %v338
    %v852 = vmul.f32 %v339, %v339
    %v853 = vmul.f32 %v340, %v340
    %v854 = vmul.f32 %v341, %v341
    %v855 = vmul.f32 %v342, %v342
    %v856 = vmul.f32 %v343, %v343
    %v857 = vmul.f32 %v344, %v344
    %v858 = vmul.f32 %v345, %v345
    %v859 = vmul.f32 %v346, %v346
    %v860 = vmul.f32 %v347, %v347
    %v861 = vmul.f32 %v348, %v348
    %v862 = vmul.f32 %v349, %v349
    %v863 = vmul.f32 %v350, %v350
    %v864 = vmul.f32 %v351, %v351
    %v865 = vmul.f32 %v352, %v352
    %v866 = vmul.f32 %v353, %v353
    %v867 = vmul.f32 %v354, %v354
    %v868 = vmul.f32 %v355, %v355
    %v869 = vmul.f32 %v356, %v356
    %v870 = vmul.f32 %v357, %v357
    %v871 = vmul.f32 %v358, %v358
    %v872 = vmul.f32 %v359, %v359
    %v873 = vmul.f32 %v360, %v360
    %v874 = vmul.f32 %v361, %v361
    %v875 = vmul.f32 %v362, %v362
    %v876 = vmul.f32 %v363, %v363
    %v877 = vmul.f32 %v364, %v364
    %v878 = vmul.f32 %v365, %v365
    %v879 = vmul.f32 %v366, %v366
    %v880 = vmul.f32 %v367, %v367
    %v881 = vmul.f32 %v368, %v368
    %v882 = vmul.f32 %v369, %v369
    %v883 = vmul.f32 %v370, %v370
    %v884 = vmul.f32 %v371, %v371
    %v885 = vmul.f32 %v372, %v372
    %v886 = vmul.f32 %v373, %v373
    %v887 = vmul.f32 %v374, %v374
    %v888 = vmul.f32 %v375, %v375
    %v889 = vmul.f32 %v376, %v376
    %v890 = vmul.f32 %v377, %v377
    %v891 = vmul.f32 %v378, %v378
    %v892 = vmul.f32 %v379, %v379
    %v893 = vmul.f32 %v380, %v380
    %v894 = vmul.f32 %v381, %v381
    %v895 = vmul.f32 %v382, %v382
    %v896 = vmul.f32 %v383, %v383
    %v897 = vmul.f32 %v384, %v384
    %v898 = vmul.f32 %v385, %v385
    %v899 = vmul.f32 %v386, %v386
    %v900 = vmul.f32 %v387, %v387
    %v901 = vmul.f32 %v388, %v388
    %v902 = vmul.f32 %v389, %v389
    %v903 = vmul.f32 %v390, %v390
    %v904 = vmul.f32 %v391, %v391
    %v905 = vmul.f32 %v392, %v392
    %v906 = vmul.f32 %v393, %v393
    %v907 = vmul.f32 %v394, %v394
    %v908 = vmul.f32 %v395, %v395
    %v909 = vmul.f32 %v396, %v396
    %v910 = vmul.f32 %v397, %v397
    %v911 = vmul.f32 %v398, %v398
    %v912 = vmul.f32 %v399, %v399
    %v913 = vmul.f32 %v400, %v400
    %v914 = vmul.f32 %v401, %v401
    %v915 = vmul.f32 %v402, %v402
    %v916 = vmul.f32 %v403, %v403
    %v917 = vmul.f32 %v404, %v404
    %v918 = vmul.f32 %v405, %v405
    %v919 = vmul.f32 %v406, %v406
    %v920 = vmul.f32 %v407, %v407
    %v921 = vmul.f32 %v408, %v408
    %v922 = vmul.f32 %v409, %v409
    %v923 = vmul.f32 %v410, %v410
    %v924 = vmul.f32 %v411, %v411
    %v925 = vmul.f32 %v412, %v412
    %v926 = vmul.f32 %v413, %v413
    %v927 = vmul.f32 %v414, %v414
    %v928 = vmul.f32 %v415, %v415
    %v929 = vmul.f32 %v416, %v416
    %v930 = vmul.f32 %v417, %v417
    %v931 = vmul.f32 %v418, %v418
    %v932 = vmul.f32 %v419, %v419
    %v933 = vmul.f32 %v420, %v420
    %v934 = vmul.f32 %v421, %v421
    %v935 = vmul.f32 %v422, %v422
    %v936 = vmul.f32 %v423, %v423
    %v937 = vmul.f32 %v424, %v424
    %v938 = vmul.f32 %v425, %v425
    %v939 = vmul.f32 %v426, %v426
    %v940 = vmul.f32 %v427, %v427
    %v941 = vmul.f32 %v428, %v428
    %v942 = vmul.f32 %v429, %v429
    %v943 = vmul.f32 %v430, %v430
    %v944 = vmul.f32 %v431, %v431
    %v945 = vmul.f32 %v432, %v432
    %v946 = vmul.f32 %v433, %v433
    %v947 = vmul.f32 %v434, %v434
    %v948 = vmul.f32 %v435, %v435
    %v949 = vmul.f32 %v436, %v436
    %v950 = vmul.f32 %v437, %v437
    %v951 = vmul.f32 %v438, %v438
    %v952 = vmul.f32 %v439, %v439
    %v953 = vmul.f32 %v440, %v440
    %v954 = vmul.f32 %v441, %v441
    %v955 = vmul.f32 %v442, %v442
    %v956 = vmul.f32 %v443, %v443
    %v957 = vmul.f32 %v444, %v444
    %v958 = vmul.f32 %v445, %v445
    %v959 = vmul.f32 %v446, %v446
    %v960 = vmul.f32 %v447, %v447
    %v961 = vmul.f32 %v448, %v448
    %v962 = vmul.f32 %v449, %v449
    %v963 = vmul.f32 %v450, %v450
    %v964 = vmul.f32 %v451, %v451
    %v965 = vmul.f32 %v452, %v452
    %v966 = vmul.f32 %v453, %v453
    %v967 = vmul.f32 %v454, %v454
    %v968 = vmul.f32 %v455, %v455
    %v969 = vmul.f32 %v456, %v456
    %v970 = vmul.f32 %v457, %v457
    %v971 = vmul.f32 %v458, %v458
    %v972 = vmul.f32 %v459, %v459
    %v973 = vmul.f32 %v460, %v460
    %v974 = vmul.f32 %v461, %v461
    %v975 = vmul.f32 %v462, %v462
    %v976 = vmul.f32 %v463, %v463
    %v977 = vmul.f32 %v464, %v464
    %v978 = vmul.f32 %v465, %v465
    %v979 = vmul.f32 %v466, %v466
    %v980 = vmul.f32 %v467, %v467
    %v981 = vmul.f32 %v468, %v468
    %v982 = vmul.f32 %v469, %v469
    %v983 = vmul.f32 %v470, %v470
    %v984 = vmul.f32 %v471, %v471
    %v985 = vmul.f32 %v472, %v472
    %v986 = vmul.f32 %v473, %v473
    %v987 = vmul.f32 %v474, %v474
    %v988 = vmul.f32 %v475, %v475
    %v989 = vmul.f32 %v476, %v476
    %v990 = vmul.f32 %v477, %v477
    %v991 = vmul.f32 %v478, %v478
    %v992 = vmul.f32 %v479, %v479
    %v993 = vmul.f32 %v480, %v480
    %v994 = vmul.f32 %v481, %v481
    %v995 = vmul.f32 %v482, %v482
    %v996 = vmul.f32 %v483, %v483
    %v997 = vmul.f32 %v484, %v484
    %v998 = vmul.f32 %v485, %v485
    %v999 = vmul.f32 %v486, %v486
    %v1000 = vmul.f32 %v487, %v487
    %v1001 = vmul.f32 %v488, %v488
    %v1002 = vmul.f32 %v489, %v489
    %v1003 = vmul.f32 %v490, %v490
    %v1004 = vmul.f32 %v491, %v491
    %v1005 = vmul.f32 %v492, %v492
    %v1006 = vmul.f32 %v493, %v493
    %v1007 = vmul.f32 %v494, %v494
    %v1008 = vmul.f32 %v495, %v495
    %v1009 = vmul.f32 %v496, %v496
    %v1010 = vmul.f32 %v497, %v497
    %v1011 = vmul.f32 %v498, %v498
    %v1012 = vmul.f32 %v499, %v499
    %v1013 = vmul.f32 %v500, %v500
    %v1014 = vmul.f32 %v501, %v501
    %v1015 = vmul.f32 %v502, %v502
    %v1016 = vmul.f32 %v503, %v503
    %v1017 = vmul.f32 %v504, %v504
    %v1018 = vmul.f32 %v505, %v505
    %v1019 = vmul.f32 %v506, %v506
    %v1020 = vmul.f32 %v507, %v507
    %v1021 = vmul.f32 %v508, %v508
    %v1022 = vmul.f32 %v509, %v509
    %v1023 = vmul.f32 %v510, %v510
    %v1024 = vmul.f32 %v511, %v511
    %v1025 = vmul.f32 %v512, %v512
    %v1026 = vmul.f32 %v513, %v513
    %v1027 = vmul.f32 %v514, %v514
    %v1028 = vmul.f32 %v515, %v515
    %v1029 = vmul.f32 %v516, %v516
    %v1030 = vmul.f32 %v517, %v517
    %v1031 = vmul.f32 %v518, %v518
    %v1032 = vmul.f32 %v519, %v519
    %v1033 = vmul.f32 %v520, %v520
    %v1034 = vmul.f32 %v521, %v521
    %v1035 = vmul.f32 %v522, %v522
    %v1036 = vmul.f32 %v523, %v523
    %v1037 = vmul.f32 %v524, %v524
    %v1038 = vmul.f32 %v525, %v525
    %v1039 = vmul.f32 %v526, %v526
    %v1040 = vmul.f32 %v527, %v527
    %v1041 = vmul.f32 %v528, %v528
    %v1042 = vmul.f32 %v529, %v529
    %v1043 = vmul.f32 %v530, %v530
    %v1044 = vmul.f32 %v531, %v531
    %v1045 = vmul.f32 %v532, %v532
    %v1046 = vmul.f32 %v533, %v533
    %v1047 = vmul.f32 %v534, %v534
    %v1048 = vmul.f32 %v535, %v535
    %v1049 = vmul.f32 %v536, %v536
    %v1050 = vmul.f32 %v537, %v537
    %v1051 = vmul.f32 %v538, %v538
    %v1052 = vmul.f32 %v539, %v539
    %v1053 = vmul.f32 %v540, %v540
    %v1054 = vmul.f32 %v541, %v541
    %v1055 = vmul.f32 %v542, %v542
    %v1056 = vmul.f32 %v543, %v543
    %v1057 = vmul.f32 %v544, %v544
    %v1058 = vmul.f32 %v545, %v545
    %v1059 = vmul.f32 %v546, %v546
    %v1060 = vmul.f32 %v547, %v547
    %v1061 = vmul.f32 %v548, %v548
    %v1062 = vmul.f32 %v549, %v549
    %v1063 = vmul.f32 %v550, %v550
    %v1064 = vmul.f32 %v551, %v551
    %v1065 = vmul.f32 %v552, %v552
    %v1066 = vmul.f32 %v553, %v553
    %v1067 = vmul.f32 %v554, %v554
    %v1068 = vmul.f32 %v555, %v555
    %v1069 = vmul.f32 %v556, %v556
    %v1070 = vmul.f32 %v557, %v557
    %v1071 = vmul.f32 %v558, %v558
    %v1072 = vadd.f32 %v560, %v816
    %v1073 = vadd.f32 %v561, %v817
    %v1074 = vadd.f32 %v562, %v818
    %v1075 = vadd.f32 %v563, %v819
    %v1076 = vadd.f32 %v564, %v820
    %v1077 = vadd.f32 %v565, %v821
    %v1078 = vadd.f32 %v566, %v822
    %v1079 = vadd.f32 %v567, %v823
    %v1080 = vadd.f32 %v568, %v824
    %v1081 = vadd.f32 %v569, %v825
    %v1082 = vadd.f32 %v570, %v826
    %v1083 = vadd.f32 %v571, %v827
    %v1084 = vadd.f32 %v572, %v828
    %v1085 = vadd.f32 %v573, %v829
    %v1086 = vadd.f32 %v574, %v830
    %v1087 = vadd.f32 %v575, %v831
    %v1088 = vadd.f32 %v576, %v832
    %v1089 = vadd.f32 %v577, %v833
    %v1090 = vadd.f32 %v578, %v834
    %v1091 = vadd.f32 %v579, %v835
    %v1092 = vadd.f32 %v580, %v836
    %v1093 = vadd.f32 %v581, %v837
    %v1094 = vadd.f32 %v582, %v838
    %v1095 = vadd.f32 %v583, %v839
    %v1096 = vadd.f32 %v584, %v840
    %v1097 = vadd.f32 %v585, %v841
    %v1098 = vadd.f32 %v586, %v842
    %v1099 = vadd.f32 %v587, %v843
    %v1100 = vadd.f32 %v588, %v844
    %v1101 = vadd.f32 %v589, %v845
    %v1102 = vadd.f32 %v590, %v846
    %v1103 = vadd.f32 %v591, %v847
    %v1104 = vadd.f32 %v592, %v848
    %v1105 = vadd.f32 %v593, %v849
    %v1106 = vadd.f32 %v594, %v850
    %v1107 = vadd.f32 %v595, %v851
    %v1108 = vadd.f32 %v596, %v852
    %v1109 = vadd.f32 %v597, %v853
    %v1110 = vadd.f32 %v598, %v854
    %v1111 = vadd.f32 %v599, %v855
    %v1112 = vadd.f32 %v600, %v856
    %v1113 = vadd.f32 %v601, %v857
    %v1114 = vadd.f32 %v602, %v858
    %v1115 = vadd.f32 %v603, %v859
    %v1116 = vadd.f32 %v604, %v860
    %v1117 = vadd.f32 %v605, %v861
    %v1118 = vadd.f32 %v606, %v862
    %v1119 = vadd.f32 %v607, %v863
    %v1120 = vadd.f32 %v608, %v864
    %v1121 = vadd.f32 %v609, %v865
    %v1122 = vadd.f32 %v610, %v866
    %v1123 = vadd.f32 %v611, %v867
    %v1124 = vadd.f32 %v612, %v868
    %v1125 = vadd.f32 %v613, %v869
    %v1126 = vadd.f32 %v614, %v870
    %v1127 = vadd.f32 %v615, %v871
    %v1128 = vadd.f32 %v616, %v872
    %v1129 = vadd.f32 %v617, %v873
    %v1130 = vadd.f32 %v618, %v874
    %v1131 = vadd.f32 %v619, %v875
    %v1132 = vadd.f32 %v620, %v876
    %v1133 = vadd.f32 %v621, %v877
    %v1134 = vadd.f32 %v622, %v878
    %v1135 = vadd.f32 %v623, %v879
    %v1136 = vadd.f32 %v624, %v880
    %v1137 = vadd.f32 %v625, %v881
    %v1138 = vadd.f32 %v626, %v882
    %v1139 = vadd.f32 %v627, %v883
    %v1140 = vadd.f32 %v628, %v884
    %v1141 = vadd.f32 %v629, %v885
    %v1142 = vadd.f32 %v630, %v886
    %v1143 = vadd.f32 %v631, %v887
    %v1144 = vadd.f32 %v632, %v888
    %v1145 = vadd.f32 %v633, %v889
    %v1146 = vadd.f32 %v634, %v890
    %v1147 = vadd.f32 %v635, %v891
    %v1148 = vadd.f32 %v636, %v892
    %v1149 = vadd.f32 %v637, %v893
    %v1150 = vadd.f32 %v638, %v894
    %v1151 = vadd.f32 %v639, %v895
    %v1152 = vadd.f32 %v640, %v896
    %v1153 = vadd.f32 %v641, %v897
    %v1154 = vadd.f32 %v642, %v898
    %v1155 = vadd.f32 %v643, %v899
    %v1156 = vadd.f32 %v644, %v900
    %v1157 = vadd.f32 %v645, %v901
    %v1158 = vadd.f32 %v646, %v902
    %v1159 = vadd.f32 %v647, %v903
    %v1160 = vadd.f32 %v648, %v904
    %v1161 = vadd.f32 %v649, %v905
    %v1162 = vadd.f32 %v650, %v906
    %v1163 = vadd.f32 %v651, %v907
    %v1164 = vadd.f32 %v652, %v908
    %v1165 = vadd.f32 %v653, %v909
    %v1166 = vadd.f32 %v654, %v910
    %v1167 = vadd.f32 %v655, %v911
    %v1168 = vadd.f32 %v656, %v912
    %v1169 = vadd.f32 %v657, %v913
    %v1170 = vadd.f32 %v658, %v914
    %v1171 = vadd.f32 %v659, %v915
    %v1172 = vadd.f32 %v660, %v916
    %v1173 = vadd.f32 %v661, %v917
    %v1174 = vadd.f32 %v662, %v918
    %v1175 = vadd.f32 %v663, %v919
    %v1176 = vadd.f32 %v664, %v920
    %v1177 = vadd.f32 %v665, %v921
    %v1178 = vadd.f32 %v666, %v922
    %v1179 = vadd.f32 %v667, %v923
    %v1180 = vadd.f32 %v668, %v924
    %v1181 = vadd.f32 %v669, %v925
    %v1182 = vadd.f32 %v670, %v926
    %v1183 = vadd.f32 %v671, %v927
    %v1184 = vadd.f32 %v672, %v928
    %v1185 = vadd.f32 %v673, %v929
    %v1186 = vadd.f32 %v674, %v930
    %v1187 = vadd.f32 %v675, %v931
    %v1188 = vadd.f32 %v676, %v932
    %v1189 = vadd.f32 %v677, %v933
    %v1190 = vadd.f32 %v678, %v934
    %v1191 = vadd.f32 %v679, %v935
    %v1192 = vadd.f32 %v680, %v936
    %v1193 = vadd.f32 %v681, %v937
    %v1194 = vadd.f32 %v682, %v938
    %v1195 = vadd.f32 %v683, %v939
    %v1196 = vadd.f32 %v684, %v940
    %v1197 = vadd.f32 %v685, %v941
    %v1198 = vadd.f32 %v686, %v942
    %v1199 = vadd.f32 %v687, %v943
    %v1200 = vadd.f32 %v688, %v944
    %v1201 = vadd.f32 %v689, %v945
    %v1202 = vadd.f32 %v690, %v946
    %v1203 = vadd.f32 %v691, %v947
    %v1204 = vadd.f32 %v692, %v948
    %v1205 = vadd.f32 %v693, %v949
    %v1206 = vadd.f32 %v694, %v950
    %v1207 = vadd.f32 %v695, %v951
    %v1208 = vadd.f32 %v696, %v952
    %v1209 = vadd.f32 %v697, %v953
    %v1210 = vadd.f32 %v698, %v954
    %v1211 = vadd.f32 %v699, %v955
    %v1212 = vadd.f32 %v700, %v956
    %v1213 = vadd.f32 %v701, %v957
    %v1214 = vadd.f32 %v702, %v958
    %v1215 = vadd.f32 %v703, %v959
    %v1216 = vadd.f32 %v704, %v960
    %v1217 = vadd.f32 %v705, %v961
    %v1218 = vadd.f32 %v706, %v962
    %v1219 = vadd.f32 %v707, %v963
    %v1220 = vadd.f32 %v708, %v964
    %v1221 = vadd.f32 %v709, %v965
    %v1222 = vadd.f32 %v710, %v966
    %v1223 = vadd.f32 %v711, %v967
    %v1224 = vadd.f32 %v712, %v968
    %v1225 = vadd.f32 %v713, %v969
    %v1226 = vadd.f32 %v714, %v970
    %v1227 = vadd.f32 %v715, %v971
    %v1228 = vadd.f32 %v716, %v972
    %v1229 = vadd.f32 %v717, %v973
    %v1230 = vadd.f32 %v718, %v974
    %v1231 = vadd.f32 %v719, %v975
    %v1232 = vadd.f32 %v720, %v976
    %v1233 = vadd.f32 %v721, %v977
    %v1234 = vadd.f32 %v722, %v978
    %v1235 = vadd.f32 %v723, %v979
    %v1236 = vadd.f32 %v724, %v980
    %v1237 = vadd.f32 %v725, %v981
    %v1238 = vadd.f32 %v726, %v982
    %v1239 = vadd.f32 %v727, %v983
    %v1240 = vadd.f32 %v728, %v984
    %v1241 = vadd.f32 %v729, %v985
    %v1242 = vadd.f32 %v730, %v986
    %v1243 = vadd.f32 %v731, %v987
    %v1244 = vadd.f32 %v732, %v988
    %v1245 = vadd.f32 %v733, %v989
    %v1246 = vadd.f32 %v734, %v990
    %v1247 = vadd.f32 %v735, %v991
    %v1248 = vadd.f32 %v736, %v992
    %v1249 = vadd.f32 %v737, %v993
    %v1250 = vadd.f32 %v738, %v994
    %v1251 = vadd.f32 %v739, %v995
    %v1252 = vadd.f32 %v740, %v996
    %v1253 = vadd.f32 %v741, %v997
    %v1254 = vadd.f32 %v742, %v998
    %v1255 = vadd.f32 %v743, %v999
    %v1256 = vadd.f32 %v744, %v1000
    %v1257 = vadd.f32 %v745, %v1001
    %v1258 = vadd.f32 %v746, %v1002
    %v1259 = vadd.f32 %v747, %v1003
    %v1260 = vadd.f32 %v748, %v1004
    %v1261 = vadd.f32 %v749, %v1005
    %v1262 = vadd.f32 %v750, %v1006
    %v1263 = vadd.f32 %v751, %v1007
    %v1264 = vadd.f32 %v752, %v1008
    %v1265 = vadd.f32 %v753, %v1009
    %v1266 = vadd.f32 %v754, %v1010
    %v1267 = vadd.f32 %v755, %v1011
    %v1268 = vadd.f32 %v756, %v1012
    %v1269 = vadd.f32 %v757, %v1013
    %v1270 = vadd.f32 %v758, %v1014
    %v1271 = vadd.f32 %v759, %v1015
    %v1272 = vadd.f32 %v760, %v1016
    %v1273 = vadd.f32 %v761, %v1017
    %v1274 = vadd.f32 %v762, %v1018
    %v1275 = vadd.f32 %v763, %v1019
    %v1276 = vadd.f32 %v764, %v1020
    %v1277 = vadd.f32 %v765, %v1021
    %v1278 = vadd.f32 %v766, %v1022
    %v1279 = vadd.f32 %v767, %v1023
    %v1280 = vadd.f32 %v768, %v1024
    %v1281 = vadd.f32 %v769, %v1025
    %v1282 = vadd.f32 %v770, %v1026
    %v1283 = vadd.f32 %v771, %v1027
    %v1284 = vadd.f32 %v772, %v1028
    %v1285 = vadd.f32 %v773, %v1029
    %v1286 = vadd.f32 %v774, %v1030
    %v1287 = vadd.f32 %v775, %v1031
    %v1288 = vadd.f32 %v776, %v1032
    %v1289 = vadd.f32 %v777, %v1033
    %v1290 = vadd.f32 %v778, %v1034
    %v1291 = vadd.f32 %v779, %v1035
    %v1292 = vadd.f32 %v780, %v1036
    %v1293 = vadd.f32 %v781, %v1037
    %v1294 = vadd.f32 %v782, %v1038
    %v1295 = vadd.f32 %v783, %v1039
    %v1296 = vadd.f32 %v784, %v1040
    %v1297 = vadd.f32 %v785, %v1041
    %v1298 = vadd.f32 %v786, %v1042
    %v1299 = vadd.f32 %v787, %v1043
    %v1300 = vadd.f32 %v788, %v1044
    %v1301 = vadd.f32 %v789, %v1045
    %v1302 = vadd.f32 %v790, %v1046
    %v1303 = vadd.f32 %v791, %v1047
    %v1304 = vadd.f32 %v792, %v1048
    %v1305 = vadd.f32 %v793, %v1049
    %v1306 = vadd.f32 %v794, %v1050
    %v1307 = vadd.f32 %v795, %v1051
    %v1308 = vadd.f32 %v796, %v1052
    %v1309 = vadd.f32 %v797, %v1053
    %v1310 = vadd.f32 %v798, %v1054
    %v1311 = vadd.f32 %v799, %v1055
    %v1312 = vadd.f32 %v800, %v1056
    %v1313 = vadd.f32 %v801, %v1057
    %v1314 = vadd.f32 %v802, %v1058
    %v1315 = vadd.f32 %v803, %v1059
    %v1316 = vadd.f32 %v804, %v1060
    %v1317 = vadd.f32 %v805, %v1061
    %v1318 = vadd.f32 %v806, %v1062
    %v1319 = vadd.f32 %v807, %v1063
    %v1320 = vadd.f32 %v808, %v1064
    %v1321 = vadd.f32 %v809, %v1065
    %v1322 = vadd.f32 %v810, %v1066
    %v1323 = vadd.f32 %v811, %v1067
    %v1324 = vadd.f32 %v812, %v1068
    %v1325 = vadd.f32 %v813, %v1069
    %v1326 = vadd.f32 %v814, %v1070
    %v1327 = vadd.f32 %v815, %v1071
    %v1328 = vrsqrt.pop %v1072
    %v1329 = vrsqrt.pop %v1073
    %v1330 = vrsqrt.pop %v1074
    %v1331 = vrsqrt.pop %v1075
    %v1332 = vrsqrt.pop %v1076
    %v1333 = vrsqrt.pop %v1077
    %v1334 = vrsqrt.pop %v1078
    %v1335 = vrsqrt.pop %v1079
    %v1336 = vrsqrt.pop %v1080
    %v1337 = vrsqrt.pop %v1081
    %v1338 = vrsqrt.pop %v1082
    %v1339 = vrsqrt.pop %v1083
    %v1340 = vrsqrt.pop %v1084
    %v1341 = vrsqrt.pop %v1085
    %v1342 = vrsqrt.pop %v1086
    %v1343 = vrsqrt.pop %v1087
    %v1344 = vrsqrt.pop %v1088
    %v1345 = vrsqrt.pop %v1089
    %v1346 = vrsqrt.pop %v1090
    %v1347 = vrsqrt.pop %v1091
    %v1348 = vrsqrt.pop %v1092
    %v1349 = vrsqrt.pop %v1093
    %v1350 = vrsqrt.pop %v1094
    %v1351 = vrsqrt.pop %v1095
    %v1352 = vrsqrt.pop %v1096
    %v1353 = vrsqrt.pop %v1097
    %v1354 = vrsqrt.pop %v1098
    %v1355 = vrsqrt.pop %v1099
    %v1356 = vrsqrt.pop %v1100
    %v1357 = vrsqrt.pop %v1101
    %v1358 = vrsqrt.pop %v1102
    %v1359 = vrsqrt.pop %v1103
    %v1360 = vrsqrt.pop %v1104
    %v1361 = vrsqrt.pop %v1105
    %v1362 = vrsqrt.pop %v1106
    %v1363 = vrsqrt.pop %v1107
    %v1364 = vrsqrt.pop %v1108
    %v1365 = vrsqrt.pop %v1109
    %v1366 = vrsqrt.pop %v1110
    %v1367 = vrsqrt.pop %v1111
    %v1368 = vrsqrt.pop %v1112
    %v1369 = vrsqrt.pop %v1113
    %v1370 = vrsqrt.pop %v1114
    %v1371 = vrsqrt.pop %v1115
    %v1372 = vrsqrt.pop %v1116
    %v1373 = vrsqrt.pop %v1117
    %v1374 = vrsqrt.pop %v1118
    %v1375 = vrsqrt.pop %v1119
    %v1376 = vrsqrt.pop %v1120
    %v1377 = vrsqrt.pop %v1121
    %v1378 = vrsqrt.pop %v1122
    %v1379 = vrsqrt.pop %v1123
    %v1380 = vrsqrt.pop %v1124
    %v1381 = vrsqrt.pop %v1125
    %v1382 = vrsqrt.pop %v1126
    %v1383 = vrsqrt.pop %v1127
    %v1384 = vrsqrt.pop %v1128
    %v1385 = vrsqrt.pop %v1129
    %v1386 = vrsqrt.pop %v1130
    %v1387 = vrsqrt.pop %v1131
    %v1388 = vrsqrt.pop %v1132
    %v1389 = vrsqrt.pop %v1133
    %v1390 = vrsqrt.pop %v1134
    %v1391 = vrsqrt.pop %v1135
    %v1392 = vrsqrt.pop %v1136
    %v1393 = vrsqrt.pop %v1137
    %v1394 = vrsqrt.pop %v1138
    %v1395 = vrsqrt.pop %v1139
    %v1396 = vrsqrt.pop %v1140
    %v1397 = vrsqrt.pop %v1141
    %v1398 = vrsqrt.pop %v1142
    %v1399 = vrsqrt.pop %v1143
    %v1400 = vrsqrt.pop %v1144
    %v1401 = vrsqrt.pop %v1145
    %v1402 = vrsqrt.pop %v1146
    %v1403 = vrsqrt.pop %v1147
    %v1404 = vrsqrt.pop %v1148
    %v1405 = vrsqrt.pop %v1149
    %v1406 = vrsqrt.pop %v1150
    %v1407 = vrsqrt.pop %v1151
    %v1408 = vrsqrt.pop %v1152
    %v1409 = vrsqrt.pop %v1153
    %v1410 = vrsqrt.pop %v1154
    %v1411 = vrsqrt.pop %v1155
    %v1412 = vrsqrt.pop %v1156
    %v1413 = vrsqrt.pop %v1157
    %v1414 = vrsqrt.pop %v1158
    %v1415 = vrsqrt.pop %v1159
    %v1416 = vrsqrt.pop %v1160
    %v1417 = vrsqrt.pop %v1161
    %v1418 = vrsqrt.pop %v1162
    %v1419 = vrsqrt.pop %v1163
    %v1420 = vrsqrt.pop %v1164
    %v1421 = vrsqrt.pop %v1165
    %v1422 = vrsqrt.pop %v1166
    %v1423 = vrsqrt.pop %v1167
    %v1424 = vrsqrt.pop %v1168
    %v1425 = vrsqrt.pop %v1169
    %v1426 = vrsqrt.pop %v1170
    %v1427 = vrsqrt.pop %v1171
    %v1428 = vrsqrt.pop %v1172
    %v1429 = vrsqrt.pop %v1173
    %v1430 = vrsqrt.pop %v1174
    %v1431 = vrsqrt.pop %v1175
    %v1432 = vrsqrt.pop %v1176
    %v1433 = vrsqrt.pop %v1177
    %v1434 = vrsqrt.pop %v1178
    %v1435 = vrsqrt.pop %v1179
    %v1436 = vrsqrt.pop %v1180
    %v1437 = vrsqrt.pop %v1181
    %v1438 = vrsqrt.pop %v1182
    %v1439 = vrsqrt.pop %v1183
    %v1440 = vrsqrt.pop %v1184
    %v1441 = vrsqrt.pop %v1185
    %v1442 = vrsqrt.pop %v1186
    %v1443 = vrsqrt.pop %v1187
    %v1444 = vrsqrt.pop %v1188
    %v1445 = vrsqrt.pop %v1189
    %v1446 = vrsqrt.pop %v1190
    %v1447 = vrsqrt.pop %v1191
    %v1448 = vrsqrt.pop %v1192
    %v1449 = vrsqrt.pop %v1193
    %v1450 = vrsqrt.pop %v1194
    %v1451 = vrsqrt.pop %v1195
    %v1452 = vrsqrt.pop %v1196
    %v1453 = vrsqrt.pop %v1197
    %v1454 = vrsqrt.pop %v1198
    %v1455 = vrsqrt.pop %v1199
    %v1456 = vrsqrt.pop %v1200
    %v1457 = vrsqrt.pop %v1201
    %v1458 = vrsqrt.pop %v1202
    %v1459 = vrsqrt.pop %v1203
    %v1460 = vrsqrt.pop %v1204
    %v1461 = vrsqrt.pop %v1205
    %v1462 = vrsqrt.pop %v1206
    %v1463 = vrsqrt.pop %v1207
    %v1464 = vrsqrt.pop %v1208
    %v1465 = vrsqrt.pop %v1209
    %v1466 = vrsqrt.pop %v1210
    %v1467 = vrsqrt.pop %v1211
    %v1468 = vrsqrt.pop %v1212
    %v1469 = vrsqrt.pop %v1213
    %v1470 = vrsqrt.pop %v1214
    %v1471 = vrsqrt.pop %v1215
    %v1472 = vrsqrt.pop %v1216
    %v1473 = vrsqrt.pop %v1217
    %v1474 = vrsqrt.pop %v1218
    %v1475 = vrsqrt.pop %v1219
    %v1476 = vrsqrt.pop %v1220
    %v1477 = vrsqrt.pop %v1221
    %v1478 = vrsqrt.pop %v1222
    %v1479 = vrsqrt.pop %v1223
    %v1480 = vrsqrt.pop %v1224
    %v1481 = vrsqrt.pop %v1225
    %v1482 = vrsqrt.pop %v1226
    %v1483 = vrsqrt.pop %v1227
    %v1484 = vrsqrt.pop %v1228
    %v1485 = vrsqrt.pop %v1229
    %v1486 = vrsqrt.pop %v1230
    %v1487 = vrsqrt.pop %v1231
    %v1488 = vrsqrt.pop %v1232
    %v1489 = vrsqrt.pop %v1233
    %v1490 = vrsqrt.pop %v1234
    %v1491 = vrsqrt.pop %v1235
    %v1492 = vrsqrt.pop %v1236
    %v1493 = vrsqrt.pop %v1237
    %v1494 = vrsqrt.pop %v1238
    %v1495 = vrsqrt.pop %v1239
    %v1496 = vrsqrt.pop %v1240
    %v1497 = vrsqrt.pop %v1241
    %v1498 = vrsqrt.pop %v1242
    %v1499 = vrsqrt.pop %v1243
    %v1500 = vrsqrt.pop %v1244
    %v1501 = vrsqrt.pop %v1245
    %v1502 = vrsqrt.pop %v1246
    %v1503 = vrsqrt.pop %v1247
    %v1504 = vrsqrt.pop %v1248
    %v1505 = vrsqrt.pop %v1249
    %v1506 = vrsqrt.pop %v1250
    %v1507 = vrsqrt.pop %v1251
    %v1508 = vrsqrt.pop %v1252
    %v1509 = vrsqrt.pop %v1253
    %v1510 = vrsqrt.pop %v1254
    %v1511 = vrsqrt.pop %v1255
    %v1512 = vrsqrt.pop %v1256
    %v1513 = vrsqrt.pop %v1257
    %v1514 = vrsqrt.pop %v1258
    %v1515 = vrsqrt.pop %v1259
    %v1516 = vrsqrt.pop %v1260
    %v1517 = vrsqrt.pop %v1261
    %v1518 = vrsqrt.pop %v1262
    %v1519 = vrsqrt.pop %v1263
    %v1520 = vrsqrt.pop %v1264
    %v1521 = vrsqrt.pop %v1265
    %v1522 = vrsqrt.pop %v1266
    %v1523 = vrsqrt.pop %v1267
    %v1524 = vrsqrt.pop %v1268
    %v1525 = vrsqrt.pop %v1269
    %v1526 = vrsqrt.pop %v1270
    %v1527 = vrsqrt.pop %v1271
    %v1528 = vrsqrt.pop %v1272
    %v1529 = vrsqrt.pop %v1273
    %v1530 = vrsqrt.pop %v1274
    %v1531 = vrsqrt.pop %v1275
    %v1532 = vrsqrt.pop %v1276
    %v1533 = vrsqrt.pop %v1277
    %v1534 = vrsqrt.pop %v1278
    %v1535 = vrsqrt.pop %v1279
    %v1536 = vrsqrt.pop %v1280
    %v1537 = vrsqrt.pop %v1281
    %v1538 = vrsqrt.pop %v1282
    %v1539 = vrsqrt.pop %v1283
    %v1540 = vrsqrt.pop %v1284
    %v1541 = vrsqrt.pop %v1285
    %v1542 = vrsqrt.pop %v1286
    %v1543 = vrsqrt.pop %v1287
    %v1544 = vrsqrt.pop %v1288
    %v1545 = vrsqrt.pop %v1289
    %v1546 = vrsqrt.pop %v1290
    %v1547 = vrsqrt.pop %v1291
    %v1548 = vrsqrt.pop %v1292
    %v1549 = vrsqrt.pop %v1293
    %v1550 = vrsqrt.pop %v1294
    %v1551 = vrsqrt.pop %v1295
    %v1552 = vrsqrt.pop %v1296
    %v1553 = vrsqrt.pop %v1297
    %v1554 = vrsqrt.pop %v1298
    %v1555 = vrsqrt.pop %v1299
    %v1556 = vrsqrt.pop %v1300
    %v1557 = vrsqrt.pop %v1301
    %v1558 = vrsqrt.pop %v1302
    %v1559 = vrsqrt.pop %v1303
    %v1560 = vrsqrt.pop %v1304
    %v1561 = vrsqrt.pop %v1305
    %v1562 = vrsqrt.pop %v1306
    %v1563 = vrsqrt.pop %v1307
    %v1564 = vrsqrt.pop %v1308
    %v1565 = vrsqrt.pop %v1309
    %v1566 = vrsqrt.pop %v1310
    %v1567 = vrsqrt.pop %v1311
    %v1568 = vrsqrt.pop %v1312
    %v1569 = vrsqrt.pop %v1313
    %v1570 = vrsqrt.pop %v1314
    %v1571 = vrsqrt.pop %v1315
    %v1572 = vrsqrt.pop %v1316
    %v1573 = vrsqrt.pop %v1317
    %v1574 = vrsqrt.pop %v1318
    %v1575 = vrsqrt.pop %v1319
    %v1576 = vrsqrt.pop %v1320
    %v1577 = vrsqrt.pop %v1321
    %v1578 = vrsqrt.pop %v1322
    %v1579 = vrsqrt.pop %v1323
    %v1580 = vrsqrt.pop %v1324
    %v1581 = vrsqrt.pop %v1325
    %v1582 = vrsqrt.pop %v1326
    %v1583 = vrsqrt.pop %v1327
    %v1584 = vstv %s559
    %v1585 = vmul.f32 %v1584, %v1328
    %v1586 = vmul.f32 %v1584, %v1329
    %v1587 = vmul.f32 %v1584, %v1330
    %v1588 = vmul.f32 %v1584, %v1331
    %v1589 = vmul.f32 %v1584, %v1332
    %v1590 = vmul.f32 %v1584, %v1333
    %v1591 = vmul.f32 %v1584, %v1334
    %v1592 = vmul.f32 %v1584, %v1335
    %v1593 = vmul.f32 %v1584, %v1336
    %v1594 = vmul.f32 %v1584, %v1337
    %v1595 = vmul.f32 %v1584, %v1338
    %v1596 = vmul.f32 %v1584, %v1339
    %v1597 = vmul.f32 %v1584, %v1340
    %v1598 = vmul.f32 %v1584, %v1341
    %v1599 = vmul.f32 %v1584, %v1342
    %v1600 = vmul.f32 %v1584, %v1343
    %v1601 = vmul.f32 %v1584, %v1344
    %v1602 = vmul.f32 %v1584, %v1345
    %v1603 = vmul.f32 %v1584, %v1346
    %v1604 = vmul.f32 %v1584, %v1347
    %v1605 = vmul.f32 %v1584, %v1348
    %v1606 = vmul.f32 %v1584, %v1349
    %v1607 = vmul.f32 %v1584, %v1350
    %v1608 = vmul.f32 %v1584, %v1351
    %v1609 = vmul.f32 %v1584, %v1352
    %v1610 = vmul.f32 %v1584, %v1353
    %v1611 = vmul.f32 %v1584, %v1354
    %v1612 = vmul.f32 %v1584, %v1355
    %v1613 = vmul.f32 %v1584, %v1356
    %v1614 = vmul.f32 %v1584, %v1357
    %v1615 = vmul.f32 %v1584, %v1358
    %v1616 = vmul.f32 %v1584, %v1359
    %v1617 = vmul.f32 %v1584, %v1360
    %v1618 = vmul.f32 %v1584, %v1361
    %v1619 = vmul.f32 %v1584, %v1362
    %v1620 = vmul.f32 %v1584, %v1363
    %v1621 = vmul.f32 %v1584, %v1364
    %v1622 = vmul.f32 %v1584, %v1365
    %v1623 = vmul.f32 %v1584, %v1366
    %v1624 = vmul.f32 %v1584, %v1367
    %v1625 = vmul.f32 %v1584, %v1368
    %v1626 = vmul.f32 %v1584, %v1369
    %v1627 = vmul.f32 %v1584, %v1370
    %v1628 = vmul.f32 %v1584, %v1371
    %v1629 = vmul.f32 %v1584, %v1372
    %v1630 = vmul.f32 %v1584, %v1373
    %v1631 = vmul.f32 %v1584, %v1374
    %v1632 = vmul.f32 %v1584, %v1375
    %v1633 = vmul.f32 %v1584, %v1376
    %v1634 = vmul.f32 %v1584, %v1377
    %v1635 = vmul.f32 %v1584, %v1378
    %v1636 = vmul.f32 %v1584, %v1379
    %v1637 = vmul.f32 %v1584, %v1380
    %v1638 = vmul.f32 %v1584, %v1381
    %v1639 = vmul.f32 %v1584, %v1382
    %v1640 = vmul.f32 %v1584, %v1383
    %v1641 = vmul.f32 %v1584, %v1384
    %v1642 = vmul.f32 %v1584, %v1385
    %v1643 = vmul.f32 %v1584, %v1386
    %v1644 = vmul.f32 %v1584, %v1387
    %v1645 = vmul.f32 %v1584, %v1388
    %v1646 = vmul.f32 %v1584, %v1389
    %v1647 = vmul.f32 %v1584, %v1390
    %v1648 = vmul.f32 %v1584, %v1391
    %v1649 = vmul.f32 %v1584, %v1392
    %v1650 = vmul.f32 %v1584, %v1393
    %v1651 = vmul.f32 %v1584, %v1394
    %v1652 = vmul.f32 %v1584, %v1395
    %v1653 = vmul.f32 %v1584, %v1396
    %v1654 = vmul.f32 %v1584, %v1397
    %v1655 = vmul.f32 %v1584, %v1398
    %v1656 = vmul.f32 %v1584, %v1399
    %v1657 = vmul.f32 %v1584, %v1400
    %v1658 = vmul.f32 %v1584, %v1401
    %v1659 = vmul.f32 %v1584, %v1402
    %v1660 = vmul.f32 %v1584, %v1403
    %v1661 = vmul.f32 %v1584, %v1404
    %v1662 = vmul.f32 %v1584, %v1405
    %v1663 = vmul.f32 %v1584, %v1406
    %v1664 = vmul.f32 %v1584, %v1407
    %v1665 = vmul.f32 %v1584, %v1408
    %v1666 = vmul.f32 %v1584, %v1409
    %v1667 = vmul.f32 %v1584, %v1410
    %v1668 = vmul.f32 %v1584, %v1411
    %v1669 = vmul.f32 %v1584, %v1412
    %v1670 = vmul.f32 %v1584, %v1413
    %v1671 = vmul.f32 %v1584, %v1414
    %v1672 = vmul.f32 %v1584, %v1415
    %v1673 = vmul.f32 %v1584, %v1416
    %v1674 = vmul.f32 %v1584, %v1417
    %v1675 = vmul.f32 %v1584, %v1418
    %v1676 = vmul.f32 %v1584, %v1419
    %v1677 = vmul.f32 %v1584, %v1420
    %v1678 = vmul.f32 %v1584, %v1421
    %v1679 = vmul.f32 %v1584, %v1422
    %v1680 = vmul.f32 %v1584, %v1423
    %v1681 = vmul.f32 %v1584, %v1424
    %v1682 = vmul.f32 %v1584, %v1425
    %v1683 = vmul.f32 %v1584, %v1426
    %v1684 = vmul.f32 %v1584, %v1427
    %v1685 = vmul.f32 %v1584, %v1428
    %v1686 = vmul.f32 %v1584, %v1429
    %v1687 = vmul.f32 %v1584, %v1430
    %v1688 = vmul.f32 %v1584, %v1431
    %v1689 = vmul.f32 %v1584, %v1432
    %v1690 = vmul.f32 %v1584, %v1433
    %v1691 = vmul.f32 %v1584, %v1434
    %v1692 = vmul.f32 %v1584, %v1435
    %v1693 = vmul.f32 %v1584, %v1436
    %v1694 = vmul.f32 %v1584, %v1437
    %v1695 = vmul.f32 %v1584, %v1438
    %v1696 = vmul.f32 %v1584, %v1439
    %v1697 = vmul.f32 %v1584, %v1440
    %v1698 = vmul.f32 %v1584, %v1441
    %v1699 = vmul.f32 %v1584, %v1442
    %v1700 = vmul.f32 %v1584, %v1443
    %v1701 = vmul.f32 %v1584, %v1444
    %v1702 = vmul.f32 %v1584, %v1445
    %v1703 = vmul.f32 %v1584, %v1446
    %v1704 = vmul.f32 %v1584, %v1447
    %v1705 = vmul.f32 %v1584, %v1448
    %v1706 = vmul.f32 %v1584, %v1449
    %v1707 = vmul.f32 %v1584, %v1450
    %v1708 = vmul.f32 %v1584, %v1451
    %v1709 = vmul.f32 %v1584, %v1452
    %v1710 = vmul.f32 %v1584, %v1453
    %v1711 = vmul.f32 %v1584, %v1454
    %v1712 = vmul.f32 %v1584, %v1455
    %v1713 = vmul.f32 %v1584, %v1456
    %v1714 = vmul.f32 %v1584, %v1457
    %v1715 = vmul.f32 %v1584, %v1458
    %v1716 = vmul.f32 %v1584, %v1459
    %v1717 = vmul.f32 %v1584, %v1460
    %v1718 = vmul.f32 %v1584, %v1461
    %v1719 = vmul.f32 %v1584, %v1462
    %v1720 = vmul.f32 %v1584, %v1463
    %v1721 = vmul.f32 %v1584, %v1464
    %v1722 = vmul.f32 %v1584, %v1465
    %v1723 = vmul.f32 %v1584, %v1466
    %v1724 = vmul.f32 %v1584, %v1467
    %v1725 = vmul.f32 %v1584, %v1468
    %v1726 = vmul.f32 %v1584, %v1469
    %v1727 = vmul.f32 %v1584, %v1470
    %v1728 = vmul.f32 %v1584, %v1471
    %v1729 = vmul.f32 %v1584, %v1472
    %v1730 = vmul.f32 %v1584, %v1473
    %v1731 = vmul.f32 %v1584, %v1474
    %v1732 = vmul.f32 %v1584, %v1475
    %v1733 = vmul.f32 %v1584, %v1476
    %v1734 = vmul.f32 %v1584, %v1477
    %v1735 = vmul.f32 %v1584, %v1478
    %v1736 = vmul.f32 %v1584, %v1479
    %v1737 = vmul.f32 %v1584, %v1480
    %v1738 = vmul.f32 %v1584, %v1481
    %v1739 = vmul.f32 %v1584, %v1482
    %v1740 = vmul.f32 %v1584, %v1483
    %v1741 = vmul.f32 %v1584, %v1484
    %v1742 = vmul.f32 %v1584, %v1485
    %v1743 = vmul.f32 %v1584, %v1486
    %v1744 = vmul.f32 %v1584, %v1487
    %v1745 = vmul.f32 %v1584, %v1488
    %v1746 = vmul.f32 %v1584, %v1489
    %v1747 = vmul.f32 %v1584, %v1490
    %v1748 = vmul.f32 %v1584, %v1491
    %v1749 = vmul.f32 %v1584, %v1492
    %v1750 = vmul.f32 %v1584, %v1493
    %v1751 = vmul.f32 %v1584, %v1494
    %v1752 = vmul.f32 %v1584, %v1495
    %v1753 = vmul.f32 %v1584, %v1496
    %v1754 = vmul.f32 %v1584, %v1497
    %v1755 = vmul.f32 %v1584, %v1498
    %v1756 = vmul.f32 %v1584, %v1499
    %v1757 = vmul.f32 %v1584, %v1500
    %v1758 = vmul.f32 %v1584, %v1501
    %v1759 = vmul.f32 %v1584, %v1502
    %v1760 = vmul.f32 %v1584, %v1503
    %v1761 = vmul.f32 %v1584, %v1504
    %v1762 = vmul.f32 %v1584, %v1505
    %v1763 = vmul.f32 %v1584, %v1506
    %v1764 = vmul.f32 %v1584, %v1507
    %v1765 = vmul.f32 %v1584, %v1508
    %v1766 = vmul.f32 %v1584, %v1509
    %v1767 = vmul.f32 %v1584, %v1510
    %v1768 = vmul.f32 %v1584, %v1511
    %v1769 = vmul.f32 %v1584, %v1512
    %v1770 = vmul.f32 %v1584, %v1513
    %v1771 = vmul.f32 %v1584, %v1514
    %v1772 = vmul.f32 %v1584, %v1515
    %v1773 = vmul.f32 %v1584, %v1516
    %v1774 = vmul.f32 %v1584, %v1517
    %v1775 = vmul.f32 %v1584, %v1518
    %v1776 = vmul.f32 %v1584, %v1519
    %v1777 = vmul.f32 %v1584, %v1520
    %v1778 = vmul.f32 %v1584, %v1521
    %v1779 = vmul.f32 %v1584, %v1522
    %v1780 = vmul.f32 %v1584, %v1523
    %v1781 = vmul.f32 %v1584, %v1524
    %v1782 = vmul.f32 %v1584, %v1525
    %v1783 = vmul.f32 %v1584, %v1526
    %v1784 = vmul.f32 %v1584, %v1527
    %v1785 = vmul.f32 %v1584, %v1528
    %v1786 = vmul.f32 %v1584, %v1529
    %v1787 = vmul.f32 %v1584, %v1530
    %v1788 = vmul.f32 %v1584, %v1531
    %v1789 = vmul.f32 %v1584, %v1532
    %v1790 = vmul.f32 %v1584, %v1533
    %v1791 = vmul.f32 %v1584, %v1534
    %v1792 = vmul.f32 %v1584, %v1535
    %v1793 = vmul.f32 %v1584, %v1536
    %v1794 = vmul.f32 %v1584, %v1537
    %v1795 = vmul.f32 %v1584, %v1538
    %v1796 = vmul.f32 %v1584, %v1539
    %v1797 = vmul.f32 %v1584, %v1540
    %v1798 = vmul.f32 %v1584, %v1541
    %v1799 = vmul.f32 %v1584, %v1542
    %v1800 = vmul.f32 %v1584, %v1543
    %v1801 = vmul.f32 %v1584, %v1544
    %v1802 = vmul.f32 %v1584, %v1545
    %v1803 = vmul.f32 %v1584, %v1546
    %v1804 = vmul.f32 %v1584, %v1547
    %v1805 = vmul.f32 %v1584, %v1548
    %v1806 = vmul.f32 %v1584, %v1549
    %v1807 = vmul.f32 %v1584, %v1550
    %v1808 = vmul.f32 %v1584, %v1551
    %v1809 = vmul.f32 %v1584, %v1552
    %v1810 = vmul.f32 %v1584, %v1553
    %v1811 = vmul.f32 %v1584, %v1554
    %v1812 = vmul.f32 %v1584, %v1555
    %v1813 = vmul.f32 %v1584, %v1556
    %v1814 = vmul.f32 %v1584, %v1557
    %v1815 = vmul.f32 %v1584, %v1558
    %v1816 = vmul.f32 %v1584, %v1559
    %v1817 = vmul.f32 %v1584, %v1560
    %v1818 = vmul.f32 %v1584, %v1561
    %v1819 = vmul.f32 %v1584, %v1562
    %v1820 = vmul.f32 %v1584, %v1563
    %v1821 = vmul.f32 %v1584, %v1564
    %v1822 = vmul.f32 %v1584, %v1565
    %v1823 = vmul.f32 %v1584, %v1566
    %v1824 = vmul.f32 %v1584, %v1567
    %v1825 = vmul.f32 %v1584, %v1568
    %v1826 = vmul.f32 %v1584, %v1569
    %v1827 = vmul.f32 %v1584, %v1570
    %v1828 = vmul.f32 %v1584, %v1571
    %v1829 = vmul.f32 %v1584, %v1572
    %v1830 = vmul.f32 %v1584, %v1573
    %v1831 = vmul.f32 %v1584, %v1574
    %v1832 = vmul.f32 %v1584, %v1575
    %v1833 = vmul.f32 %v1584, %v1576
    %v1834 = vmul.f32 %v1584, %v1577
    %v1835 = vmul.f32 %v1584, %v1578
    %v1836 = vmul.f32 %v1584, %v1579
    %v1837 = vmul.f32 %v1584, %v1580
    %v1838 = vmul.f32 %v1584, %v1581
    %v1839 = vmul.f32 %v1584, %v1582
    %v1840 = vmul.f32 %v1584, %v1583
    %v1841 = vsub.f32 1.0, %v1585
    %v1842 = vsub.f32 1.0, %v1586
    %v1843 = vsub.f32 1.0, %v1587
    %v1844 = vsub.f32 1.0, %v1588
    %v1845 = vsub.f32 1.0, %v1589
    %v1846 = vsub.f32 1.0, %v1590
    %v1847 = vsub.f32 1.0, %v1591
    %v1848 = vsub.f32 1.0, %v1592
    %v1849 = vsub.f32 1.0, %v1593
    %v1850 = vsub.f32 1.0, %v1594
    %v1851 = vsub.f32 1.0, %v1595
    %v1852 = vsub.f32 1.0, %v1596
    %v1853 = vsub.f32 1.0, %v1597
    %v1854 = vsub.f32 1.0, %v1598
    %v1855 = vsub.f32 1.0, %v1599
    %v1856 = vsub.f32 1.0, %v1600
    %v1857 = vsub.f32 1.0, %v1601
    %v1858 = vsub.f32 1.0, %v1602
    %v1859 = vsub.f32 1.0, %v1603
    %v1860 = vsub.f32 1.0, %v1604
    %v1861 = vsub.f32 1.0, %v1605
    %v1862 = vsub.f32 1.0, %v1606
    %v1863 = vsub.f32 1.0, %v1607
    %v1864 = vsub.f32 1.0, %v1608
    %v1865 = vsub.f32 1.0, %v1609
    %v1866 = vsub.f32 1.0, %v1610
    %v1867 = vsub.f32 1.0, %v1611
    %v1868 = vsub.f32 1.0, %v1612
    %v1869 = vsub.f32 1.0, %v1613
    %v1870 = vsub.f32 1.0, %v1614
    %v1871 = vsub.f32 1.0, %v1615
    %v1872 = vsub.f32 1.0, %v1616
    %v1873 = vsub.f32 1.0, %v1617
    %v1874 = vsub.f32 1.0, %v1618
    %v1875 = vsub.f32 1.0, %v1619
    %v1876 = vsub.f32 1.0, %v1620
    %v1877 = vsub.f32 1.0, %v1621
    %v1878 = vsub.f32 1.0, %v1622
    %v1879 = vsub.f32 1.0, %v1623
    %v1880 = vsub.f32 1.0, %v1624
    %v1881 = vsub.f32 1.0, %v1625
    %v1882 = vsub.f32 1.0, %v1626
    %v1883 = vsub.f32 1.0, %v1627
    %v1884 = vsub.f32 1.0, %v1628
    %v1885 = vsub.f32 1.0, %v1629
    %v1886 = vsub.f32 1.0, %v1630
    %v1887 = vsub.f32 1.0, %v1631
    %v1888 = vsub.f32 1.0, %v1632
    %v1889 = vsub.f32 1.0, %v1633
    %v1890 = vsub.f32 1.0, %v1634
    %v1891 = vsub.f32 1.0, %v1635
    %v1892 = vsub.f32 1.0, %v1636
    %v1893 = vsub.f32 1.0, %v1637
    %v1894 = vsub.f32 1.0, %v1638
    %v1895 = vsub.f32 1.0, %v1639
    %v1896 = vsub.f32 1.0, %v1640
    %v1897 = vsub.f32 1.0, %v1641
    %v1898 = vsub.f32 1.0, %v1642
    %v1899 = vsub.f32 1.0, %v1643
    %v1900 = vsub.f32 1.0, %v1644
    %v1901 = vsub.f32 1.0, %v1645
    %v1902 = vsub.f32 1.0, %v1646
    %v1903 = vsub.f32 1.0, %v1647
    %v1904 = vsub.f32 1.0, %v1648
    %v1905 = vsub.f32 1.0, %v1649
    %v1906 = vsub.f32 1.0, %v1650
    %v1907 = vsub.f32 1.0, %v1651
    %v1908 = vsub.f32 1.0, %v1652
    %v1909 = vsub.f32 1.0, %v1653
    %v1910 = vsub.f32 1.0, %v1654
    %v1911 = vsub.f32 1.0, %v1655
    %v1912 = vsub.f32 1.0, %v1656
    %v1913 = vsub.f32 1.0, %v1657
    %v1914 = vsub.f32 1.0, %v1658
    %v1915 = vsub.f32 1.0, %v1659
    %v1916 = vsub.f32 1.0, %v1660
    %v1917 = vsub.f32 1.0, %v1661
    %v1918 = vsub.f32 1.0, %v1662
    %v1919 = vsub.f32 1.0, %v1663
    %v1920 = vsub.f32 1.0, %v1664
    %v1921 = vsub.f32 1.0, %v1665
    %v1922 = vsub.f32 1.0, %v1666
    %v1923 = vsub.f32 1.0, %v1667
    %v1924 = vsub.f32 1.0, %v1668
    %v1925 = vsub.f32 1.0, %v1669
    %v1926 = vsub.f32 1.0, %v1670
    %v1927 = vsub.f32 1.0, %v1671
    %v1928 = vsub.f32 1.0, %v1672
    %v1929 = vsub.f32 1.0, %v1673
    %v1930 = vsub.f32 1.0, %v1674
    %v1931 = vsub.f32 1.0, %v1675
    %v1932 = vsub.f32 1.0, %v1676
    %v1933 = vsub.f32 1.0, %v1677
    %v1934 = vsub.f32 1.0, %v1678
    %v1935 = vsub.f32 1.0, %v1679
    %v1936 = vsub.f32 1.0, %v1680
    %v1937 = vsub.f32 1.0, %v1681
    %v1938 = vsub.f32 1.0, %v1682
    %v1939 = vsub.f32 1.0, %v1683
    %v1940 = vsub.f32 1.0, %v1684
    %v1941 = vsub.f32 1.0, %v1685
    %v1942 = vsub.f32 1.0, %v1686
    %v1943 = vsub.f32 1.0, %v1687
    %v1944 = vsub.f32 1.0, %v1688
    %v1945 = vsub.f32 1.0, %v1689
    %v1946 = vsub.f32 1.0, %v1690
    %v1947 = vsub.f32 1.0, %v1691
    %v1948 = vsub.f32 1.0, %v1692
    %v1949 = vsub.f32 1.0, %v1693
    %v1950 = vsub.f32 1.0, %v1694
    %v1951 = vsub.f32 1.0, %v1695
    %v1952 = vsub.f32 1.0, %v1696
    %v1953 = vsub.f32 1.0, %v1697
    %v1954 = vsub.f32 1.0, %v1698
    %v1955 = vsub.f32 1.0, %v1699
    %v1956 = vsub.f32 1.0, %v1700
    %v1957 = vsub.f32 1.0, %v1701
    %v1958 = vsub.f32 1.0, %v1702
    %v1959 = vsub.f32 1.0, %v1703
    %v1960 = vsub.f32 1.0, %v1704
    %v1961 = vsub.f32 1.0, %v1705
    %v1962 = vsub.f32 1.0, %v1706
    %v1963 = vsub.f32 1.0, %v1707
    %v1964 = vsub.f32 1.0, %v1708
    %v1965 = vsub.f32 1.0, %v1709
    %v1966 = vsub.f32 1.0, %v1710
    %v1967 = vsub.f32 1.0, %v1711
    %v1968 = vsub.f32 1.0, %v1712
    %v1969 = vsub.f32 1.0, %v1713
    %v1970 = vsub.f32 1.0, %v1714
    %v1971 = vsub.f32 1.0, %v1715
    %v1972 = vsub.f32 1.0, %v1716
    %v1973 = vsub.f32 1.0, %v1717
    %v1974 = vsub.f32 1.0, %v1718
    %v1975 = vsub.f32 1.0, %v1719
    %v1976 = vsub.f32 1.0, %v1720
    %v1977 = vsub.f32 1.0, %v1721
    %v1978 = vsub.f32 1.0, %v1722
    %v1979 = vsub.f32 1.0, %v1723
    %v1980 = vsub.f32 1.0, %v1724
    %v1981 = vsub.f32 1.0, %v1725
    %v1982 = vsub.f32 1.0, %v1726
    %v1983 = vsub.f32 1.0, %v1727
    %v1984 = vsub.f32 1.0, %v1728
    %v1985 = vsub.f32 1.0, %v1729
    %v1986 = vsub.f32 1.0, %v1730
    %v1987 = vsub.f32 1.0, %v1731
    %v1988 = vsub.f32 1.0, %v1732
    %v1989 = vsub.f32 1.0, %v1733
    %v1990 = vsub.f32 1.0, %v1734
    %v1991 = vsub.f32 1.0, %v1735
    %v1992 = vsub.f32 1.0, %v1736
    %v1993 = vsub.f32 1.0, %v1737
    %v1994 = vsub.f32 1.0, %v1738
    %v1995 = vsub.f32 1.0, %v1739
    %v1996 = vsub.f32 1.0, %v1740
    %v1997 = vsub.f32 1.0, %v1741
    %v1998 = vsub.f32 1.0, %v1742
    %v1999 = vsub.f32 1.0, %v1743
    %v2000 = vsub.f32 1.0, %v1744
    %v2001 = vsub.f32 1.0, %v1745
    %v2002 = vsub.f32 1.0, %v1746
    %v2003 = vsub.f32 1.0, %v1747
    %v2004 = vsub.f32 1.0, %v1748
    %v2005 = vsub.f32 1.0, %v1749
    %v2006 = vsub.f32 1.0, %v1750
    %v2007 = vsub.f32 1.0, %v1751
    %v2008 = vsub.f32 1.0, %v1752
    %v2009 = vsub.f32 1.0, %v1753
    %v2010 = vsub.f32 1.0, %v1754
    %v2011 = vsub.f32 1.0, %v1755
    %v2012 = vsub.f32 1.0, %v1756
    %v2013 = vsub.f32 1.0, %v1757
    %v2014 = vsub.f32 1.0, %v1758
    %v2015 = vsub.f32 1.0, %v1759
    %v2016 = vsub.f32 1.0, %v1760
    %v2017 = vsub.f32 1.0, %v1761
    %v2018 = vsub.f32 1.0, %v1762
    %v2019 = vsub.f32 1.0, %v1763
    %v2020 = vsub.f32 1.0, %v1764
    %v2021 = vsub.f32 1.0, %v1765
    %v2022 = vsub.f32 1.0, %v1766
    %v2023 = vsub.f32 1.0, %v1767
    %v2024 = vsub.f32 1.0, %v1768
    %v2025 = vsub.f32 1.0, %v1769
    %v2026 = vsub.f32 1.0, %v1770
    %v2027 = vsub.f32 1.0, %v1771
    %v2028 = vsub.f32 1.0, %v1772
    %v2029 = vsub.f32 1.0, %v1773
    %v2030 = vsub.f32 1.0, %v1774
    %v2031 = vsub.f32 1.0, %v1775
    %v2032 = vsub.f32 1.0, %v1776
    %v2033 = vsub.f32 1.0, %v1777
    %v2034 = vsub.f32 1.0, %v1778
    %v2035 = vsub.f32 1.0, %v1779
    %v2036 = vsub.f32 1.0, %v1780
    %v2037 = vsub.f32 1.0, %v1781
    %v2038 = vsub.f32 1.0, %v1782
    %v2039 = vsub.f32 1.0, %v1783
    %v2040 = vsub.f32 1.0, %v1784
    %v2041 = vsub.f32 1.0, %v1785
    %v2042 = vsub.f32 1.0, %v1786
    %v2043 = vsub.f32 1.0, %v1787
    %v2044 = vsub.f32 1.0, %v1788
    %v2045 = vsub.f32 1.0, %v1789
    %v2046 = vsub.f32 1.0, %v1790
    %v2047 = vsub.f32 1.0, %v1791
    %v2048 = vsub.f32 1.0, %v1792
    %v2049 = vsub.f32 1.0, %v1793
    %v2050 = vsub.f32 1.0, %v1794
    %v2051 = vsub.f32 1.0, %v1795
    %v2052 = vsub.f32 1.0, %v1796
    %v2053 = vsub.f32 1.0, %v1797
    %v2054 = vsub.f32 1.0, %v1798
    %v2055 = vsub.f32 1.0, %v1799
    %v2056 = vsub.f32 1.0, %v1800
    %v2057 = vsub.f32 1.0, %v1801
    %v2058 = vsub.f32 1.0, %v1802
    %v2059 = vsub.f32 1.0, %v1803
    %v2060 = vsub.f32 1.0, %v1804
    %v2061 = vsub.f32 1.0, %v1805
    %v2062 = vsub.f32 1.0, %v1806
    %v2063 = vsub.f32 1.0, %v1807
    %v2064 = vsub.f32 1.0, %v1808
    %v2065 = vsub.f32 1.0, %v1809
    %v2066 = vsub.f32 1.0, %v1810
    %v2067 = vsub.f32 1.0, %v1811
    %v2068 = vsub.f32 1.0, %v1812
    %v2069 = vsub.f32 1.0, %v1813
    %v2070 = vsub.f32 1.0, %v1814
    %v2071 = vsub.f32 1.0, %v1815
    %v2072 = vsub.f32 1.0, %v1816
    %v2073 = vsub.f32 1.0, %v1817
    %v2074 = vsub.f32 1.0, %v1818
    %v2075 = vsub.f32 1.0, %v1819
    %v2076 = vsub.f32 1.0, %v1820
    %v2077 = vsub.f32 1.0, %v1821
    %v2078 = vsub.f32 1.0, %v1822
    %v2079 = vsub.f32 1.0, %v1823
    %v2080 = vsub.f32 1.0, %v1824
    %v2081 = vsub.f32 1.0, %v1825
    %v2082 = vsub.f32 1.0, %v1826
    %v2083 = vsub.f32 1.0, %v1827
    %v2084 = vsub.f32 1.0, %v1828
    %v2085 = vsub.f32 1.0, %v1829
    %v2086 = vsub.f32 1.0, %v1830
    %v2087 = vsub.f32 1.0, %v1831
    %v2088 = vsub.f32 1.0, %v1832
    %v2089 = vsub.f32 1.0, %v1833
    %v2090 = vsub.f32 1.0, %v1834
    %v2091 = vsub.f32 1.0, %v1835
    %v2092 = vsub.f32 1.0, %v1836
    %v2093 = vsub.f32 1.0, %v1837
    %v2094 = vsub.f32 1.0, %v1838
    %v2095 = vsub.f32 1.0, %v1839
    %v2096 = vsub.f32 1.0, %v1840
    %v2097 = vmax.f32 %v1841, 0.0
    %v2098 = vmax.f32 %v1842, 0.0
    %v2099 = vmax.f32 %v1843, 0.0
    %v2100 = vmax.f32 %v1844, 0.0
    %v2101 = vmax.f32 %v1845, 0.0
    %v2102 = vmax.f32 %v1846, 0.0
    %v2103 = vmax.f32 %v1847, 0.0
    %v2104 = vmax.f32 %v1848, 0.0
    %v2105 = vmax.f32 %v1849, 0.0
    %v2106 = vmax.f32 %v1850, 0.0
    %v2107 = vmax.f32 %v1851, 0.0
    %v2108 = vmax.f32 %v1852, 0.0
    %v2109 = vmax.f32 %v1853, 0.0
    %v2110 = vmax.f32 %v1854, 0.0
    %v2111 = vmax.f32 %v1855, 0.0
    %v2112 = vmax.f32 %v1856, 0.0
    %v2113 = vmax.f32 %v1857, 0.0
    %v2114 = vmax.f32 %v1858, 0.0
    %v2115 = vmax.f32 %v1859, 0.0
    %v2116 = vmax.f32 %v1860, 0.0
    %v2117 = vmax.f32 %v1861, 0.0
    %v2118 = vmax.f32 %v1862, 0.0
    %v2119 = vmax.f32 %v1863, 0.0
    %v2120 = vmax.f32 %v1864, 0.0
    %v2121 = vmax.f32 %v1865, 0.0
    %v2122 = vmax.f32 %v1866, 0.0
    %v2123 = vmax.f32 %v1867, 0.0
    %v2124 = vmax.f32 %v1868, 0.0
    %v2125 = vmax.f32 %v1869, 0.0
    %v2126 = vmax.f32 %v1870, 0.0
    %v2127 = vmax.f32 %v1871, 0.0
    %v2128 = vmax.f32 %v1872, 0.0
    %v2129 = vmax.f32 %v1873, 0.0
    %v2130 = vmax.f32 %v1874, 0.0
    %v2131 = vmax.f32 %v1875, 0.0
    %v2132 = vmax.f32 %v1876, 0.0
    %v2133 = vmax.f32 %v1877, 0.0
    %v2134 = vmax.f32 %v1878, 0.0
    %v2135 = vmax.f32 %v1879, 0.0
    %v2136 = vmax.f32 %v1880, 0.0
    %v2137 = vmax.f32 %v1881, 0.0
    %v2138 = vmax.f32 %v1882, 0.0
    %v2139 = vmax.f32 %v1883, 0.0
    %v2140 = vmax.f32 %v1884, 0.0
    %v2141 = vmax.f32 %v1885, 0.0
    %v2142 = vmax.f32 %v1886, 0.0
    %v2143 = vmax.f32 %v1887, 0.0
    %v2144 = vmax.f32 %v1888, 0.0
    %v2145 = vmax.f32 %v1889, 0.0
    %v2146 = vmax.f32 %v1890, 0.0
    %v2147 = vmax.f32 %v1891, 0.0
    %v2148 = vmax.f32 %v1892, 0.0
    %v2149 = vmax.f32 %v1893, 0.0
    %v2150 = vmax.f32 %v1894, 0.0
    %v2151 = vmax.f32 %v1895, 0.0
    %v2152 = vmax.f32 %v1896, 0.0
    %v2153 = vmax.f32 %v1897, 0.0
    %v2154 = vmax.f32 %v1898, 0.0
    %v2155 = vmax.f32 %v1899, 0.0
    %v2156 = vmax.f32 %v1900, 0.0
    %v2157 = vmax.f32 %v1901, 0.0
    %v2158 = vmax.f32 %v1902, 0.0
    %v2159 = vmax.f32 %v1903, 0.0
    %v2160 = vmax.f32 %v1904, 0.0
    %v2161 = vmax.f32 %v1905, 0.0
    %v2162 = vmax.f32 %v1906, 0.0
    %v2163 = vmax.f32 %v1907, 0.0
    %v2164 = vmax.f32 %v1908, 0.0
    %v2165 = vmax.f32 %v1909, 0.0
    %v2166 = vmax.f32 %v1910, 0.0
    %v2167 = vmax.f32 %v1911, 0.0
    %v2168 = vmax.f32 %v1912, 0.0
    %v2169 = vmax.f32 %v1913, 0.0
    %v2170 = vmax.f32 %v1914, 0.0
    %v2171 = vmax.f32 %v1915, 0.0
    %v2172 = vmax.f32 %v1916, 0.0
    %v2173 = vmax.f32 %v1917, 0.0
    %v2174 = vmax.f32 %v1918, 0.0
    %v2175 = vmax.f32 %v1919, 0.0
    %v2176 = vmax.f32 %v1920, 0.0
    %v2177 = vmax.f32 %v1921, 0.0
    %v2178 = vmax.f32 %v1922, 0.0
    %v2179 = vmax.f32 %v1923, 0.0
    %v2180 = vmax.f32 %v1924, 0.0
    %v2181 = vmax.f32 %v1925, 0.0
    %v2182 = vmax.f32 %v1926, 0.0
    %v2183 = vmax.f32 %v1927, 0.0
    %v2184 = vmax.f32 %v1928, 0.0
    %v2185 = vmax.f32 %v1929, 0.0
    %v2186 = vmax.f32 %v1930, 0.0
    %v2187 = vmax.f32 %v1931, 0.0
    %v2188 = vmax.f32 %v1932, 0.0
    %v2189 = vmax.f32 %v1933, 0.0
    %v2190 = vmax.f32 %v1934, 0.0
    %v2191 = vmax.f32 %v1935, 0.0
    %v2192 = vmax.f32 %v1936, 0.0
    %v2193 = vmax.f32 %v1937, 0.0
    %v2194 = vmax.f32 %v1938, 0.0
    %v2195 = vmax.f32 %v1939, 0.0
    %v2196 = vmax.f32 %v1940, 0.0
    %v2197 = vmax.f32 %v1941, 0.0
    %v2198 = vmax.f32 %v1942, 0.0
    %v2199 = vmax.f32 %v1943, 0.0
    %v2200 = vmax.f32 %v1944, 0.0
    %v2201 = vmax.f32 %v1945, 0.0
    %v2202 = vmax.f32 %v1946, 0.0
    %v2203 = vmax.f32 %v1947, 0.0
    %v2204 = vmax.f32 %v1948, 0.0
    %v2205 = vmax.f32 %v1949, 0.0
    %v2206 = vmax.f32 %v1950, 0.0
    %v2207 = vmax.f32 %v1951, 0.0
    %v2208 = vmax.f32 %v1952, 0.0
    %v2209 = vmax.f32 %v1953, 0.0
    %v2210 = vmax.f32 %v1954, 0.0
    %v2211 = vmax.f32 %v1955, 0.0
    %v2212 = vmax.f32 %v1956, 0.0
    %v2213 = vmax.f32 %v1957, 0.0
    %v2214 = vmax.f32 %v1958, 0.0
    %v2215 = vmax.f32 %v1959, 0.0
    %v2216 = vmax.f32 %v1960, 0.0
    %v2217 = vmax.f32 %v1961, 0.0
    %v2218 = vmax.f32 %v1962, 0.0
    %v2219 = vmax.f32 %v1963, 0.0
    %v2220 = vmax.f32 %v1964, 0.0
    %v2221 = vmax.f32 %v1965, 0.0
    %v2222 = vmax.f32 %v1966, 0.0
    %v2223 = vmax.f32 %v1967, 0.0
    %v2224 = vmax.f32 %v1968, 0.0
    %v2225 = vmax.f32 %v1969, 0.0
    %v2226 = vmax.f32 %v1970, 0.0
    %v2227 = vmax.f32 %v1971, 0.0
    %v2228 = vmax.f32 %v1972, 0.0
    %v2229 = vmax.f32 %v1973, 0.0
    %v2230 = vmax.f32 %v1974, 0.0
    %v2231 = vmax.f32 %v1975, 0.0
    %v2232 = vmax.f32 %v1976, 0.0
    %v2233 = vmax.f32 %v1977, 0.0
    %v2234 = vmax.f32 %v1978, 0.0
    %v2235 = vmax.f32 %v1979, 0.0
    %v2236 = vmax.f32 %v1980, 0.0
    %v2237 = vmax.f32 %v1981, 0.0
    %v2238 = vmax.f32 %v1982, 0.0
    %v2239 = vmax.f32 %v1983, 0.0
    %v2240 = vmax.f32 %v1984, 0.0
    %v2241 = vmax.f32 %v1985, 0.0
    %v2242 = vmax.f32 %v1986, 0.0
    %v2243 = vmax.f32 %v1987, 0.0
    %v2244 = vmax.f32 %v1988, 0.0
    %v2245 = vmax.f32 %v1989, 0.0
    %v2246 = vmax.f32 %v1990, 0.0
    %v2247 = vmax.f32 %v1991, 0.0
    %v2248 = vmax.f32 %v1992, 0.0
    %v2249 = vmax.f32 %v1993, 0.0
    %v2250 = vmax.f32 %v1994, 0.0
    %v2251 = vmax.f32 %v1995, 0.0
    %v2252 = vmax.f32 %v1996, 0.0
    %v2253 = vmax.f32 %v1997, 0.0
    %v2254 = vmax.f32 %v1998, 0.0
    %v2255 = vmax.f32 %v1999, 0.0
    %v2256 = vmax.f32 %v2000, 0.0
    %v2257 = vmax.f32 %v2001, 0.0
    %v2258 = vmax.f32 %v2002, 0.0
    %v2259 = vmax.f32 %v2003, 0.0
    %v2260 = vmax.f32 %v2004, 0.0
    %v2261 = vmax.f32 %v2005, 0.0
    %v2262 = vmax.f32 %v2006, 0.0
    %v2263 = vmax.f32 %v2007, 0.0
    %v2264 = vmax.f32 %v2008, 0.0
    %v2265 = vmax.f32 %v2009, 0.0
    %v2266 = vmax.f32 %v2010, 0.0
    %v2267 = vmax.f32 %v2011, 0.0
    %v2268 = vmax.f32 %v2012, 0.0
    %v2269 = vmax.f32 %v2013, 0.0
    %v2270 = vmax.f32 %v2014, 0.0
    %v2271 = vmax.f32 %v2015, 0.0
    %v2272 = vmax.f32 %v2016, 0.0
    %v2273 = vmax.f32 %v2017, 0.0
    %v2274 = vmax.f32 %v2018, 0.0
    %v2275 = vmax.f32 %v2019, 0.0
    %v2276 = vmax.f32 %v2020, 0.0
    %v2277 = vmax.f32 %v2021, 0.0
    %v2278 = vmax.f32 %v2022, 0.0
    %v2279 = vmax.f32 %v2023, 0.0
    %v2280 = vmax.f32 %v2024, 0.0
    %v2281 = vmax.f32 %v2025, 0.0
    %v2282 = vmax.f32 %v2026, 0.0
    %v2283 = vmax.f32 %v2027, 0.0
    %v2284 = vmax.f32 %v2028, 0.0
    %v2285 = vmax.f32 %v2029, 0.0
    %v2286 = vmax.f32 %v2030, 0.0
    %v2287 = vmax.f32 %v2031, 0.0
    %v2288 = vmax.f32 %v2032, 0.0
    %v2289 = vmax.f32 %v2033, 0.0
    %v2290 = vmax.f32 %v2034, 0.0
    %v2291 = vmax.f32 %v2035, 0.0
    %v2292 = vmax.f32 %v2036, 0.0
    %v2293 = vmax.f32 %v2037, 0.0
    %v2294 = vmax.f32 %v2038, 0.0
    %v2295 = vmax.f32 %v2039, 0.0
    %v2296 = vmax.f32 %v2040, 0.0
    %v2297 = vmax.f32 %v2041, 0.0
    %v2298 = vmax.f32 %v2042, 0.0
    %v2299 = vmax.f32 %v2043, 0.0
    %v2300 = vmax.f32 %v2044, 0.0
    %v2301 = vmax.f32 %v2045, 0.0
    %v2302 = vmax.f32 %v2046, 0.0
    %v2303 = vmax.f32 %v2047, 0.0
    %v2304 = vmax.f32 %v2048, 0.0
    %v2305 = vmax.f32 %v2049, 0.0
    %v2306 = vmax.f32 %v2050, 0.0
    %v2307 = vmax.f32 %v2051, 0.0
    %v2308 = vmax.f32 %v2052, 0.0
    %v2309 = vmax.f32 %v2053, 0.0
    %v2310 = vmax.f32 %v2054, 0.0
    %v2311 = vmax.f32 %v2055, 0.0
    %v2312 = vmax.f32 %v2056, 0.0
    %v2313 = vmax.f32 %v2057, 0.0
    %v2314 = vmax.f32 %v2058, 0.0
    %v2315 = vmax.f32 %v2059, 0.0
    %v2316 = vmax.f32 %v2060, 0.0
    %v2317 = vmax.f32 %v2061, 0.0
    %v2318 = vmax.f32 %v2062, 0.0
    %v2319 = vmax.f32 %v2063, 0.0
    %v2320 = vmax.f32 %v2064, 0.0
    %v2321 = vmax.f32 %v2065, 0.0
    %v2322 = vmax.f32 %v2066, 0.0
    %v2323 = vmax.f32 %v2067, 0.0
    %v2324 = vmax.f32 %v2068, 0.0
    %v2325 = vmax.f32 %v2069, 0.0
    %v2326 = vmax.f32 %v2070, 0.0
    %v2327 = vmax.f32 %v2071, 0.0
    %v2328 = vmax.f32 %v2072, 0.0
    %v2329 = vmax.f32 %v2073, 0.0
    %v2330 = vmax.f32 %v2074, 0.0
    %v2331 = vmax.f32 %v2075, 0.0
    %v2332 = vmax.f32 %v2076, 0.0
    %v2333 = vmax.f32 %v2077, 0.0
    %v2334 = vmax.f32 %v2078, 0.0
    %v2335 = vmax.f32 %v2079, 0.0
    %v2336 = vmax.f32 %v2080, 0.0
    %v2337 = vmax.f32 %v2081, 0.0
    %v2338 = vmax.f32 %v2082, 0.0
    %v2339 = vmax.f32 %v2083, 0.0
    %v2340 = vmax.f32 %v2084, 0.0
    %v2341 = vmax.f32 %v2085, 0.0
    %v2342 = vmax.f32 %v2086, 0.0
    %v2343 = vmax.f32 %v2087, 0.0
    %v2344 = vmax.f32 %v2088, 0.0
    %v2345 = vmax.f32 %v2089, 0.0
    %v2346 = vmax.f32 %v2090, 0.0
    %v2347 = vmax.f32 %v2091, 0.0
    %v2348 = vmax.f32 %v2092, 0.0
    %v2349 = vmax.f32 %v2093, 0.0
    %v2350 = vmax.f32 %v2094, 0.0
    %v2351 = vmax.f32 %v2095, 0.0
    %v2352 = vmax.f32 %v2096, 0.0
    %v2353 = vmul.f32 %v2097, %v47
    %v2354 = vmul.f32 %v2098, %v48
    %v2355 = vmul.f32 %v2099, %v49
    %v2356 = vmul.f32 %v2100, %v50
    %v2357 = vmul.f32 %v2101, %v51
    %v2358 = vmul.f32 %v2102, %v52
    %v2359 = vmul.f32 %v2103, %v53
    %v2360 = vmul.f32 %v2104, %v54
    %v2361 = vmul.f32 %v2105, %v55
    %v2362 = vmul.f32 %v2106, %v56
    %v2363 = vmul.f32 %v2107, %v57
    %v2364 = vmul.f32 %v2108, %v58
    %v2365 = vmul.f32 %v2109, %v59
    %v2366 = vmul.f32 %v2110, %v60
    %v2367 = vmul.f32 %v2111, %v61
    %v2368 = vmul.f32 %v2112, %v62
    %v2369 = vmul.f32 %v2113, %v63
    %v2370 = vmul.f32 %v2114, %v64
    %v2371 = vmul.f32 %v2115, %v65
    %v2372 = vmul.f32 %v2116, %v66
    %v2373 = vmul.f32 %v2117, %v67
    %v2374 = vmul.f32 %v2118, %v68
    %v2375 = vmul.f32 %v2119, %v69
    %v2376 = vmul.f32 %v2120, %v70
    %v2377 = vmul.f32 %v2121, %v71
    %v2378 = vmul.f32 %v2122, %v72
    %v2379 = vmul.f32 %v2123, %v73
    %v2380 = vmul.f32 %v2124, %v74
    %v2381 = vmul.f32 %v2125, %v75
    %v2382 = vmul.f32 %v2126, %v76
    %v2383 = vmul.f32 %v2127, %v77
    %v2384 = vmul.f32 %v2128, %v78
    %v2385 = vmul.f32 %v2129, %v79
    %v2386 = vmul.f32 %v2130, %v80
    %v2387 = vmul.f32 %v2131, %v81
    %v2388 = vmul.f32 %v2132, %v82
    %v2389 = vmul.f32 %v2133, %v83
    %v2390 = vmul.f32 %v2134, %v84
    %v2391 = vmul.f32 %v2135, %v85
    %v2392 = vmul.f32 %v2136, %v86
    %v2393 = vmul.f32 %v2137, %v87
    %v2394 = vmul.f32 %v2138, %v88
    %v2395 = vmul.f32 %v2139, %v89
    %v2396 = vmul.f32 %v2140, %v90
    %v2397 = vmul.f32 %v2141, %v91
    %v2398 = vmul.f32 %v2142, %v92
    %v2399 = vmul.f32 %v2143, %v93
    %v2400 = vmul.f32 %v2144, %v94
    %v2401 = vmul.f32 %v2145, %v95
    %v2402 = vmul.f32 %v2146, %v96
    %v2403 = vmul.f32 %v2147, %v97
    %v2404 = vmul.f32 %v2148, %v98
    %v2405 = vmul.f32 %v2149, %v99
    %v2406 = vmul.f32 %v2150, %v100
    %v2407 = vmul.f32 %v2151, %v101
    %v2408 = vmul.f32 %v2152, %v102
    %v2409 = vmul.f32 %v2153, %v103
    %v2410 = vmul.f32 %v2154, %v104
    %v2411 = vmul.f32 %v2155, %v105
    %v2412 = vmul.f32 %v2156, %v106
    %v2413 = vmul.f32 %v2157, %v107
    %v2414 = vmul.f32 %v2158, %v108
    %v2415 = vmul.f32 %v2159, %v109
    %v2416 = vmul.f32 %v2160, %v110
    %v2417 = vmul.f32 %v2161, %v111
    %v2418 = vmul.f32 %v2162, %v112
    %v2419 = vmul.f32 %v2163, %v113
    %v2420 = vmul.f32 %v2164, %v114
    %v2421 = vmul.f32 %v2165, %v115
    %v2422 = vmul.f32 %v2166, %v116
    %v2423 = vmul.f32 %v2167, %v117
    %v2424 = vmul.f32 %v2168, %v118
    %v2425 = vmul.f32 %v2169, %v119
    %v2426 = vmul.f32 %v2170, %v120
    %v2427 = vmul.f32 %v2171, %v121
    %v2428 = vmul.f32 %v2172, %v122
    %v2429 = vmul.f32 %v2173, %v123
    %v2430 = vmul.f32 %v2174, %v124
    %v2431 = vmul.f32 %v2175, %v125
    %v2432 = vmul.f32 %v2176, %v126
    %v2433 = vmul.f32 %v2177, %v127
    %v2434 = vmul.f32 %v2178, %v128
    %v2435 = vmul.f32 %v2179, %v129
    %v2436 = vmul.f32 %v2180, %v130
    %v2437 = vmul.f32 %v2181, %v131
    %v2438 = vmul.f32 %v2182, %v132
    %v2439 = vmul.f32 %v2183, %v133
    %v2440 = vmul.f32 %v2184, %v134
    %v2441 = vmul.f32 %v2185, %v135
    %v2442 = vmul.f32 %v2186, %v136
    %v2443 = vmul.f32 %v2187, %v137
    %v2444 = vmul.f32 %v2188, %v138
    %v2445 = vmul.f32 %v2189, %v139
    %v2446 = vmul.f32 %v2190, %v140
    %v2447 = vmul.f32 %v2191, %v141
    %v2448 = vmul.f32 %v2192, %v142
    %v2449 = vmul.f32 %v2193, %v143
    %v2450 = vmul.f32 %v2194, %v144
    %v2451 = vmul.f32 %v2195, %v145
    %v2452 = vmul.f32 %v2196, %v146
    %v2453 = vmul.f32 %v2197, %v147
    %v2454 = vmul.f32 %v2198, %v148
    %v2455 = vmul.f32 %v2199, %v149
    %v2456 = vmul.f32 %v2200, %v150
    %v2457 = vmul.f32 %v2201, %v151
    %v2458 = vmul.f32 %v2202, %v152
    %v2459 = vmul.f32 %v2203, %v153
    %v2460 = vmul.f32 %v2204, %v154
    %v2461 = vmul.f32 %v2205, %v155
    %v2462 = vmul.f32 %v2206, %v156
    %v2463 = vmul.f32 %v2207, %v157
    %v2464 = vmul.f32 %v2208, %v158
    %v2465 = vmul.f32 %v2209, %v159
    %v2466 = vmul.f32 %v2210, %v160
    %v2467 = vmul.f32 %v2211, %v161
    %v2468 = vmul.f32 %v2212, %v162
    %v2469 = vmul.f32 %v2213, %v163
    %v2470 = vmul.f32 %v2214, %v164
    %v2471 = vmul.f32 %v2215, %v165
    %v2472 = vmul.f32 %v2216, %v166
    %v2473 = vmul.f32 %v2217, %v167
    %v2474 = vmul.f32 %v2218, %v168
    %v2475 = vmul.f32 %v2219, %v169
    %v2476 = vmul.f32 %v2220, %v170
    %v2477 = vmul.f32 %v2221, %v171
    %v2478 = vmul.f32 %v2222, %v172
    %v2479 = vmul.f32 %v2223, %v173
    %v2480 = vmul.f32 %v2224, %v174
    %v2481 = vmul.f32 %v2225, %v175
    %v2482 = vmul.f32 %v2226, %v176
    %v2483 = vmul.f32 %v2227, %v177
    %v2484 = vmul.f32 %v2228, %v178
    %v2485 = vmul.f32 %v2229, %v179
    %v2486 = vmul.f32 %v2230, %v180
    %v2487 = vmul.f32 %v2231, %v181
    %v2488 = vmul.f32 %v2232, %v182
    %v2489 = vmul.f32 %v2233, %v183
    %v2490 = vmul.f32 %v2234, %v184
    %v2491 = vmul.f32 %v2235, %v185
    %v2492 = vmul.f32 %v2236, %v186
    %v2493 = vmul.f32 %v2237, %v187
    %v2494 = vmul.f32 %v2238, %v188
    %v2495 = vmul.f32 %v2239, %v189
    %v2496 = vmul.f32 %v2240, %v190
    %v2497 = vmul.f32 %v2241, %v191
    %v2498 = vmul.f32 %v2242, %v192
    %v2499 = vmul.f32 %v2243, %v193
    %v2500 = vmul.f32 %v2244, %v194
    %v2501 = vmul.f32 %v2245, %v195
    %v2502 = vmul.f32 %v2246, %v196
    %v2503 = vmul.f32 %v2247, %v197
    %v2504 = vmul.f32 %v2248, %v198
    %v2505 = vmul.f32 %v2249, %v199
    %v2506 = vmul.f32 %v2250, %v200
    %v2507 = vmul.f32 %v2251, %v201
    %v2508 = vmul.f32 %v2252, %v202
    %v2509 = vmul.f32 %v2253, %v203
    %v2510 = vmul.f32 %v2254, %v204
    %v2511 = vmul.f32 %v2255, %v205
    %v2512 = vmul.f32 %v2256, %v206
    %v2513 = vmul.f32 %v2257, %v207
    %v2514 = vmul.f32 %v2258, %v208
    %v2515 = vmul.f32 %v2259, %v209
    %v2516 = vmul.f32 %v2260, %v210
    %v2517 = vmul.f32 %v2261, %v211
    %v2518 = vmul.f32 %v2262, %v212
    %v2519 = vmul.f32 %v2263, %v213
    %v2520 = vmul.f32 %v2264, %v214
    %v2521 = vmul.f32 %v2265, %v215
    %v2522 = vmul.f32 %v2266, %v216
    %v2523 = vmul.f32 %v2267, %v217
    %v2524 = vmul.f32 %v2268, %v218
    %v2525 = vmul.f32 %v2269, %v219
    %v2526 = vmul.f32 %v2270, %v220
    %v2527 = vmul.f32 %v2271, %v221
    %v2528 = vmul.f32 %v2272, %v222
    %v2529 = vmul.f32 %v2273, %v223
    %v2530 = vmul.f32 %v2274, %v224
    %v2531 = vmul.f32 %v2275, %v225
    %v2532 = vmul.f32 %v2276, %v226
    %v2533 = vmul.f32 %v2277, %v227
    %v2534 = vmul.f32 %v2278, %v228
    %v2535 = vmul.f32 %v2279, %v229
    %v2536 = vmul.f32 %v2280, %v230
    %v2537 = vmul.f32 %v2281, %v231
    %v2538 = vmul.f32 %v2282, %v232
    %v2539 = vmul.f32 %v2283, %v233
    %v2540 = vmul.f32 %v2284, %v234
    %v2541 = vmul.f32 %v2285, %v235
    %v2542 = vmul.f32 %v2286, %v236
    %v2543 = vmul.f32 %v2287, %v237
    %v2544 = vmul.f32 %v2288, %v238
    %v2545 = vmul.f32 %v2289, %v239
    %v2546 = vmul.f32 %v2290, %v240
    %v2547 = vmul.f32 %v2291, %v241
    %v2548 = vmul.f32 %v2292, %v242
    %v2549 = vmul.f32 %v2293, %v243
    %v2550 = vmul.f32 %v2294, %v244
    %v2551 = vmul.f32 %v2295, %v245
    %v2552 = vmul.f32 %v2296, %v246
    %v2553 = vmul.f32 %v2297, %v247
    %v2554 = vmul.f32 %v2298, %v248
    %v2555 = vmul.f32 %v2299, %v249
    %v2556 = vmul.f32 %v2300, %v250
    %v2557 = vmul.f32 %v2301, %v251
    %v2558 = vmul.f32 %v2302, %v252
    %v2559 = vmul.f32 %v2303, %v253
    %v2560 = vmul.f32 %v2304, %v254
    %v2561 = vmul.f32 %v2305, %v255
    %v2562 = vmul.f32 %v2306, %v256
    %v2563 = vmul.f32 %v2307, %v257
    %v2564 = vmul.f32 %v2308, %v258
    %v2565 = vmul.f32 %v2309, %v259
    %v2566 = vmul.f32 %v2310, %v260
    %v2567 = vmul.f32 %v2311, %v261
    %v2568 = vmul.f32 %v2312, %v262
    %v2569 = vmul.f32 %v2313, %v263
    %v2570 = vmul.f32 %v2314, %v264
    %v2571 = vmul.f32 %v2315, %v265
    %v2572 = vmul.f32 %v2316, %v266
    %v2573 = vmul.f32 %v2317, %v267
    %v2574 = vmul.f32 %v2318, %v268
    %v2575 = vmul.f32 %v2319, %v269
    %v2576 = vmul.f32 %v2320, %v270
    %v2577 = vmul.f32 %v2321, %v271
    %v2578 = vmul.f32 %v2322, %v272
    %v2579 = vmul.f32 %v2323, %v273
    %v2580 = vmul.f32 %v2324, %v274
    %v2581 = vmul.f32 %v2325, %v275
    %v2582 = vmul.f32 %v2326, %v276
    %v2583 = vmul.f32 %v2327, %v277
    %v2584 = vmul.f32 %v2328, %v278
    %v2585 = vmul.f32 %v2329, %v279
    %v2586 = vmul.f32 %v2330, %v280
    %v2587 = vmul.f32 %v2331, %v281
    %v2588 = vmul.f32 %v2332, %v282
    %v2589 = vmul.f32 %v2333, %v283
    %v2590 = vmul.f32 %v2334, %v284
    %v2591 = vmul.f32 %v2335, %v285
    %v2592 = vmul.f32 %v2336, %v286
    %v2593 = vmul.f32 %v2337, %v287
    %v2594 = vmul.f32 %v2338, %v288
    %v2595 = vmul.f32 %v2339, %v289
    %v2596 = vmul.f32 %v2340, %v290
    %v2597 = vmul.f32 %v2341, %v291
    %v2598 = vmul.f32 %v2342, %v292
    %v2599 = vmul.f32 %v2343, %v293
    %v2600 = vmul.f32 %v2344, %v294
    %v2601 = vmul.f32 %v2345, %v295
    %v2602 = vmul.f32 %v2346, %v296
    %v2603 = vmul.f32 %v2347, %v297
    %v2604 = vmul.f32 %v2348, %v298
    %v2605 = vmul.f32 %v2349, %v299
    %v2606 = vmul.f32 %v2350, %v300
    %v2607 = vmul.f32 %v2351, %v301
    %v2608 = vmul.f32 %v2352, %v302
    %2609 = vst [vmem:[#allocation8] sm:$0xff] %v2353
    %2610 = vst [vmem:[#allocation8 + $0x8] sm:$0xff] %v2354
    %2611 = vst [vmem:[#allocation8 + $0x10] sm:$0xff] %v2355
    %2612 = vst [vmem:[#allocation8 + $0x18] sm:$0xff] %v2356
    %2613 = vst [vmem:[#allocation8 + $0x20] sm:$0xff] %v2357
    %2614 = vst [vmem:[#allocation8 + $0x28] sm:$0xff] %v2358
    %2615 = vst [vmem:[#allocation8 + $0x30] sm:$0xff] %v2359
    %2616 = vst [vmem:[#allocation8 + $0x38] sm:$0xff] %v2360
    %2617 = vst [vmem:[#allocation8 + $0x40] sm:$0xff] %v2361
    %2618 = vst [vmem:[#allocation8 + $0x48] sm:$0xff] %v2362
    %2619 = vst [vmem:[#allocation8 + $0x50] sm:$0xff] %v2363
    %2620 = vst [vmem:[#allocation8 + $0x58] sm:$0xff] %v2364
    %2621 = vst [vmem:[#allocation8 + $0x60] sm:$0xff] %v2365
    %2622 = vst [vmem:[#allocation8 + $0x68] sm:$0xff] %v2366
    %2623 = vst [vmem:[#allocation8 + $0x70] sm:$0xff] %v2367
    %2624 = vst [vmem:[#allocation8 + $0x78] sm:$0xff] %v2368
    %2625 = vst [vmem:[#allocation8 + $0x80] sm:$0xff] %v2369
    %2626 = vst [vmem:[#allocation8 + $0x88] sm:$0xff] %v2370
    %2627 = vst [vmem:[#allocation8 + $0x90] sm:$0xff] %v2371
    %2628 = vst [vmem:[#allocation8 + $0x98] sm:$0xff] %v2372
    %2629 = vst [vmem:[#allocation8 + $0xa0] sm:$0xff] %v2373
    %2630 = vst [vmem:[#allocation8 + $0xa8] sm:$0xff] %v2374
    %2631 = vst [vmem:[#allocation8 + $0xb0] sm:$0xff] %v2375
    %2632 = vst [vmem:[#allocation8 + $0xb8] sm:$0xff] %v2376
    %2633 = vst [vmem:[#allocation8 + $0xc0] sm:$0xff] %v2377
    %2634 = vst [vmem:[#allocation8 + $0xc8] sm:$0xff] %v2378
    %2635 = vst [vmem:[#allocation8 + $0xd0] sm:$0xff] %v2379
    %2636 = vst [vmem:[#allocation8 + $0xd8] sm:$0xff] %v2380
    %2637 = vst [vmem:[#allocation8 + $0xe0] sm:$0xff] %v2381
    %2638 = vst [vmem:[#allocation8 + $0xe8] sm:$0xff] %v2382
    %2639 = vst [vmem:[#allocation8 + $0xf0] sm:$0xff] %v2383
    %2640 = vst [vmem:[#allocation8 + $0xf8] sm:$0xff] %v2384
    %2641 = vst [vmem:[#allocation8 + $0x100] sm:$0xff] %v2385
    %2642 = vst [vmem:[#allocation8 + $0x108] sm:$0xff] %v2386
    %2643 = vst [vmem:[#allocation8 + $0x110] sm:$0xff] %v2387
    %2644 = vst [vmem:[#allocation8 + $0x118] sm:$0xff] %v2388
    %2645 = vst [vmem:[#allocation8 + $0x120] sm:$0xff] %v2389
    %2646 = vst [vmem:[#allocation8 + $0x128] sm:$0xff] %v2390
    %2647 = vst [vmem:[#allocation8 + $0x130] sm:$0xff] %v2391
    %2648 = vst [vmem:[#allocation8 + $0x138] sm:$0xff] %v2392
    %2649 = vst [vmem:[#allocation8 + $0x140] sm:$0xff] %v2393
    %2650 = vst [vmem:[#allocation8 + $0x148] sm:$0xff] %v2394
    %2651 = vst [vmem:[#allocation8 + $0x150] sm:$0xff] %v2395
    %2652 = vst [vmem:[#allocation8 + $0x158] sm:$0xff] %v2396
    %2653 = vst [vmem:[#allocation8 + $0x160] sm:$0xff] %v2397
    %2654 = vst [vmem:[#allocation8 + $0x168] sm:$0xff] %v2398
    %2655 = vst [vmem:[#allocation8 + $0x170] sm:$0xff] %v2399
    %2656 = vst [vmem:[#allocation8 + $0x178] sm:$0xff] %v2400
    %2657 = vst [vmem:[#allocation8 + $0x180] sm:$0xff] %v2401
    %2658 = vst [vmem:[#allocation8 + $0x188] sm:$0xff] %v2402
    %2659 = vst [vmem:[#allocation8 + $0x190] sm:$0xff] %v2403
    %2660 = vst [vmem:[#allocation8 + $0x198] sm:$0xff] %v2404
    %2661 = vst [vmem:[#allocation8 + $0x1a0] sm:$0xff] %v2405
    %2662 = vst [vmem:[#allocation8 + $0x1a8] sm:$0xff] %v2406
    %2663 = vst [vmem:[#allocation8 + $0x1b0] sm:$0xff] %v2407
    %2664 = vst [vmem:[#allocation8 + $0x1b8] sm:$0xff] %v2408
    %2665 = vst [vmem:[#allocation8 + $0x1c0] sm:$0xff] %v2409
    %2666 = vst [vmem:[#allocation8 + $0x1c8] sm:$0xff] %v2410
    %2667 = vst [vmem:[#allocation8 + $0x1d0] sm:$0xff] %v2411
    %2668 = vst [vmem:[#allocation8 + $0x1d8] sm:$0xff] %v2412
    %2669 = vst [vmem:[#allocation8 + $0x1e0] sm:$0xff] %v2413
    %2670 = vst [vmem:[#allocation8 + $0x1e8] sm:$0xff] %v2414
    %2671 = vst [vmem:[#allocation8 + $0x1f0] sm:$0xff] %v2415
    %2672 = vst [vmem:[#allocation8 + $0x1f8] sm:$0xff] %v2416
    %2673 = vst [vmem:[#allocation8 + $0x200] sm:$0xff] %v2417
    %2674 = vst [vmem:[#allocation8 + $0x208] sm:$0xff] %v2418
    %2675 = vst [vmem:[#allocation8 + $0x210] sm:$0xff] %v2419
    %2676 = vst [vmem:[#allocation8 + $0x218] sm:$0xff] %v2420
    %2677 = vst [vmem:[#allocation8 + $0x220] sm:$0xff] %v2421
    %2678 = vst [vmem:[#allocation8 + $0x228] sm:$0xff] %v2422
    %2679 = vst [vmem:[#allocation8 + $0x230] sm:$0xff] %v2423
    %2680 = vst [vmem:[#allocation8 + $0x238] sm:$0xff] %v2424
    %2681 = vst [vmem:[#allocation8 + $0x240] sm:$0xff] %v2425
    %2682 = vst [vmem:[#allocation8 + $0x248] sm:$0xff] %v2426
    %2683 = vst [vmem:[#allocation8 + $0x250] sm:$0xff] %v2427
    %2684 = vst [vmem:[#allocation8 + $0x258] sm:$0xff] %v2428
    %2685 = vst [vmem:[#allocation8 + $0x260] sm:$0xff] %v2429
    %2686 = vst [vmem:[#allocation8 + $0x268] sm:$0xff] %v2430
    %2687 = vst [vmem:[#allocation8 + $0x270] sm:$0xff] %v2431
    %2688 = vst [vmem:[#allocation8 + $0x278] sm:$0xff] %v2432
    %2689 = vst [vmem:[#allocation8 + $0x280] sm:$0xff] %v2433
    %2690 = vst [vmem:[#allocation8 + $0x288] sm:$0xff] %v2434
    %2691 = vst [vmem:[#allocation8 + $0x290] sm:$0xff] %v2435
    %2692 = vst [vmem:[#allocation8 + $0x298] sm:$0xff] %v2436
    %2693 = vst [vmem:[#allocation8 + $0x2a0] sm:$0xff] %v2437
    %2694 = vst [vmem:[#allocation8 + $0x2a8] sm:$0xff] %v2438
    %2695 = vst [vmem:[#allocation8 + $0x2b0] sm:$0xff] %v2439
    %2696 = vst [vmem:[#allocation8 + $0x2b8] sm:$0xff] %v2440
    %2697 = vst [vmem:[#allocation8 + $0x2c0] sm:$0xff] %v2441
    %2698 = vst [vmem:[#allocation8 + $0x2c8] sm:$0xff] %v2442
    %2699 = vst [vmem:[#allocation8 + $0x2d0] sm:$0xff] %v2443
    %2700 = vst [vmem:[#allocation8 + $0x2d8] sm:$0xff] %v2444
    %2701 = vst [vmem:[#allocation8 + $0x2e0] sm:$0xff] %v2445
    %2702 = vst [vmem:[#allocation8 + $0x2e8] sm:$0xff] %v2446
    %2703 = vst [vmem:[#allocation8 + $0x2f0] sm:$0xff] %v2447
    %2704 = vst [vmem:[#allocation8 + $0x2f8] sm:$0xff] %v2448
    %2705 = vst [vmem:[#allocation8 + $0x300] sm:$0xff] %v2449
    %2706 = vst [vmem:[#allocation8 + $0x308] sm:$0xff] %v2450
    %2707 = vst [vmem:[#allocation8 + $0x310] sm:$0xff] %v2451
    %2708 = vst [vmem:[#allocation8 + $0x318] sm:$0xff] %v2452
    %2709 = vst [vmem:[#allocation8 + $0x320] sm:$0xff] %v2453
    %2710 = vst [vmem:[#allocation8 + $0x328] sm:$0xff] %v2454
    %2711 = vst [vmem:[#allocation8 + $0x330] sm:$0xff] %v2455
    %2712 = vst [vmem:[#allocation8 + $0x338] sm:$0xff] %v2456
    %2713 = vst [vmem:[#allocation8 + $0x340] sm:$0xff] %v2457
    %2714 = vst [vmem:[#allocation8 + $0x348] sm:$0xff] %v2458
    %2715 = vst [vmem:[#allocation8 + $0x350] sm:$0xff] %v2459
    %2716 = vst [vmem:[#allocation8 + $0x358] sm:$0xff] %v2460
    %2717 = vst [vmem:[#allocation8 + $0x360] sm:$0xff] %v2461
    %2718 = vst [vmem:[#allocation8 + $0x368] sm:$0xff] %v2462
    %2719 = vst [vmem:[#allocation8 + $0x370] sm:$0xff] %v2463
    %2720 = vst [vmem:[#allocation8 + $0x378] sm:$0xff] %v2464
    %2721 = vst [vmem:[#allocation8 + $0x380] sm:$0xff] %v2465
    %2722 = vst [vmem:[#allocation8 + $0x388] sm:$0xff] %v2466
    %2723 = vst [vmem:[#allocation8 + $0x390] sm:$0xff] %v2467
    %2724 = vst [vmem:[#allocation8 + $0x398] sm:$0xff] %v2468
    %2725 = vst [vmem:[#allocation8 + $0x3a0] sm:$0xff] %v2469
    %2726 = vst [vmem:[#allocation8 + $0x3a8] sm:$0xff] %v2470
    %2727 = vst [vmem:[#allocation8 + $0x3b0] sm:$0xff] %v2471
    %2728 = vst [vmem:[#allocation8 + $0x3b8] sm:$0xff] %v2472
    %2729 = vst [vmem:[#allocation8 + $0x3c0] sm:$0xff] %v2473
    %2730 = vst [vmem:[#allocation8 + $0x3c8] sm:$0xff] %v2474
    %2731 = vst [vmem:[#allocation8 + $0x3d0] sm:$0xff] %v2475
    %2732 = vst [vmem:[#allocation8 + $0x3d8] sm:$0xff] %v2476
    %2733 = vst [vmem:[#allocation8 + $0x3e0] sm:$0xff] %v2477
    %2734 = vst [vmem:[#allocation8 + $0x3e8] sm:$0xff] %v2478
    %2735 = vst [vmem:[#allocation8 + $0x3f0] sm:$0xff] %v2479
    %2736 = vst [vmem:[#allocation8 + $0x3f8] sm:$0xff] %v2480
    %2737 = vst [vmem:[#allocation8 + $0x400] sm:$0xff] %v2481
    %2738 = vst [vmem:[#allocation8 + $0x408] sm:$0xff] %v2482
    %2739 = vst [vmem:[#allocation8 + $0x410] sm:$0xff] %v2483
    %2740 = vst [vmem:[#allocation8 + $0x418] sm:$0xff] %v2484
    %2741 = vst [vmem:[#allocation8 + $0x420] sm:$0xff] %v2485
    %2742 = vst [vmem:[#allocation8 + $0x428] sm:$0xff] %v2486
    %2743 = vst [vmem:[#allocation8 + $0x430] sm:$0xff] %v2487
    %2744 = vst [vmem:[#allocation8 + $0x438] sm:$0xff] %v2488
    %2745 = vst [vmem:[#allocation8 + $0x440] sm:$0xff] %v2489
    %2746 = vst [vmem:[#allocation8 + $0x448] sm:$0xff] %v2490
    %2747 = vst [vmem:[#allocation8 + $0x450] sm:$0xff] %v2491
    %2748 = vst [vmem:[#allocation8 + $0x458] sm:$0xff] %v2492
    %2749 = vst [vmem:[#allocation8 + $0x460] sm:$0xff] %v2493
    %2750 = vst [vmem:[#allocation8 + $0x468] sm:$0xff] %v2494
    %2751 = vst [vmem:[#allocation8 + $0x470] sm:$0xff] %v2495
    %2752 = vst [vmem:[#allocation8 + $0x478] sm:$0xff] %v2496
    %2753 = vst [vmem:[#allocation8 + $0x480] sm:$0xff] %v2497
    %2754 = vst [vmem:[#allocation8 + $0x488] sm:$0xff] %v2498
    %2755 = vst [vmem:[#allocation8 + $0x490] sm:$0xff] %v2499
    %2756 = vst [vmem:[#allocation8 + $0x498] sm:$0xff] %v2500
    %2757 = vst [vmem:[#allocation8 + $0x4a0] sm:$0xff] %v2501
    %2758 = vst [vmem:[#allocation8 + $0x4a8] sm:$0xff] %v2502
    %2759 = vst [vmem:[#allocation8 + $0x4b0] sm:$0xff] %v2503
    %2760 = vst [vmem:[#allocation8 + $0x4b8] sm:$0xff] %v2504
    %2761 = vst [vmem:[#allocation8 + $0x4c0] sm:$0xff] %v2505
    %2762 = vst [vmem:[#allocation8 + $0x4c8] sm:$0xff] %v2506
    %2763 = vst [vmem:[#allocation8 + $0x4d0] sm:$0xff] %v2507
    %2764 = vst [vmem:[#allocation8 + $0x4d8] sm:$0xff] %v2508
    %2765 = vst [vmem:[#allocation8 + $0x4e0] sm:$0xff] %v2509
    %2766 = vst [vmem:[#allocation8 + $0x4e8] sm:$0xff] %v2510
    %2767 = vst [vmem:[#allocation8 + $0x4f0] sm:$0xff] %v2511
    %2768 = vst [vmem:[#allocation8 + $0x4f8] sm:$0xff] %v2512
    %2769 = vst [vmem:[#allocation8 + $0x500] sm:$0xff] %v2513
    %2770 = vst [vmem:[#allocation8 + $0x508] sm:$0xff] %v2514
    %2771 = vst [vmem:[#allocation8 + $0x510] sm:$0xff] %v2515
    %2772 = vst [vmem:[#allocation8 + $0x518] sm:$0xff] %v2516
    %2773 = vst [vmem:[#allocation8 + $0x520] sm:$0xff] %v2517
    %2774 = vst [vmem:[#allocation8 + $0x528] sm:$0xff] %v2518
    %2775 = vst [vmem:[#allocation8 + $0x530] sm:$0xff] %v2519
    %2776 = vst [vmem:[#allocation8 + $0x538] sm:$0xff] %v2520
    %2777 = vst [vmem:[#allocation8 + $0x540] sm:$0xff] %v2521
    %2778 = vst [vmem:[#allocation8 + $0x548] sm:$0xff] %v2522
    %2779 = vst [vmem:[#allocation8 + $0x550] sm:$0xff] %v2523
    %2780 = vst [vmem:[#allocation8 + $0x558] sm:$0xff] %v2524
    %2781 = vst [vmem:[#allocation8 + $0x560] sm:$0xff] %v2525
    %2782 = vst [vmem:[#allocation8 + $0x568] sm:$0xff] %v2526
    %2783 = vst [vmem:[#allocation8 + $0x570] sm:$0xff] %v2527
    %2784 = vst [vmem:[#allocation8 + $0x578] sm:$0xff] %v2528
    %2785 = vst [vmem:[#allocation8 + $0x580] sm:$0xff] %v2529
    %2786 = vst [vmem:[#allocation8 + $0x588] sm:$0xff] %v2530
    %2787 = vst [vmem:[#allocation8 + $0x590] sm:$0xff] %v2531
    %2788 = vst [vmem:[#allocation8 + $0x598] sm:$0xff] %v2532
    %2789 = vst [vmem:[#allocation8 + $0x5a0] sm:$0xff] %v2533
    %2790 = vst [vmem:[#allocation8 + $0x5a8] sm:$0xff] %v2534
    %2791 = vst [vmem:[#allocation8 + $0x5b0] sm:$0xff] %v2535
    %2792 = vst [vmem:[#allocation8 + $0x5b8] sm:$0xff] %v2536
    %2793 = vst [vmem:[#allocation8 + $0x5c0] sm:$0xff] %v2537
    %2794 = vst [vmem:[#allocation8 + $0x5c8] sm:$0xff] %v2538
    %2795 = vst [vmem:[#allocation8 + $0x5d0] sm:$0xff] %v2539
    %2796 = vst [vmem:[#allocation8 + $0x5d8] sm:$0xff] %v2540
    %2797 = vst [vmem:[#allocation8 + $0x5e0] sm:$0xff] %v2541
    %2798 = vst [vmem:[#allocation8 + $0x5e8] sm:$0xff] %v2542
    %2799 = vst [vmem:[#allocation8 + $0x5f0] sm:$0xff] %v2543
    %2800 = vst [vmem:[#allocation8 + $0x5f8] sm:$0xff] %v2544
    %2801 = vst [vmem:[#allocation8 + $0x600] sm:$0xff] %v2545
    %2802 = vst [vmem:[#allocation8 + $0x608] sm:$0xff] %v2546
    %2803 = vst [vmem:[#allocation8 + $0x610] sm:$0xff] %v2547
    %2804 = vst [vmem:[#allocation8 + $0x618] sm:$0xff] %v2548
    %2805 = vst [vmem:[#allocation8 + $0x620] sm:$0xff] %v2549
    %2806 = vst [vmem:[#allocation8 + $0x628] sm:$0xff] %v2550
    %2807 = vst [vmem:[#allocation8 + $0x630] sm:$0xff] %v2551
    %2808 = vst [vmem:[#allocation8 + $0x638] sm:$0xff] %v2552
    %2809 = vst [vmem:[#allocation8 + $0x640] sm:$0xff] %v2553
    %2810 = vst [vmem:[#allocation8 + $0x648] sm:$0xff] %v2554
    %2811 = vst [vmem:[#allocation8 + $0x650] sm:$0xff] %v2555
    %2812 = vst [vmem:[#allocation8 + $0x658] sm:$0xff] %v2556
    %2813 = vst [vmem:[#allocation8 + $0x660] sm:$0xff] %v2557
    %2814 = vst [vmem:[#allocation8 + $0x668] sm:$0xff] %v2558
    %2815 = vst [vmem:[#allocation8 + $0x670] sm:$0xff] %v2559
    %2816 = vst [vmem:[#allocation8 + $0x678] sm:$0xff] %v2560
    %2817 = vst [vmem:[#allocation8 + $0x680] sm:$0xff] %v2561
    %2818 = vst [vmem:[#allocation8 + $0x688] sm:$0xff] %v2562
    %2819 = vst [vmem:[#allocation8 + $0x690] sm:$0xff] %v2563
    %2820 = vst [vmem:[#allocation8 + $0x698] sm:$0xff] %v2564
    %2821 = vst [vmem:[#allocation8 + $0x6a0] sm:$0xff] %v2565
    %2822 = vst [vmem:[#allocation8 + $0x6a8] sm:$0xff] %v2566
    %2823 = vst [vmem:[#allocation8 + $0x6b0] sm:$0xff] %v2567
    %2824 = vst [vmem:[#allocation8 + $0x6b8] sm:$0xff] %v2568
    %2825 = vst [vmem:[#allocation8 + $0x6c0] sm:$0xff] %v2569
    %2826 = vst [vmem:[#allocation8 + $0x6c8] sm:$0xff] %v2570
    %2827 = vst [vmem:[#allocation8 + $0x6d0] sm:$0xff] %v2571
    %2828 = vst [vmem:[#allocation8 + $0x6d8] sm:$0xff] %v2572
    %2829 = vst [vmem:[#allocation8 + $0x6e0] sm:$0xff] %v2573
    %2830 = vst [vmem:[#allocation8 + $0x6e8] sm:$0xff] %v2574
    %2831 = vst [vmem:[#allocation8 + $0x6f0] sm:$0xff] %v2575
    %2832 = vst [vmem:[#allocation8 + $0x6f8] sm:$0xff] %v2576
    %2833 = vst [vmem:[#allocation8 + $0x700] sm:$0xff] %v2577
    %2834 = vst [vmem:[#allocation8 + $0x708] sm:$0xff] %v2578
    %2835 = vst [vmem:[#allocation8 + $0x710] sm:$0xff] %v2579
    %2836 = vst [vmem:[#allocation8 + $0x718] sm:$0xff] %v2580
    %2837 = vst [vmem:[#allocation8 + $0x720] sm:$0xff] %v2581
    %2838 = vst [vmem:[#allocation8 + $0x728] sm:$0xff] %v2582
    %2839 = vst [vmem:[#allocation8 + $0x730] sm:$0xff] %v2583
    %2840 = vst [vmem:[#allocation8 + $0x738] sm:$0xff] %v2584
    %2841 = vst [vmem:[#allocation8 + $0x740] sm:$0xff] %v2585
    %2842 = vst [vmem:[#allocation8 + $0x748] sm:$0xff] %v2586
    %2843 = vst [vmem:[#allocation8 + $0x750] sm:$0xff] %v2587
    %2844 = vst [vmem:[#allocation8 + $0x758] sm:$0xff] %v2588
    %2845 = vst [vmem:[#allocation8 + $0x760] sm:$0xff] %v2589
    %2846 = vst [vmem:[#allocation8 + $0x768] sm:$0xff] %v2590
    %2847 = vst [vmem:[#allocation8 + $0x770] sm:$0xff] %v2591
    %2848 = vst [vmem:[#allocation8 + $0x778] sm:$0xff] %v2592
    %2849 = vst [vmem:[#allocation8 + $0x780] sm:$0xff] %v2593
    %2850 = vst [vmem:[#allocation8 + $0x788] sm:$0xff] %v2594
    %2851 = vst [vmem:[#allocation8 + $0x790] sm:$0xff] %v2595
    %2852 = vst [vmem:[#allocation8 + $0x798] sm:$0xff] %v2596
    %2853 = vst [vmem:[#allocation8 + $0x7a0] sm:$0xff] %v2597
    %2854 = vst [vmem:[#allocation8 + $0x7a8] sm:$0xff] %v2598
    %2855 = vst [vmem:[#allocation8 + $0x7b0] sm:$0xff] %v2599
    %2856 = vst [vmem:[#allocation8 + $0x7b8] sm:$0xff] %v2600
    %2857 = vst [vmem:[#allocation8 + $0x7c0] sm:$0xff] %v2601
    %2858 = vst [vmem:[#allocation8 + $0x7c8] sm:$0xff] %v2602
    %2859 = vst [vmem:[#allocation8 + $0x7d0] sm:$0xff] %v2603
    %2860 = vst [vmem:[#allocation8 + $0x7d8] sm:$0xff] %v2604
    %2861 = vst [vmem:[#allocation8 + $0x7e0] sm:$0xff] %v2605
    %2862 = vst [vmem:[#allocation8 + $0x7e8] sm:$0xff] %v2606
    %2863 = vst [vmem:[#allocation8 + $0x7f0] sm:$0xff] %v2607
    %2864 = vst [vmem:[#allocation8 + $0x7f8] sm:$0xff] %v2608
    %v2865 = vmul.f32 %v2097, %v303
    %v2866 = vmul.f32 %v2098, %v304
    %v2867 = vmul.f32 %v2099, %v305
    %v2868 = vmul.f32 %v2100, %v306
    %v2869 = vmul.f32 %v2101, %v307
    %v2870 = vmul.f32 %v2102, %v308
    %v2871 = vmul.f32 %v2103, %v309
    %v2872 = vmul.f32 %v2104, %v310
    %v2873 = vmul.f32 %v2105, %v311
    %v2874 = vmul.f32 %v2106, %v312
    %v2875 = vmul.f32 %v2107, %v313
    %v2876 = vmul.f32 %v2108, %v314
    %v2877 = vmul.f32 %v2109, %v315
    %v2878 = vmul.f32 %v2110, %v316
    %v2879 = vmul.f32 %v2111, %v317
    %v2880 = vmul.f32 %v2112, %v318
    %v2881 = vmul.f32 %v2113, %v319
    %v2882 = vmul.f32 %v2114, %v320
    %v2883 = vmul.f32 %v2115, %v321
    %v2884 = vmul.f32 %v2116, %v322
    %v2885 = vmul.f32 %v2117, %v323
    %v2886 = vmul.f32 %v2118, %v324
    %v2887 = vmul.f32 %v2119, %v325
    %v2888 = vmul.f32 %v2120, %v326
    %v2889 = vmul.f32 %v2121, %v327
    %v2890 = vmul.f32 %v2122, %v328
    %v2891 = vmul.f32 %v2123, %v329
    %v2892 = vmul.f32 %v2124, %v330
    %v2893 = vmul.f32 %v2125, %v331
    %v2894 = vmul.f32 %v2126, %v332
    %v2895 = vmul.f32 %v2127, %v333
    %v2896 = vmul.f32 %v2128, %v334
    %v2897 = vmul.f32 %v2129, %v335
    %v2898 = vmul.f32 %v2130, %v336
    %v2899 = vmul.f32 %v2131, %v337
    %v2900 = vmul.f32 %v2132, %v338
    %v2901 = vmul.f32 %v2133, %v339
    %v2902 = vmul.f32 %v2134, %v340
    %v2903 = vmul.f32 %v2135, %v341
    %v2904 = vmul.f32 %v2136, %v342
    %v2905 = vmul.f32 %v2137, %v343
    %v2906 = vmul.f32 %v2138, %v344
    %v2907 = vmul.f32 %v2139, %v345
    %v2908 = vmul.f32 %v2140, %v346
    %v2909 = vmul.f32 %v2141, %v347
    %v2910 = vmul.f32 %v2142, %v348
    %v2911 = vmul.f32 %v2143, %v349
    %v2912 = vmul.f32 %v2144, %v350
    %v2913 = vmul.f32 %v2145, %v351
    %v2914 = vmul.f32 %v2146, %v352
    %v2915 = vmul.f32 %v2147, %v353
    %v2916 = vmul.f32 %v2148, %v354
    %v2917 = vmul.f32 %v2149, %v355
    %v2918 = vmul.f32 %v2150, %v356
    %v2919 = vmul.f32 %v2151, %v357
    %v2920 = vmul.f32 %v2152, %v358
    %v2921 = vmul.f32 %v2153, %v359
    %v2922 = vmul.f32 %v2154, %v360
    %v2923 = vmul.f32 %v2155, %v361
    %v2924 = vmul.f32 %v2156, %v362
    %v2925 = vmul.f32 %v2157, %v363
    %v2926 = vmul.f32 %v2158, %v364
    %v2927 = vmul.f32 %v2159, %v365
    %v2928 = vmul.f32 %v2160, %v366
    %v2929 = vmul.f32 %v2161, %v367
    %v2930 = vmul.f32 %v2162, %v368
    %v2931 = vmul.f32 %v2163, %v369
    %v2932 = vmul.f32 %v2164, %v370
    %v2933 = vmul.f32 %v2165, %v371
    %v2934 = vmul.f32 %v2166, %v372
    %v2935 = vmul.f32 %v2167, %v373
    %v2936 = vmul.f32 %v2168, %v374
    %v2937 = vmul.f32 %v2169, %v375
    %v2938 = vmul.f32 %v2170, %v376
    %v2939 = vmul.f32 %v2171, %v377
    %v2940 = vmul.f32 %v2172, %v378
    %v2941 = vmul.f32 %v2173, %v379
    %v2942 = vmul.f32 %v2174, %v380
    %v2943 = vmul.f32 %v2175, %v381
    %v2944 = vmul.f32 %v2176, %v382
    %v2945 = vmul.f32 %v2177, %v383
    %v2946 = vmul.f32 %v2178, %v384
    %v2947 = vmul.f32 %v2179, %v385
    %v2948 = vmul.f32 %v2180, %v386
    %v2949 = vmul.f32 %v2181, %v387
    %v2950 = vmul.f32 %v2182, %v388
    %v2951 = vmul.f32 %v2183, %v389
    %v2952 = vmul.f32 %v2184, %v390
    %v2953 = vmul.f32 %v2185, %v391
    %v2954 = vmul.f32 %v2186, %v392
    %v2955 = vmul.f32 %v2187, %v393
    %v2956 = vmul.f32 %v2188, %v394
    %v2957 = vmul.f32 %v2189, %v395
    %v2958 = vmul.f32 %v2190, %v396
    %v2959 = vmul.f32 %v2191, %v397
    %v2960 = vmul.f32 %v2192, %v398
    %v2961 = vmul.f32 %v2193, %v399
    %v2962 = vmul.f32 %v2194, %v400
    %v2963 = vmul.f32 %v2195, %v401
    %v2964 = vmul.f32 %v2196, %v402
    %v2965 = vmul.f32 %v2197, %v403
    %v2966 = vmul.f32 %v2198, %v404
    %v2967 = vmul.f32 %v2199, %v405
    %v2968 = vmul.f32 %v2200, %v406
    %v2969 = vmul.f32 %v2201, %v407
    %v2970 = vmul.f32 %v2202, %v408
    %v2971 = vmul.f32 %v2203, %v409
    %v2972 = vmul.f32 %v2204, %v410
    %v2973 = vmul.f32 %v2205, %v411
    %v2974 = vmul.f32 %v2206, %v412
    %v2975 = vmul.f32 %v2207, %v413
    %v2976 = vmul.f32 %v2208, %v414
    %v2977 = vmul.f32 %v2209, %v415
    %v2978 = vmul.f32 %v2210, %v416
    %v2979 = vmul.f32 %v2211, %v417
    %v2980 = vmul.f32 %v2212, %v418
    %v2981 = vmul.f32 %v2213, %v419
    %v2982 = vmul.f32 %v2214, %v420
    %v2983 = vmul.f32 %v2215, %v421
    %v2984 = vmul.f32 %v2216, %v422
    %v2985 = vmul.f32 %v2217, %v423
    %v2986 = vmul.f32 %v2218, %v424
    %v2987 = vmul.f32 %v2219, %v425
    %v2988 = vmul.f32 %v2220, %v426
    %v2989 = vmul.f32 %v2221, %v427
    %v2990 = vmul.f32 %v2222, %v428
    %v2991 = vmul.f32 %v2223, %v429
    %v2992 = vmul.f32 %v2224, %v430
    %v2993 = vmul.f32 %v2225, %v431
    %v2994 = vmul.f32 %v2226, %v432
    %v2995 = vmul.f32 %v2227, %v433
    %v2996 = vmul.f32 %v2228, %v434
    %v2997 = vmul.f32 %v2229, %v435
    %v2998 = vmul.f32 %v2230, %v436
    %v2999 = vmul.f32 %v2231, %v437
    %v3000 = vmul.f32 %v2232, %v438
    %v3001 = vmul.f32 %v2233, %v439
    %v3002 = vmul.f32 %v2234, %v440
    %v3003 = vmul.f32 %v2235, %v441
    %v3004 = vmul.f32 %v2236, %v442
    %v3005 = vmul.f32 %v2237, %v443
    %v3006 = vmul.f32 %v2238, %v444
    %v3007 = vmul.f32 %v2239, %v445
    %v3008 = vmul.f32 %v2240, %v446
    %v3009 = vmul.f32 %v2241, %v447
    %v3010 = vmul.f32 %v2242, %v448
    %v3011 = vmul.f32 %v2243, %v449
    %v3012 = vmul.f32 %v2244, %v450
    %v3013 = vmul.f32 %v2245, %v451
    %v3014 = vmul.f32 %v2246, %v452
    %v3015 = vmul.f32 %v2247, %v453
    %v3016 = vmul.f32 %v2248, %v454
    %v3017 = vmul.f32 %v2249, %v455
    %v3018 = vmul.f32 %v2250, %v456
    %v3019 = vmul.f32 %v2251, %v457
    %v3020 = vmul.f32 %v2252, %v458
    %v3021 = vmul.f32 %v2253, %v459
    %v3022 = vmul.f32 %v2254, %v460
    %v3023 = vmul.f32 %v2255, %v461
    %v3024 = vmul.f32 %v2256, %v462
    %v3025 = vmul.f32 %v2257, %v463
    %v3026 = vmul.f32 %v2258, %v464
    %v3027 = vmul.f32 %v2259, %v465
    %v3028 = vmul.f32 %v2260, %v466
    %v3029 = vmul.f32 %v2261, %v467
    %v3030 = vmul.f32 %v2262, %v468
    %v3031 = vmul.f32 %v2263, %v469
    %v3032 = vmul.f32 %v2264, %v470
    %v3033 = vmul.f32 %v2265, %v471
    %v3034 = vmul.f32 %v2266, %v472
    %v3035 = vmul.f32 %v2267, %v473
    %v3036 = vmul.f32 %v2268, %v474
    %v3037 = vmul.f32 %v2269, %v475
    %v3038 = vmul.f32 %v2270, %v476
    %v3039 = vmul.f32 %v2271, %v477
    %v3040 = vmul.f32 %v2272, %v478
    %v3041 = vmul.f32 %v2273, %v479
    %v3042 = vmul.f32 %v2274, %v480
    %v3043 = vmul.f32 %v2275, %v481
    %v3044 = vmul.f32 %v2276, %v482
    %v3045 = vmul.f32 %v2277, %v483
    %v3046 = vmul.f32 %v2278, %v484
    %v3047 = vmul.f32 %v2279, %v485
    %v3048 = vmul.f32 %v2280, %v486
    %v3049 = vmul.f32 %v2281, %v487
    %v3050 = vmul.f32 %v2282, %v488
    %v3051 = vmul.f32 %v2283, %v489
    %v3052 = vmul.f32 %v2284, %v490
    %v3053 = vmul.f32 %v2285, %v491
    %v3054 = vmul.f32 %v2286, %v492
    %v3055 = vmul.f32 %v2287, %v493
    %v3056 = vmul.f32 %v2288, %v494
    %v3057 = vmul.f32 %v2289, %v495
    %v3058 = vmul.f32 %v2290, %v496
    %v3059 = vmul.f32 %v2291, %v497
    %v3060 = vmul.f32 %v2292, %v498
    %v3061 = vmul.f32 %v2293, %v499
    %v3062 = vmul.f32 %v2294, %v500
    %v3063 = vmul.f32 %v2295, %v501
    %v3064 = vmul.f32 %v2296, %v502
    %v3065 = vmul.f32 %v2297, %v503
    %v3066 = vmul.f32 %v2298, %v504
    %v3067 = vmul.f32 %v2299, %v505
    %v3068 = vmul.f32 %v2300, %v506
    %v3069 = vmul.f32 %v2301, %v507
    %v3070 = vmul.f32 %v2302, %v508
    %v3071 = vmul.f32 %v2303, %v509
    %v3072 = vmul.f32 %v2304, %v510
    %v3073 = vmul.f32 %v2305, %v511
    %v3074 = vmul.f32 %v2306, %v512
    %v3075 = vmul.f32 %v2307, %v513
    %v3076 = vmul.f32 %v2308, %v514
    %v3077 = vmul.f32 %v2309, %v515
    %v3078 = vmul.f32 %v2310, %v516
    %v3079 = vmul.f32 %v2311, %v517
    %v3080 = vmul.f32 %v2312, %v518
    %v3081 = vmul.f32 %v2313, %v519
    %v3082 = vmul.f32 %v2314, %v520
    %v3083 = vmul.f32 %v2315, %v521
    %v3084 = vmul.f32 %v2316, %v522
    %v3085 = vmul.f32 %v2317, %v523
    %v3086 = vmul.f32 %v2318, %v524
    %v3087 = vmul.f32 %v2319, %v525
    %v3088 = vmul.f32 %v2320, %v526
    %v3089 = vmul.f32 %v2321, %v527
    %v3090 = vmul.f32 %v2322, %v528
    %v3091 = vmul.f32 %v2323, %v529
    %v3092 = vmul.f32 %v2324, %v530
    %v3093 = vmul.f32 %v2325, %v531
    %v3094 = vmul.f32 %v2326, %v532
    %v3095 = vmul.f32 %v2327, %v533
    %v3096 = vmul.f32 %v2328, %v534
    %v3097 = vmul.f32 %v2329, %v535
    %v3098 = vmul.f32 %v2330, %v536
    %v3099 = vmul.f32 %v2331, %v537
    %v3100 = vmul.f32 %v2332, %v538
    %v3101 = vmul.f32 %v2333, %v539
    %v3102 = vmul.f32 %v2334, %v540
    %v3103 = vmul.f32 %v2335, %v541
    %v3104 = vmul.f32 %v2336, %v542
    %v3105 = vmul.f32 %v2337, %v543
    %v3106 = vmul.f32 %v2338, %v544
    %v3107 = vmul.f32 %v2339, %v545
    %v3108 = vmul.f32 %v2340, %v546
    %v3109 = vmul.f32 %v2341, %v547
    %v3110 = vmul.f32 %v2342, %v548
    %v3111 = vmul.f32 %v2343, %v549
    %v3112 = vmul.f32 %v2344, %v550
    %v3113 = vmul.f32 %v2345, %v551
    %v3114 = vmul.f32 %v2346, %v552
    %v3115 = vmul.f32 %v2347, %v553
    %v3116 = vmul.f32 %v2348, %v554
    %v3117 = vmul.f32 %v2349, %v555
    %v3118 = vmul.f32 %v2350, %v556
    %v3119 = vmul.f32 %v2351, %v557
    %v3120 = vmul.f32 %v2352, %v558
    %3121 = vst [vmem:[#allocation9] sm:$0xff] %v2865
    %3122 = vst [vmem:[#allocation9 + $0x8] sm:$0xff] %v2866
    %3123 = vst [vmem:[#allocation9 + $0x10] sm:$0xff] %v2867
    %3124 = vst [vmem:[#allocation9 + $0x18] sm:$0xff] %v2868
    %3125 = vst [vmem:[#allocation9 + $0x20] sm:$0xff] %v2869
    %3126 = vst [vmem:[#allocation9 + $0x28] sm:$0xff] %v2870
    %3127 = vst [vmem:[#allocation9 + $0x30] sm:$0xff] %v2871
    %3128 = vst [vmem:[#allocation9 + $0x38] sm:$0xff] %v2872
    %3129 = vst [vmem:[#allocation9 + $0x40] sm:$0xff] %v2873
    %3130 = vst [vmem:[#allocation9 + $0x48] sm:$0xff] %v2874
    %3131 = vst [vmem:[#allocation9 + $0x50] sm:$0xff] %v2875
    %3132 = vst [vmem:[#allocation9 + $0x58] sm:$0xff] %v2876
    %3133 = vst [vmem:[#allocation9 + $0x60] sm:$0xff] %v2877
    %3134 = vst [vmem:[#allocation9 + $0x68] sm:$0xff] %v2878
    %3135 = vst [vmem:[#allocation9 + $0x70] sm:$0xff] %v2879
    %3136 = vst [vmem:[#allocation9 + $0x78] sm:$0xff] %v2880
    %3137 = vst [vmem:[#allocation9 + $0x80] sm:$0xff] %v2881
    %3138 = vst [vmem:[#allocation9 + $0x88] sm:$0xff] %v2882
    %3139 = vst [vmem:[#allocation9 + $0x90] sm:$0xff] %v2883
    %3140 = vst [vmem:[#allocation9 + $0x98] sm:$0xff] %v2884
    %3141 = vst [vmem:[#allocation9 + $0xa0] sm:$0xff] %v2885
    %3142 = vst [vmem:[#allocation9 + $0xa8] sm:$0xff] %v2886
    %3143 = vst [vmem:[#allocation9 + $0xb0] sm:$0xff] %v2887
    %3144 = vst [vmem:[#allocation9 + $0xb8] sm:$0xff] %v2888
    %3145 = vst [vmem:[#allocation9 + $0xc0] sm:$0xff] %v2889
    %3146 = vst [vmem:[#allocation9 + $0xc8] sm:$0xff] %v2890
    %3147 = vst [vmem:[#allocation9 + $0xd0] sm:$0xff] %v2891
    %3148 = vst [vmem:[#allocation9 + $0xd8] sm:$0xff] %v2892
    %3149 = vst [vmem:[#allocation9 + $0xe0] sm:$0xff] %v2893
    %3150 = vst [vmem:[#allocation9 + $0xe8] sm:$0xff] %v2894
    %3151 = vst [vmem:[#allocation9 + $0xf0] sm:$0xff] %v2895
    %3152 = vst [vmem:[#allocation9 + $0xf8] sm:$0xff] %v2896
    %3153 = vst [vmem:[#allocation9 + $0x100] sm:$0xff] %v2897
    %3154 = vst [vmem:[#allocation9 + $0x108] sm:$0xff] %v2898
    %3155 = vst [vmem:[#allocation9 + $0x110] sm:$0xff] %v2899
    %3156 = vst [vmem:[#allocation9 + $0x118] sm:$0xff] %v2900
    %3157 = vst [vmem:[#allocation9 + $0x120] sm:$0xff] %v2901
    %3158 = vst [vmem:[#allocation9 + $0x128] sm:$0xff] %v2902
    %3159 = vst [vmem:[#allocation9 + $0x130] sm:$0xff] %v2903
    %3160 = vst [vmem:[#allocation9 + $0x138] sm:$0xff] %v2904
    %3161 = vst [vmem:[#allocation9 + $0x140] sm:$0xff] %v2905
    %3162 = vst [vmem:[#allocation9 + $0x148] sm:$0xff] %v2906
    %3163 = vst [vmem:[#allocation9 + $0x150] sm:$0xff] %v2907
    %3164 = vst [vmem:[#allocation9 + $0x158] sm:$0xff] %v2908
    %3165 = vst [vmem:[#allocation9 + $0x160] sm:$0xff] %v2909
    %3166 = vst [vmem:[#allocation9 + $0x168] sm:$0xff] %v2910
    %3167 = vst [vmem:[#allocation9 + $0x170] sm:$0xff] %v2911
    %3168 = vst [vmem:[#allocation9 + $0x178] sm:$0xff] %v2912
    %3169 = vst [vmem:[#allocation9 + $0x180] sm:$0xff] %v2913
    %3170 = vst [vmem:[#allocation9 + $0x188] sm:$0xff] %v2914
    %3171 = vst [vmem:[#allocation9 + $0x190] sm:$0xff] %v2915
    %3172 = vst [vmem:[#allocation9 + $0x198] sm:$0xff] %v2916
    %3173 = vst [vmem:[#allocation9 + $0x1a0] sm:$0xff] %v2917
    %3174 = vst [vmem:[#allocation9 + $0x1a8] sm:$0xff] %v2918
    %3175 = vst [vmem:[#allocation9 + $0x1b0] sm:$0xff] %v2919
    %3176 = vst [vmem:[#allocation9 + $0x1b8] sm:$0xff] %v2920
    %3177 = vst [vmem:[#allocation9 + $0x1c0] sm:$0xff] %v2921
    %3178 = vst [vmem:[#allocation9 + $0x1c8] sm:$0xff] %v2922
    %3179 = vst [vmem:[#allocation9 + $0x1d0] sm:$0xff] %v2923
    %3180 = vst [vmem:[#allocation9 + $0x1d8] sm:$0xff] %v2924
    %3181 = vst [vmem:[#allocation9 + $0x1e0] sm:$0xff] %v2925
    %3182 = vst [vmem:[#allocation9 + $0x1e8] sm:$0xff] %v2926
    %3183 = vst [vmem:[#allocation9 + $0x1f0] sm:$0xff] %v2927
    %3184 = vst [vmem:[#allocation9 + $0x1f8] sm:$0xff] %v2928
    %3185 = vst [vmem:[#allocation9 + $0x200] sm:$0xff] %v2929
    %3186 = vst [vmem:[#allocation9 + $0x208] sm:$0xff] %v2930
    %3187 = vst [vmem:[#allocation9 + $0x210] sm:$0xff] %v2931
    %3188 = vst [vmem:[#allocation9 + $0x218] sm:$0xff] %v2932
    %3189 = vst [vmem:[#allocation9 + $0x220] sm:$0xff] %v2933
    %3190 = vst [vmem:[#allocation9 + $0x228] sm:$0xff] %v2934
    %3191 = vst [vmem:[#allocation9 + $0x230] sm:$0xff] %v2935
    %3192 = vst [vmem:[#allocation9 + $0x238] sm:$0xff] %v2936
    %3193 = vst [vmem:[#allocation9 + $0x240] sm:$0xff] %v2937
    %3194 = vst [vmem:[#allocation9 + $0x248] sm:$0xff] %v2938
    %3195 = vst [vmem:[#allocation9 + $0x250] sm:$0xff] %v2939
    %3196 = vst [vmem:[#allocation9 + $0x258] sm:$0xff] %v2940
    %3197 = vst [vmem:[#allocation9 + $0x260] sm:$0xff] %v2941
    %3198 = vst [vmem:[#allocation9 + $0x268] sm:$0xff] %v2942
    %3199 = vst [vmem:[#allocation9 + $0x270] sm:$0xff] %v2943
    %3200 = vst [vmem:[#allocation9 + $0x278] sm:$0xff] %v2944
    %3201 = vst [vmem:[#allocation9 + $0x280] sm:$0xff] %v2945
    %3202 = vst [vmem:[#allocation9 + $0x288] sm:$0xff] %v2946
    %3203 = vst [vmem:[#allocation9 + $0x290] sm:$0xff] %v2947
    %3204 = vst [vmem:[#allocation9 + $0x298] sm:$0xff] %v2948
    %3205 = vst [vmem:[#allocation9 + $0x2a0] sm:$0xff] %v2949
    %3206 = vst [vmem:[#allocation9 + $0x2a8] sm:$0xff] %v2950
    %3207 = vst [vmem:[#allocation9 + $0x2b0] sm:$0xff] %v2951
    %3208 = vst [vmem:[#allocation9 + $0x2b8] sm:$0xff] %v2952
    %3209 = vst [vmem:[#allocation9 + $0x2c0] sm:$0xff] %v2953
    %3210 = vst [vmem:[#allocation9 + $0x2c8] sm:$0xff] %v2954
    %3211 = vst [vmem:[#allocation9 + $0x2d0] sm:$0xff] %v2955
    %3212 = vst [vmem:[#allocation9 + $0x2d8] sm:$0xff] %v2956
    %3213 = vst [vmem:[#allocation9 + $0x2e0] sm:$0xff] %v2957
    %3214 = vst [vmem:[#allocation9 + $0x2e8] sm:$0xff] %v2958
    %3215 = vst [vmem:[#allocation9 + $0x2f0] sm:$0xff] %v2959
    %3216 = vst [vmem:[#allocation9 + $0x2f8] sm:$0xff] %v2960
    %3217 = vst [vmem:[#allocation9 + $0x300] sm:$0xff] %v2961
    %3218 = vst [vmem:[#allocation9 + $0x308] sm:$0xff] %v2962
    %3219 = vst [vmem:[#allocation9 + $0x310] sm:$0xff] %v2963
    %3220 = vst [vmem:[#allocation9 + $0x318] sm:$0xff] %v2964
    %3221 = vst [vmem:[#allocation9 + $0x320] sm:$0xff] %v2965
    %3222 = vst [vmem:[#allocation9 + $0x328] sm:$0xff] %v2966
    %3223 = vst [vmem:[#allocation9 + $0x330] sm:$0xff] %v2967
    %3224 = vst [vmem:[#allocation9 + $0x338] sm:$0xff] %v2968
    %3225 = vst [vmem:[#allocation9 + $0x340] sm:$0xff] %v2969
    %3226 = vst [vmem:[#allocation9 + $0x348] sm:$0xff] %v2970
    %3227 = vst [vmem:[#allocation9 + $0x350] sm:$0xff] %v2971
    %3228 = vst [vmem:[#allocation9 + $0x358] sm:$0xff] %v2972
    %3229 = vst [vmem:[#allocation9 + $0x360] sm:$0xff] %v2973
    %3230 = vst [vmem:[#allocation9 + $0x368] sm:$0xff] %v2974
    %3231 = vst [vmem:[#allocation9 + $0x370] sm:$0xff] %v2975
    %3232 = vst [vmem:[#allocation9 + $0x378] sm:$0xff] %v2976
    %3233 = vst [vmem:[#allocation9 + $0x380] sm:$0xff] %v2977
    %3234 = vst [vmem:[#allocation9 + $0x388] sm:$0xff] %v2978
    %3235 = vst [vmem:[#allocation9 + $0x390] sm:$0xff] %v2979
    %3236 = vst [vmem:[#allocation9 + $0x398] sm:$0xff] %v2980
    %3237 = vst [vmem:[#allocation9 + $0x3a0] sm:$0xff] %v2981
    %3238 = vst [vmem:[#allocation9 + $0x3a8] sm:$0xff] %v2982
    %3239 = vst [vmem:[#allocation9 + $0x3b0] sm:$0xff] %v2983
    %3240 = vst [vmem:[#allocation9 + $0x3b8] sm:$0xff] %v2984
    %3241 = vst [vmem:[#allocation9 + $0x3c0] sm:$0xff] %v2985
    %3242 = vst [vmem:[#allocation9 + $0x3c8] sm:$0xff] %v2986
    %3243 = vst [vmem:[#allocation9 + $0x3d0] sm:$0xff] %v2987
    %3244 = vst [vmem:[#allocation9 + $0x3d8] sm:$0xff] %v2988
    %3245 = vst [vmem:[#allocation9 + $0x3e0] sm:$0xff] %v2989
    %3246 = vst [vmem:[#allocation9 + $0x3e8] sm:$0xff] %v2990
    %3247 = vst [vmem:[#allocation9 + $0x3f0] sm:$0xff] %v2991
    %3248 = vst [vmem:[#allocation9 + $0x3f8] sm:$0xff] %v2992
    %3249 = vst [vmem:[#allocation9 + $0x400] sm:$0xff] %v2993
    %3250 = vst [vmem:[#allocation9 + $0x408] sm:$0xff] %v2994
    %3251 = vst [vmem:[#allocation9 + $0x410] sm:$0xff] %v2995
    %3252 = vst [vmem:[#allocation9 + $0x418] sm:$0xff] %v2996
    %3253 = vst [vmem:[#allocation9 + $0x420] sm:$0xff] %v2997
    %3254 = vst [vmem:[#allocation9 + $0x428] sm:$0xff] %v2998
    %3255 = vst [vmem:[#allocation9 + $0x430] sm:$0xff] %v2999
    %3256 = vst [vmem:[#allocation9 + $0x438] sm:$0xff] %v3000
    %3257 = vst [vmem:[#allocation9 + $0x440] sm:$0xff] %v3001
    %3258 = vst [vmem:[#allocation9 + $0x448] sm:$0xff] %v3002
    %3259 = vst [vmem:[#allocation9 + $0x450] sm:$0xff] %v3003
    %3260 = vst [vmem:[#allocation9 + $0x458] sm:$0xff] %v3004
    %3261 = vst [vmem:[#allocation9 + $0x460] sm:$0xff] %v3005
    %3262 = vst [vmem:[#allocation9 + $0x468] sm:$0xff] %v3006
    %3263 = vst [vmem:[#allocation9 + $0x470] sm:$0xff] %v3007
    %3264 = vst [vmem:[#allocation9 + $0x478] sm:$0xff] %v3008
    %3265 = vst [vmem:[#allocation9 + $0x480] sm:$0xff] %v3009
    %3266 = vst [vmem:[#allocation9 + $0x488] sm:$0xff] %v3010
    %3267 = vst [vmem:[#allocation9 + $0x490] sm:$0xff] %v3011
    %3268 = vst [vmem:[#allocation9 + $0x498] sm:$0xff] %v3012
    %3269 = vst [vmem:[#allocation9 + $0x4a0] sm:$0xff] %v3013
    %3270 = vst [vmem:[#allocation9 + $0x4a8] sm:$0xff] %v3014
    %3271 = vst [vmem:[#allocation9 + $0x4b0] sm:$0xff] %v3015
    %3272 = vst [vmem:[#allocation9 + $0x4b8] sm:$0xff] %v3016
    %3273 = vst [vmem:[#allocation9 + $0x4c0] sm:$0xff] %v3017
    %3274 = vst [vmem:[#allocation9 + $0x4c8] sm:$0xff] %v3018
    %3275 = vst [vmem:[#allocation9 + $0x4d0] sm:$0xff] %v3019
    %3276 = vst [vmem:[#allocation9 + $0x4d8] sm:$0xff] %v3020
    %3277 = vst [vmem:[#allocation9 + $0x4e0] sm:$0xff] %v3021
    %3278 = vst [vmem:[#allocation9 + $0x4e8] sm:$0xff] %v3022
    %3279 = vst [vmem:[#allocation9 + $0x4f0] sm:$0xff] %v3023
    %3280 = vst [vmem:[#allocation9 + $0x4f8] sm:$0xff] %v3024
    %3281 = vst [vmem:[#allocation9 + $0x500] sm:$0xff] %v3025
    %3282 = vst [vmem:[#allocation9 + $0x508] sm:$0xff] %v3026
    %3283 = vst [vmem:[#allocation9 + $0x510] sm:$0xff] %v3027
    %3284 = vst [vmem:[#allocation9 + $0x518] sm:$0xff] %v3028
    %3285 = vst [vmem:[#allocation9 + $0x520] sm:$0xff] %v3029
    %3286 = vst [vmem:[#allocation9 + $0x528] sm:$0xff] %v3030
    %3287 = vst [vmem:[#allocation9 + $0x530] sm:$0xff] %v3031
    %3288 = vst [vmem:[#allocation9 + $0x538] sm:$0xff] %v3032
    %3289 = vst [vmem:[#allocation9 + $0x540] sm:$0xff] %v3033
    %3290 = vst [vmem:[#allocation9 + $0x548] sm:$0xff] %v3034
    %3291 = vst [vmem:[#allocation9 + $0x550] sm:$0xff] %v3035
    %3292 = vst [vmem:[#allocation9 + $0x558] sm:$0xff] %v3036
    %3293 = vst [vmem:[#allocation9 + $0x560] sm:$0xff] %v3037
    %3294 = vst [vmem:[#allocation9 + $0x568] sm:$0xff] %v3038
    %3295 = vst [vmem:[#allocation9 + $0x570] sm:$0xff] %v3039
    %3296 = vst [vmem:[#allocation9 + $0x578] sm:$0xff] %v3040
    %3297 = vst [vmem:[#allocation9 + $0x580] sm:$0xff] %v3041
    %3298 = vst [vmem:[#allocation9 + $0x588] sm:$0xff] %v3042
    %3299 = vst [vmem:[#allocation9 + $0x590] sm:$0xff] %v3043
    %3300 = vst [vmem:[#allocation9 + $0x598] sm:$0xff] %v3044
    %3301 = vst [vmem:[#allocation9 + $0x5a0] sm:$0xff] %v3045
    %3302 = vst [vmem:[#allocation9 + $0x5a8] sm:$0xff] %v3046
    %3303 = vst [vmem:[#allocation9 + $0x5b0] sm:$0xff] %v3047
    %3304 = vst [vmem:[#allocation9 + $0x5b8] sm:$0xff] %v3048
    %3305 = vst [vmem:[#allocation9 + $0x5c0] sm:$0xff] %v3049
    %3306 = vst [vmem:[#allocation9 + $0x5c8] sm:$0xff] %v3050
    %3307 = vst [vmem:[#allocation9 + $0x5d0] sm:$0xff] %v3051
    %3308 = vst [vmem:[#allocation9 + $0x5d8] sm:$0xff] %v3052
    %3309 = vst [vmem:[#allocation9 + $0x5e0] sm:$0xff] %v3053
    %3310 = vst [vmem:[#allocation9 + $0x5e8] sm:$0xff] %v3054
    %3311 = vst [vmem:[#allocation9 + $0x5f0] sm:$0xff] %v3055
    %3312 = vst [vmem:[#allocation9 + $0x5f8] sm:$0xff] %v3056
    %3313 = vst [vmem:[#allocation9 + $0x600] sm:$0xff] %v3057
    %3314 = vst [vmem:[#allocation9 + $0x608] sm:$0xff] %v3058
    %3315 = vst [vmem:[#allocation9 + $0x610] sm:$0xff] %v3059
    %3316 = vst [vmem:[#allocation9 + $0x618] sm:$0xff] %v3060
    %3317 = vst [vmem:[#allocation9 + $0x620] sm:$0xff] %v3061
    %3318 = vst [vmem:[#allocation9 + $0x628] sm:$0xff] %v3062
    %3319 = vst [vmem:[#allocation9 + $0x630] sm:$0xff] %v3063
    %3320 = vst [vmem:[#allocation9 + $0x638] sm:$0xff] %v3064
    %3321 = vst [vmem:[#allocation9 + $0x640] sm:$0xff] %v3065
    %3322 = vst [vmem:[#allocation9 + $0x648] sm:$0xff] %v3066
    %3323 = vst [vmem:[#allocation9 + $0x650] sm:$0xff] %v3067
    %3324 = vst [vmem:[#allocation9 + $0x658] sm:$0xff] %v3068
    %3325 = vst [vmem:[#allocation9 + $0x660] sm:$0xff] %v3069
    %3326 = vst [vmem:[#allocation9 + $0x668] sm:$0xff] %v3070
    %3327 = vst [vmem:[#allocation9 + $0x670] sm:$0xff] %v3071
    %3328 = vst [vmem:[#allocation9 + $0x678] sm:$0xff] %v3072
    %3329 = vst [vmem:[#allocation9 + $0x680] sm:$0xff] %v3073
    %3330 = vst [vmem:[#allocation9 + $0x688] sm:$0xff] %v3074
    %3331 = vst [vmem:[#allocation9 + $0x690] sm:$0xff] %v3075
    %3332 = vst [vmem:[#allocation9 + $0x698] sm:$0xff] %v3076
    %3333 = vst [vmem:[#allocation9 + $0x6a0] sm:$0xff] %v3077
    %3334 = vst [vmem:[#allocation9 + $0x6a8] sm:$0xff] %v3078
    %3335 = vst [vmem:[#allocation9 + $0x6b0] sm:$0xff] %v3079
    %3336 = vst [vmem:[#allocation9 + $0x6b8] sm:$0xff] %v3080
    %3337 = vst [vmem:[#allocation9 + $0x6c0] sm:$0xff] %v3081
    %3338 = vst [vmem:[#allocation9 + $0x6c8] sm:$0xff] %v3082
    %3339 = vst [vmem:[#allocation9 + $0x6d0] sm:$0xff] %v3083
    %3340 = vst [vmem:[#allocation9 + $0x6d8] sm:$0xff] %v3084
    %3341 = vst [vmem:[#allocation9 + $0x6e0] sm:$0xff] %v3085
    %3342 = vst [vmem:[#allocation9 + $0x6e8] sm:$0xff] %v3086
    %3343 = vst [vmem:[#allocation9 + $0x6f0] sm:$0xff] %v3087
    %3344 = vst [vmem:[#allocation9 + $0x6f8] sm:$0xff] %v3088
    %3345 = vst [vmem:[#allocation9 + $0x700] sm:$0xff] %v3089
    %3346 = vst [vmem:[#allocation9 + $0x708] sm:$0xff] %v3090
    %3347 = vst [vmem:[#allocation9 + $0x710] sm:$0xff] %v3091
    %3348 = vst [vmem:[#allocation9 + $0x718] sm:$0xff] %v3092
    %3349 = vst [vmem:[#allocation9 + $0x720] sm:$0xff] %v3093
    %3350 = vst [vmem:[#allocation9 + $0x728] sm:$0xff] %v3094
    %3351 = vst [vmem:[#allocation9 + $0x730] sm:$0xff] %v3095
    %3352 = vst [vmem:[#allocation9 + $0x738] sm:$0xff] %v3096
    %3353 = vst [vmem:[#allocation9 + $0x740] sm:$0xff] %v3097
    %3354 = vst [vmem:[#allocation9 + $0x748] sm:$0xff] %v3098
    %3355 = vst [vmem:[#allocation9 + $0x750] sm:$0xff] %v3099
    %3356 = vst [vmem:[#allocation9 + $0x758] sm:$0xff] %v3100
    %3357 = vst [vmem:[#allocation9 + $0x760] sm:$0xff] %v3101
    %3358 = vst [vmem:[#allocation9 + $0x768] sm:$0xff] %v3102
    %3359 = vst [vmem:[#allocation9 + $0x770] sm:$0xff] %v3103
    %3360 = vst [vmem:[#allocation9 + $0x778] sm:$0xff] %v3104
    %3361 = vst [vmem:[#allocation9 + $0x780] sm:$0xff] %v3105
    %3362 = vst [vmem:[#allocation9 + $0x788] sm:$0xff] %v3106
    %3363 = vst [vmem:[#allocation9 + $0x790] sm:$0xff] %v3107
    %3364 = vst [vmem:[#allocation9 + $0x798] sm:$0xff] %v3108
    %3365 = vst [vmem:[#allocation9 + $0x7a0] sm:$0xff] %v3109
    %3366 = vst [vmem:[#allocation9 + $0x7a8] sm:$0xff] %v3110
    %3367 = vst [vmem:[#allocation9 + $0x7b0] sm:$0xff] %v3111
    %3368 = vst [vmem:[#allocation9 + $0x7b8] sm:$0xff] %v3112
    %3369 = vst [vmem:[#allocation9 + $0x7c0] sm:$0xff] %v3113
    %3370 = vst [vmem:[#allocation9 + $0x7c8] sm:$0xff] %v3114
    %3371 = vst [vmem:[#allocation9 + $0x7d0] sm:$0xff] %v3115
    %3372 = vst [vmem:[#allocation9 + $0x7d8] sm:$0xff] %v3116
    %3373 = vst [vmem:[#allocation9 + $0x7e0] sm:$0xff] %v3117
    %3374 = vst [vmem:[#allocation9 + $0x7e8] sm:$0xff] %v3118
    %3375 = vst [vmem:[#allocation9 + $0x7f0] sm:$0xff] %v3119
    %3376 = vst [vmem:[#allocation9 + $0x7f8] sm:$0xff] %v3120
    // Predicated region
    $region22: #{tpu_custom_call.1} parent=1 // pred_check
      _
    $region23: #{tpu_custom_call.1} parent=1 // pred_check_branch
      %3378 = sbr.rel (0) target = $region25
    $region24: #{tpu_custom_call.1} parent=1 // pred_region
      %s3380 = ssub.s32 32768, 256
      %3381 = vsyncadd [#allocation5], %s3380
      %s3382 = sshll.u32 [#allocation8], 4
      %s3383 = int_to_ptr.vmem [resolvable:$true] %s3382
      %3388 = dma.vmem_to_hbm [thread:$0]  %s3383, 256, %s3, [#allocation5], 256, 256, 16
    $region25: #{tpu_custom_call.1} parent=1 // pred_fallthru
      _
    // Predicated region
    $region26: #{tpu_custom_call.1} parent=1 // pred_check
      _
    $region27: #{tpu_custom_call.1} parent=1 // pred_check_branch
      %3390 = sbr.rel (0) target = $region29
    $region28: #{tpu_custom_call.1} parent=1 // pred_region
      %s3392 = ssub.s32 32768, 256
      %3393 = vsyncadd [#allocation10], %s3392
      %s3394 = sshll.u32 [#allocation9], 4
      %s3395 = int_to_ptr.vmem [resolvable:$true] %s3394
      %3400 = dma.vmem_to_hbm [thread:$0]  %s3395, 256, %s4, [#allocation10], 256, 256, 16
    $region29: #{tpu_custom_call.1} parent=1 // pred_fallthru
      _
    // Predicated region
    $region30: #{tpu_custom_call.1} parent=1 // pred_check
      _
    $region31: #{tpu_custom_call.1} parent=1 // pred_check_branch
      %3402 = sbr.rel (0) target = $region33
    $region32: #{tpu_custom_call.1} parent=1 // pred_region
      %3403 = dma.done [#allocation5], 32768
    $region33: #{tpu_custom_call.1} parent=1 // pred_fallthru
      _
    // Predicated region
    $region34: #{tpu_custom_call.1} parent=1 // pred_check
      _
    $region35: #{tpu_custom_call.1} parent=1 // pred_check_branch
      %3405 = sbr.rel (0) target = $region37
    $region36: #{tpu_custom_call.1} parent=1 // pred_region
      %3406 = dma.done [#allocation10], 32768
    $region37: #{tpu_custom_call.1} parent=1 // pred_fallthru
      _
    %3407 = vsyncpa [#allocation4], 1
    %3408 = vsyncpa [#allocation7], 1
    %3409 = vsyncpa [#allocation5], 1
    %3410 = vsyncpa [#allocation10], 1

</llo_original>
